<compile_context>
chip_gen: v7x
topology: tpu7x:2x2x1
jax: 0.10.0
libtpu: 0.0.40
codegen_flags: <defaults>
</compile_context>

<pallas_src>
import functools

import jax
import jax.numpy as jnp
from jax.experimental import pallas as pl
from jax.experimental.pallas import tpu as pltpu

LANE = 128


def _round_up(n, m):
    return ((n + m - 1) // m) * m


# ----------------------------------- kernel -----------------------------------
def bottleneck_kernel(x_ref, mask_ref, w1_ref, b1_ref, w2_ref, b2_ref,
                      w3_ref, b3_ref, out_ref, pad_ref, *, wp, s0):
    """One batch-group per grid step, flattened padded-pixel layout.

    x_ref   : (M, C)      bf16  padded input pixels (zero in pad ring / row
                                tail); also the residual shortcut.
    mask_ref: (M, 1)      f32   1.0 on valid (i<H, j<W) pixels, 0.0 elsewhere.
    w1_ref  : (C, C1)     bf16  1x1 conv1 weight, BN1 scale folded.
    w2_ref  : (9, C1, C2) bf16  3x3 conv2 weight, tap-major dy*3+dx, BN2 folded.
    w3_ref  : (C2, C)     bf16  1x1 conv3 weight, BN3 scale folded.
    b*_ref  : (1, Cx)     f32   folded BatchNorm biases.
    out_ref : (M, C)      f32   output in the same padded-pixel layout.
    pad_ref : (s0 + M + wp + 1, C1) bf16  flattened conv2 input scratch.
    """
    m = x_ref.shape[0]
    c1 = w1_ref.shape[1]
    c2 = w2_ref.shape[2]

    # Zero the scratch halo: rows [0, s0) are the top/left zero padding that
    # the first output rows read; the short trailing slab is only read by
    # discarded anchor rows but is zeroed so uninitialized VMEM is never read.
    pad_ref[0:s0, :] = jnp.zeros((s0, c1), pad_ref.dtype)
    trail = pad_ref.shape[0] - s0 - m
    pad_ref[s0 + m:s0 + m + trail, :] = jnp.zeros((trail, c1), pad_ref.dtype)

    # ---- conv1 (1x1) + bn1 + relu : one (M, C) x (C, C1) matmul ----
    y1 = jnp.dot(x_ref[...], w1_ref[...], preferred_element_type=jnp.float32)
    # The mask keeps conv2's implicit zero-padding ring (and the per-image
    # row-pad tail) at exactly zero despite the folded BN bias + relu.
    y1 = jnp.maximum(y1 + b1_ref[...], 0.0) * mask_ref[...]
    pad_ref[s0:s0 + m, :] = y1.astype(pad_ref.dtype)       # 16-row-aligned store

    # ---- conv2 (3x3, stride=1, pad=1): 9 accumulated matmuls over contiguous
    #      constant-offset windows of the flattened scratch ----
    acc = jnp.zeros((m, c2), jnp.float32)
    for dy in range(3):
        for dx in range(3):
            off = s0 - (wp + 1) + dy * wp + dx
            acc = acc + jnp.dot(pad_ref[off:off + m, :], w2_ref[dy * 3 + dx],
                                preferred_element_type=jnp.float32)
    y2 = jnp.maximum(acc + b2_ref[...], 0.0).astype(jnp.bfloat16)

    # ---- conv3 (1x1) + bn3 + residual add + relu (residual re-read here) ----
    y3 = jnp.dot(y2, w3_ref[...], preferred_element_type=jnp.float32)
    y3 = y3 + b3_ref[...] + x_ref[...].astype(jnp.float32)
    out_ref[...] = jnp.maximum(y3, 0.0).astype(out_ref.dtype)


# ----------------------------- parameter preparation -----------------------------
def fold_bn(gamma, beta, mean, var, eps=1e-5):
    scale = gamma / jnp.sqrt(var + eps)
    bias = beta - mean * scale
    return scale, bias


def _pad_to(a, shape):
    return jnp.pad(a, [(0, t - s) for s, t in zip(a.shape, shape)])


def prepare_params(w1_oihw, bn1, w2_oihw, bn2, w3_oihw, bn3):
    """Fold BN scale into conv weights, convert to kernel layout, zero-pad all
    channel dims to multiples of 128 lanes, cast matmul operands to bf16."""
    C1, Cin = w1_oihw.shape[:2]
    C2 = w2_oihw.shape[0]
    Cout = w3_oihw.shape[0]
    assert Cout == Cin, "identity shortcut requires outplanes == inplanes"

    s1, b1 = fold_bn(*bn1)
    s2, b2 = fold_bn(*bn2)
    s3, b3 = fold_bn(*bn3)

    w1 = jnp.transpose(w1_oihw[:, :, 0, 0], (1, 0)) * s1[None, :]             # (Cin, C1)
    w2 = jnp.transpose(w2_oihw, (2, 3, 1, 0)).reshape(9, C1, C2) * s2[None, None, :]
    w3 = jnp.transpose(w3_oihw[:, :, 0, 0], (1, 0)) * s3[None, :]             # (C2, Cout)

    Cin_p, C1_p, C2_p, Cout_p = (_round_up(c, LANE) for c in (Cin, C1, C2, Cout))
    return (
        _pad_to(w1, (Cin_p, C1_p)).astype(jnp.bfloat16),
        _pad_to(b1.reshape(1, -1), (1, C1_p)).astype(jnp.float32),
        _pad_to(w2, (9, C1_p, C2_p)).astype(jnp.bfloat16),
        _pad_to(b2.reshape(1, -1), (1, C2_p)).astype(jnp.float32),
        _pad_to(w3, (C2_p, Cout_p)).astype(jnp.bfloat16),
        _pad_to(b3.reshape(1, -1), (1, Cout_p)).astype(jnp.float32),
    )


# ----------------------------------- wrapper -----------------------------------
def _pick_images_per_step(n, rows_per_image, target_rows=256, max_rows=2048):
    """Fold images into the matmul M dim (target >= 256 rows) while keeping at
    least two grid steps so v7x's two TensorCores both get work."""
    best = 1
    for nb in range(1, n + 1):
        if n % nb:
            continue
        if n >= 2 and n // nb < 2:
            continue
        if nb * rows_per_image > max_rows:
            break
        best = nb
        if nb * rows_per_image >= target_rows:
            break
    return best


def _vmem_limit_bytes(M, cin, c1, c2, cout, scratch_rows):
    blocks = 2 * (M * cin * 2 + M * LANE * 4 + M * cout * 4)   # in / mask / out, x2 buffers
    weights = 2 * ((cin * c1 + 9 * c1 * c2 + c2 * cout) * 2
                   + (c1 + c2 + cout) * LANE * 4)
    scratch = scratch_rows * c1 * 2
    temps = M * (2 * c1 + 3 * c2 + 2 * cout) * 4               # y1 / acc / y2 / y3 headroom
    est = blocks + weights + scratch + temps + 16 * 2**20
    return int(min(est, 100 * 2**20))


def bottleneck_forward(x_nchw, params, *, images_per_step=None):
    w1, b1, w2, b2, w3, b3 = params
    N, Cin, H, W = x_nchw.shape
    Cout = Cin                                  # identity shortcut
    Cin_p, C1_p = w1.shape
    C2_p, Cout_p = w3.shape
    assert Cout_p == Cin_p, "identity shortcut requires outplanes == inplanes"

    wp = W + 2
    P = (H + 2) * wp                            # padded pixels per image
    Pr = _round_up(P, 16)                       # sublane-friendly rows / image
    nb = images_per_step or _pick_images_per_step(N, Pr)
    assert N % nb == 0
    M = nb * Pr
    s0 = _round_up(wp + 1, 16)                  # aligned start of y1 in scratch
    scratch_rows = s0 + M + wp + 1

    # NCHW -> NHWC, zero-pad +2 rows/+2 cols at bottom/right (the top/left halo
    # lives in the scratch's leading zeros), pad channels to 128 lanes, flatten
    # to (rows, channels), stream as bf16.
    x = jnp.transpose(x_nchw, (0, 2, 3, 1))
    x = jnp.pad(x, ((0, 0), (0, 2), (0, 2), (0, Cin_p - Cin)))
    x = x.reshape(N, P, Cin_p)
    x = jnp.pad(x, ((0, 0), (0, Pr - P), (0, 0)))
    x = x.reshape(N * Pr, Cin_p).astype(jnp.bfloat16)

    # Valid-pixel mask in the same flattened layout, tiled over the batch group.
    mask = jnp.zeros((H + 2, wp), jnp.float32).at[:H, :W].set(1.0).reshape(P)
    mask = jnp.pad(mask, (0, Pr - P))
    mask = jnp.tile(mask, (nb,)).reshape(M, 1)

    flops = 2 * N * Pr * (Cin_p * C1_p + 9 * C1_p * C2_p + C2_p * Cout_p)
    bytes_accessed = (x.size * 2 + N * Pr * Cout_p * 4 + mask.size * 4
                      + (w1.size + w2.size + w3.size) * 2
                      + (b1.size + b2.size + b3.size) * 4)

    out_flat = pl.pallas_call(
        functools.partial(bottleneck_kernel, wp=wp, s0=s0),
        out_shape=jax.ShapeDtypeStruct((N * Pr, Cout_p), jnp.float32),
        grid_spec=pltpu.PrefetchScalarGridSpec(
            num_scalar_prefetch=0,
            grid=(N // nb,),
            in_specs=[
                pl.BlockSpec((M, Cin_p), lambda n: (n, 0)),
                pl.BlockSpec((M, 1), lambda n: (0, 0)),
                pl.BlockSpec((Cin_p, C1_p), lambda n: (0, 0)),
                pl.BlockSpec((1, C1_p), lambda n: (0, 0)),
                pl.BlockSpec((9, C1_p, C2_p), lambda n: (0, 0, 0)),
                pl.BlockSpec((1, C2_p), lambda n: (0, 0)),
                pl.BlockSpec((C2_p, Cout_p), lambda n: (0, 0)),
                pl.BlockSpec((1, Cout_p), lambda n: (0, 0)),
            ],
            out_specs=pl.BlockSpec((M, Cout_p), lambda n: (n, 0)),
            scratch_shapes=[pltpu.VMEM((scratch_rows, C1_p), jnp.bfloat16)],
        ),
        compiler_params=pltpu.CompilerParams(
            dimension_semantics=("parallel",),
            vmem_limit_bytes=_vmem_limit_bytes(M, Cin_p, C1_p, C2_p, Cout_p,
                                               scratch_rows)),
        cost_estimate=pl.CostEstimate(flops=flops, transcendentals=0,
                                      bytes_accessed=bytes_accessed),
    )(x, mask, w1, b1, w2, b2, w3, b3)

    # Un-flatten, drop padded pixels / channels, back to NCHW.
    out = out_flat.reshape(N, Pr, Cout_p)[:, :P, :].reshape(N, H + 2, wp, Cout_p)
    out = out[:, :H, :W, :Cout]
    return jnp.transpose(out, (0, 3, 1, 2))


# ----------------------------- reference (plain JAX) -----------------------------
def _conv_nchw(x, w, stride, pad):
    return jax.lax.conv_general_dilated(
        x, w, (stride, stride), [(pad, pad), (pad, pad)],
        dimension_numbers=("NCHW", "OIHW", "NCHW"))


def _bn_nchw(x, gamma, beta, mean, var, eps=1e-5):
    inv = gamma / jnp.sqrt(var + eps)
    return (x - mean[None, :, None, None]) * inv[None, :, None, None] \
        + beta[None, :, None, None]


def bottleneck_reference(x, p):
    y = _conv_nchw(x, p["w1_oihw"], 1, 0)
    y = jnp.maximum(_bn_nchw(y, *p["bn1"]), 0.0)
    y = _conv_nchw(y, p["w2_oihw"], 1, 1)
    y = jnp.maximum(_bn_nchw(y, *p["bn2"]), 0.0)
    y = _conv_nchw(y, p["w3_oihw"], 1, 0)
    y = _bn_nchw(y, *p["bn3"])
    return jnp.maximum(y + x, 0.0)


# ----------------------------- deterministic init -----------------------------
def make_params(key, inplanes, planes):
    expansion = 4
    width = planes            # base_width=64, cardinality=1 -> width == planes
    outplanes = planes * expansion
    ks = jax.random.split(key, 6)

    def bn_params(k, c):
        k1, k2, k3, k4 = jax.random.split(k, 4)
        gamma = jax.random.uniform(k1, (c,), jnp.float32, 0.5, 1.5)
        beta = jax.random.normal(k2, (c,), jnp.float32) * 0.1
        mean = jax.random.normal(k3, (c,), jnp.float32) * 0.1
        var = jax.random.uniform(k4, (c,), jnp.float32, 0.5, 1.5)
        return gamma, beta, mean, var

    # PyTorch conv weight layout: (out, in, kh, kw)
    w1_oihw = jax.random.normal(ks[0], (width, inplanes, 1, 1), jnp.float32) * 0.1
    w2_oihw = jax.random.normal(ks[1], (width, width, 3, 3), jnp.float32) * 0.1
    w3_oihw = jax.random.normal(ks[2], (outplanes, width, 1, 1), jnp.float32) * 0.1
    return {
        "w1_oihw": w1_oihw, "w2_oihw": w2_oihw, "w3_oihw": w3_oihw,
        "bn1": bn_params(ks[3], width),
        "bn2": bn_params(ks[4], width),
        "bn3": bn_params(ks[5], outplanes),
    }


if __name__ == "__main__":
    root = jax.random.PRNGKey(0)

    # Config 1: Bottleneck(inplanes=32, planes=8), 8x8 input, N=2
    #           -> 1 image per grid step, 2 grid steps.
    # Config 2: same module, N=4 -> 2 images folded into the matmul M dim per
    #           step (exercises the batch-folding path), still 2 grid steps.
    for i, n in enumerate((2, 4)):
        kx, kp = jax.random.split(jax.random.fold_in(root, i))
        inplanes, planes, H, W = 32, 8, 8, 8
        x = jax.random.normal(kx, (n, inplanes, H, W), jnp.float32)

        params = make_params(kp, inplanes, planes)
        kernel_params = prepare_params(params["w1_oihw"], params["bn1"],
                                       params["w2_oihw"], params["bn2"],
                                       params["w3_oihw"], params["bn3"])

        out = jax.block_until_ready(bottleneck_forward(x, kernel_params))
        ref = jax.block_until_ready(bottleneck_reference(x, params))

        assert out.shape == ref.shape == (n, planes * 4, H, W)
        # bf16 matmul operands + bf16-streamed shortcut vs f32 reference.
        assert jnp.allclose(out, ref, rtol=2e-2, atol=3e-2), \
            f"mismatch vs reference (N={n})"

    print("KERNEL_OK")
</pallas_src>

<mosaic_0001>
module attributes {stable_mosaic.version = 11 : i64} {
  func.func @bottleneck_kernel(%arg0: i32, %arg1: memref<112x128xbf16, #tpu.memory_space<vmem>>, %arg2: memref<112x1xf32, #tpu.memory_space<vmem>>, %arg3: memref<128x128xbf16, #tpu.memory_space<vmem>>, %arg4: memref<1x128xf32, #tpu.memory_space<vmem>>, %arg5: memref<9x128x128xbf16, #tpu.memory_space<vmem>>, %arg6: memref<1x128xf32, #tpu.memory_space<vmem>>, %arg7: memref<128x128xbf16, #tpu.memory_space<vmem>>, %arg8: memref<1x128xf32, #tpu.memory_space<vmem>>, %arg9: memref<112x128xf32, #tpu.memory_space<vmem>>, %arg10: memref<139x128xbf16, #tpu.memory_space<vmem>>) attributes {dimension_semantics = [#tpu.dimension_semantics<parallel>], iteration_bounds = array<i64: 2>, scalar_prefetch = 0 : i64, scratch_operands = 1 : i64, tpu.core_type = #tpu.core_type<tc>, window_params = [{transform_indices = @transform_0, window_bounds = array<i64: 112, 128>}, {pipeline_mode = #tpu.pipeline_mode<synchronous>, transform_indices = @transform_1, window_bounds = array<i64: 112, 1>}, {pipeline_mode = #tpu.pipeline_mode<synchronous>, transform_indices = @transform_2, window_bounds = array<i64: 128, 128>}, {pipeline_mode = #tpu.pipeline_mode<synchronous>, transform_indices = @transform_3, window_bounds = array<i64: 1, 128>}, {pipeline_mode = #tpu.pipeline_mode<synchronous>, transform_indices = @transform_4, window_bounds = array<i64: 9, 128, 128>}, {pipeline_mode = #tpu.pipeline_mode<synchronous>, transform_indices = @transform_5, window_bounds = array<i64: 1, 128>}, {pipeline_mode = #tpu.pipeline_mode<synchronous>, transform_indices = @transform_6, window_bounds = array<i64: 128, 128>}, {pipeline_mode = #tpu.pipeline_mode<synchronous>, transform_indices = @transform_7, window_bounds = array<i64: 1, 128>}, {transform_indices = @transform_8, window_bounds = array<i64: 112, 128>}]} {
    %cst = arith.constant 0.000000e+00 : bf16
    %0 = vector.broadcast %cst : bf16 to vector<16x128xbf16>
    %c0 = arith.constant 0 : index
    %c0_0 = arith.constant 0 : index
    %1 = vector.load %arg10[%c0, %c0_0] : memref<139x128xbf16, #tpu.memory_space<vmem>>, vector<16x128xbf16>
    tpu.vector_store %arg10[%c0, %c0_0], %0 {strides = array<i32>} : memref<139x128xbf16, #tpu.memory_space<vmem>>, vector<16x128xbf16>,
    %cst_1 = arith.constant 0.000000e+00 : bf16
    %2 = vector.broadcast %cst_1 : bf16 to vector<11x128xbf16>
    %c128 = arith.constant 128 : index
    %c0_2 = arith.constant 0 : index
    %3 = vector.load %arg10[%c128, %c0_2] : memref<139x128xbf16, #tpu.memory_space<vmem>>, vector<11x128xbf16>
    tpu.vector_store %arg10[%c128, %c0_2], %2 {strides = array<i32>} : memref<139x128xbf16, #tpu.memory_space<vmem>>, vector<11x128xbf16>,
    %c0_3 = arith.constant 0 : index
    %c0_4 = arith.constant 0 : index
    %4 = vector.load %arg1[%c0_3, %c0_4] : memref<112x128xbf16, #tpu.memory_space<vmem>>, vector<112x128xbf16>
    %c0_5 = arith.constant 0 : index
    %c0_6 = arith.constant 0 : index
    %5 = vector.load %arg3[%c0_5, %c0_6] : memref<128x128xbf16, #tpu.memory_space<vmem>>, vector<128x128xbf16>
    %cst_7 = arith.constant dense<0.000000e+00> : vector<112x128xf32>
    %6 = tpu.matmul %4, %5, %cst_7 {dimension_numbers = #tpu.dot_dimension_numbers<[1], [0], [0], [1], [0, 0, 1, 1], [], []>} : vector<112x128xbf16>, vector<128x128xbf16>, vector<112x128xf32> -> vector<112x128xf32>
    %c0_8 = arith.constant 0 : index
    %c0_9 = arith.constant 0 : index
    %7 = vector.load %arg4[%c0_8, %c0_9] : memref<1x128xf32, #tpu.memory_space<vmem>>, vector<1x128xf32>
    %8 = vector.broadcast %7 : vector<1x128xf32> to vector<112x128xf32>
    %9 = arith.addf %6, %8 : vector<112x128xf32>
    %cst_10 = arith.constant 0.000000e+00 : f32
    %10 = vector.broadcast %cst_10 : f32 to vector<112x128xf32>
    %11 = arith.maximumf %9, %10 : vector<112x128xf32>
    %c0_11 = arith.constant 0 : index
    %c0_12 = arith.constant 0 : index
    %12 = vector.load %arg2[%c0_11, %c0_12] : memref<112x1xf32, #tpu.memory_space<vmem>>, vector<112x1xf32>
    %13 = vector.broadcast %12 : vector<112x1xf32> to vector<112x128xf32>
    %14 = arith.mulf %11, %13 : vector<112x128xf32>
    %15 = arith.truncf %14 : vector<112x128xf32> to vector<112x128xbf16>
    %c16 = arith.constant 16 : index
    %c0_13 = arith.constant 0 : index
    %16 = vector.load %arg10[%c16, %c0_13] : memref<139x128xbf16, #tpu.memory_space<vmem>>, vector<112x128xbf16>
    tpu.vector_store %arg10[%c16, %c0_13], %15 {strides = array<i32>} : memref<139x128xbf16, #tpu.memory_space<vmem>>, vector<112x128xbf16>,
    %cst_14 = arith.constant 0.000000e+00 : f32
    %17 = vector.broadcast %cst_14 : f32 to vector<112x128xf32>
    %c5 = arith.constant 5 : index
    %c0_15 = arith.constant 0 : index
    %18 = vector.load %arg10[%c5, %c0_15] : memref<139x128xbf16, #tpu.memory_space<vmem>>, vector<112x128xbf16>
    %c0_16 = arith.constant 0 : index
    %c0_17 = arith.constant 0 : index
    %c0_18 = arith.constant 0 : index
    %19 = vector.load %arg5[%c0_16, %c0_17, %c0_18] : memref<9x128x128xbf16, #tpu.memory_space<vmem>>, vector<1x128x128xbf16>
    %20 = vector.shape_cast %19 : vector<1x128x128xbf16> to vector<128x128xbf16>
    %cst_19 = arith.constant dense<0.000000e+00> : vector<112x128xf32>
    %21 = tpu.matmul %18, %20, %cst_19 {dimension_numbers = #tpu.dot_dimension_numbers<[1], [0], [0], [1], [0, 0, 1, 1], [], []>} : vector<112x128xbf16>, vector<128x128xbf16>, vector<112x128xf32> -> vector<112x128xf32>
    %22 = arith.addf %17, %21 : vector<112x128xf32>
    %c6 = arith.constant 6 : index
    %c0_20 = arith.constant 0 : index
    %23 = vector.load %arg10[%c6, %c0_20] : memref<139x128xbf16, #tpu.memory_space<vmem>>, vector<112x128xbf16>
    %c1 = arith.constant 1 : index
    %c0_21 = arith.constant 0 : index
    %c0_22 = arith.constant 0 : index
    %24 = vector.load %arg5[%c1, %c0_21, %c0_22] : memref<9x128x128xbf16, #tpu.memory_space<vmem>>, vector<1x128x128xbf16>
    %25 = vector.shape_cast %24 : vector<1x128x128xbf16> to vector<128x128xbf16>
    %cst_23 = arith.constant dense<0.000000e+00> : vector<112x128xf32>
    %26 = tpu.matmul %23, %25, %cst_23 {dimension_numbers = #tpu.dot_dimension_numbers<[1], [0], [0], [1], [0, 0, 1, 1], [], []>} : vector<112x128xbf16>, vector<128x128xbf16>, vector<112x128xf32> -> vector<112x128xf32>
    %27 = arith.addf %22, %26 : vector<112x128xf32>
    %c7 = arith.constant 7 : index
    %c0_24 = arith.constant 0 : index
    %28 = vector.load %arg10[%c7, %c0_24] : memref<139x128xbf16, #tpu.memory_space<vmem>>, vector<112x128xbf16>
    %c2 = arith.constant 2 : index
    %c0_25 = arith.constant 0 : index
    %c0_26 = arith.constant 0 : index
    %29 = vector.load %arg5[%c2, %c0_25, %c0_26] : memref<9x128x128xbf16, #tpu.memory_space<vmem>>, vector<1x128x128xbf16>
    %30 = vector.shape_cast %29 : vector<1x128x128xbf16> to vector<128x128xbf16>
    %cst_27 = arith.constant dense<0.000000e+00> : vector<112x128xf32>
    %31 = tpu.matmul %28, %30, %cst_27 {dimension_numbers = #tpu.dot_dimension_numbers<[1], [0], [0], [1], [0, 0, 1, 1], [], []>} : vector<112x128xbf16>, vector<128x128xbf16>, vector<112x128xf32> -> vector<112x128xf32>
    %32 = arith.addf %27, %31 : vector<112x128xf32>
    %c15 = arith.constant 15 : index
    %c0_28 = arith.constant 0 : index
    %33 = vector.load %arg10[%c15, %c0_28] : memref<139x128xbf16, #tpu.memory_space<vmem>>, vector<112x128xbf16>
    %c3 = arith.constant 3 : index
    %c0_29 = arith.constant 0 : index
    %c0_30 = arith.constant 0 : index
    %34 = vector.load %arg5[%c3, %c0_29, %c0_30] : memref<9x128x128xbf16, #tpu.memory_space<vmem>>, vector<1x128x128xbf16>
    %35 = vector.shape_cast %34 : vector<1x128x128xbf16> to vector<128x128xbf16>
    %cst_31 = arith.constant dense<0.000000e+00> : vector<112x128xf32>
    %36 = tpu.matmul %33, %35, %cst_31 {dimension_numbers = #tpu.dot_dimension_numbers<[1], [0], [0], [1], [0, 0, 1, 1], [], []>} : vector<112x128xbf16>, vector<128x128xbf16>, vector<112x128xf32> -> vector<112x128xf32>
    %37 = arith.addf %32, %36 : vector<112x128xf32>
    %c16_32 = arith.constant 16 : index
    %c0_33 = arith.constant 0 : index
    %38 = vector.load %arg10[%c16_32, %c0_33] : memref<139x128xbf16, #tpu.memory_space<vmem>>, vector<112x128xbf16>
    %c4 = arith.constant 4 : index
    %c0_34 = arith.constant 0 : index
    %c0_35 = arith.constant 0 : index
    %39 = vector.load %arg5[%c4, %c0_34, %c0_35] : memref<9x128x128xbf16, #tpu.memory_space<vmem>>, vector<1x128x128xbf16>
    %40 = vector.shape_cast %39 : vector<1x128x128xbf16> to vector<128x128xbf16>
    %cst_36 = arith.constant dense<0.000000e+00> : vector<112x128xf32>
    %41 = tpu.matmul %38, %40, %cst_36 {dimension_numbers = #tpu.dot_dimension_numbers<[1], [0], [0], [1], [0, 0, 1, 1], [], []>} : vector<112x128xbf16>, vector<128x128xbf16>, vector<112x128xf32> -> vector<112x128xf32>
    %42 = arith.addf %37, %41 : vector<112x128xf32>
    %c17 = arith.constant 17 : index
    %c0_37 = arith.constant 0 : index
    %43 = vector.load %arg10[%c17, %c0_37] : memref<139x128xbf16, #tpu.memory_space<vmem>>, vector<112x128xbf16>
    %c5_38 = arith.constant 5 : index
    %c0_39 = arith.constant 0 : index
    %c0_40 = arith.constant 0 : index
    %44 = vector.load %arg5[%c5_38, %c0_39, %c0_40] : memref<9x128x128xbf16, #tpu.memory_space<vmem>>, vector<1x128x128xbf16>
    %45 = vector.shape_cast %44 : vector<1x128x128xbf16> to vector<128x128xbf16>
    %cst_41 = arith.constant dense<0.000000e+00> : vector<112x128xf32>
    %46 = tpu.matmul %43, %45, %cst_41 {dimension_numbers = #tpu.dot_dimension_numbers<[1], [0], [0], [1], [0, 0, 1, 1], [], []>} : vector<112x128xbf16>, vector<128x128xbf16>, vector<112x128xf32> -> vector<112x128xf32>
    %47 = arith.addf %42, %46 : vector<112x128xf32>
    %c25 = arith.constant 25 : index
    %c0_42 = arith.constant 0 : index
    %48 = vector.load %arg10[%c25, %c0_42] : memref<139x128xbf16, #tpu.memory_space<vmem>>, vector<112x128xbf16>
    %c6_43 = arith.constant 6 : index
    %c0_44 = arith.constant 0 : index
    %c0_45 = arith.constant 0 : index
    %49 = vector.load %arg5[%c6_43, %c0_44, %c0_45] : memref<9x128x128xbf16, #tpu.memory_space<vmem>>, vector<1x128x128xbf16>
    %50 = vector.shape_cast %49 : vector<1x128x128xbf16> to vector<128x128xbf16>
    %cst_46 = arith.constant dense<0.000000e+00> : vector<112x128xf32>
    %51 = tpu.matmul %48, %50, %cst_46 {dimension_numbers = #tpu.dot_dimension_numbers<[1], [0], [0], [1], [0, 0, 1, 1], [], []>} : vector<112x128xbf16>, vector<128x128xbf16>, vector<112x128xf32> -> vector<112x128xf32>
    %52 = arith.addf %47, %51 : vector<112x128xf32>
    %c26 = arith.constant 26 : index
    %c0_47 = arith.constant 0 : index
    %53 = vector.load %arg10[%c26, %c0_47] : memref<139x128xbf16, #tpu.memory_space<vmem>>, vector<112x128xbf16>
    %c7_48 = arith.constant 7 : index
    %c0_49 = arith.constant 0 : index
    %c0_50 = arith.constant 0 : index
    %54 = vector.load %arg5[%c7_48, %c0_49, %c0_50] : memref<9x128x128xbf16, #tpu.memory_space<vmem>>, vector<1x128x128xbf16>
    %55 = vector.shape_cast %54 : vector<1x128x128xbf16> to vector<128x128xbf16>
    %cst_51 = arith.constant dense<0.000000e+00> : vector<112x128xf32>
    %56 = tpu.matmul %53, %55, %cst_51 {dimension_numbers = #tpu.dot_dimension_numbers<[1], [0], [0], [1], [0, 0, 1, 1], [], []>} : vector<112x128xbf16>, vector<128x128xbf16>, vector<112x128xf32> -> vector<112x128xf32>
    %57 = arith.addf %52, %56 : vector<112x128xf32>
    %c27 = arith.constant 27 : index
    %c0_52 = arith.constant 0 : index
    %58 = vector.load %arg10[%c27, %c0_52] : memref<139x128xbf16, #tpu.memory_space<vmem>>, vector<112x128xbf16>
    %c8 = arith.constant 8 : index
    %c0_53 = arith.constant 0 : index
    %c0_54 = arith.constant 0 : index
    %59 = vector.load %arg5[%c8, %c0_53, %c0_54] : memref<9x128x128xbf16, #tpu.memory_space<vmem>>, vector<1x128x128xbf16>
    %60 = vector.shape_cast %59 : vector<1x128x128xbf16> to vector<128x128xbf16>
    %cst_55 = arith.constant dense<0.000000e+00> : vector<112x128xf32>
    %61 = tpu.matmul %58, %60, %cst_55 {dimension_numbers = #tpu.dot_dimension_numbers<[1], [0], [0], [1], [0, 0, 1, 1], [], []>} : vector<112x128xbf16>, vector<128x128xbf16>, vector<112x128xf32> -> vector<112x128xf32>
    %62 = arith.addf %57, %61 : vector<112x128xf32>
    %c0_56 = arith.constant 0 : index
    %c0_57 = arith.constant 0 : index
    %63 = vector.load %arg6[%c0_56, %c0_57] : memref<1x128xf32, #tpu.memory_space<vmem>>, vector<1x128xf32>
    %64 = vector.broadcast %63 : vector<1x128xf32> to vector<112x128xf32>
    %65 = arith.addf %62, %64 : vector<112x128xf32>
    %cst_58 = arith.constant 0.000000e+00 : f32
    %66 = vector.broadcast %cst_58 : f32 to vector<112x128xf32>
    %67 = arith.maximumf %65, %66 : vector<112x128xf32>
    %68 = arith.truncf %67 : vector<112x128xf32> to vector<112x128xbf16>
    %c0_59 = arith.constant 0 : index
    %c0_60 = arith.constant 0 : index
    %69 = vector.load %arg7[%c0_59, %c0_60] : memref<128x128xbf16, #tpu.memory_space<vmem>>, vector<128x128xbf16>
    %cst_61 = arith.constant dense<0.000000e+00> : vector<112x128xf32>
    %70 = tpu.matmul %68, %69, %cst_61 {dimension_numbers = #tpu.dot_dimension_numbers<[1], [0], [0], [1], [0, 0, 1, 1], [], []>} : vector<112x128xbf16>, vector<128x128xbf16>, vector<112x128xf32> -> vector<112x128xf32>
    %c0_62 = arith.constant 0 : index
    %c0_63 = arith.constant 0 : index
    %71 = vector.load %arg8[%c0_62, %c0_63] : memref<1x128xf32, #tpu.memory_space<vmem>>, vector<1x128xf32>
    %72 = vector.broadcast %71 : vector<1x128xf32> to vector<112x128xf32>
    %73 = arith.addf %70, %72 : vector<112x128xf32>
    %c0_64 = arith.constant 0 : index
    %c0_65 = arith.constant 0 : index
    %74 = vector.load %arg1[%c0_64, %c0_65] : memref<112x128xbf16, #tpu.memory_space<vmem>>, vector<112x128xbf16>
    %75 = arith.extf %74 : vector<112x128xbf16> to vector<112x128xf32>
    %76 = arith.addf %73, %75 : vector<112x128xf32>
    %cst_66 = arith.constant 0.000000e+00 : f32
    %77 = vector.broadcast %cst_66 : f32 to vector<112x128xf32>
    %78 = arith.maximumf %76, %77 : vector<112x128xf32>
    %c0_67 = arith.constant 0 : index
    %c0_68 = arith.constant 0 : index
    %79 = vector.load %arg9[%c0_67, %c0_68] : memref<112x128xf32, #tpu.memory_space<vmem>>, vector<112x128xf32>
    tpu.vector_store %arg9[%c0_67, %c0_68], %78 {strides = array<i32>} : memref<112x128xf32, #tpu.memory_space<vmem>>, vector<112x128xf32>,
    return
  }
  func.func @transform_0(%arg0: i32) -> (i32, i32) {
    %c0_i32 = arith.constant 0 : i32
    %c0_i32_0 = arith.constant 0 : i32
    return %arg0, %c0_i32 : i32, i32
  }
  func.func @transform_1(%arg0: i32) -> (i32, i32) {
    %c0_i32 = arith.constant 0 : i32
    %c0_i32_0 = arith.constant 0 : i32
    %c0_i32_1 = arith.constant 0 : i32
    return %c0_i32, %c0_i32_0 : i32, i32
  }
  func.func @transform_2(%arg0: i32) -> (i32, i32) {
    %c0_i32 = arith.constant 0 : i32
    %c0_i32_0 = arith.constant 0 : i32
    %c0_i32_1 = arith.constant 0 : i32
    return %c0_i32, %c0_i32_0 : i32, i32
  }
  func.func @transform_3(%arg0: i32) -> (i32, i32) {
    %c0_i32 = arith.constant 0 : i32
    %c0_i32_0 = arith.constant 0 : i32
    %c0_i32_1 = arith.constant 0 : i32
    return %c0_i32, %c0_i32_0 : i32, i32
  }
  func.func @transform_4(%arg0: i32) -> (i32, i32, i32) {
    %c0_i32 = arith.constant 0 : i32
    %c0_i32_0 = arith.constant 0 : i32
    %c0_i32_1 = arith.constant 0 : i32
    %c0_i32_2 = arith.constant 0 : i32
    return %c0_i32, %c0_i32_0, %c0_i32_1 : i32, i32, i32
  }
  func.func @transform_5(%arg0: i32) -> (i32, i32) {
    %c0_i32 = arith.constant 0 : i32
    %c0_i32_0 = arith.constant 0 : i32
    %c0_i32_1 = arith.constant 0 : i32
    return %c0_i32, %c0_i32_0 : i32, i32
  }
  func.func @transform_6(%arg0: i32) -> (i32, i32) {
    %c0_i32 = arith.constant 0 : i32
    %c0_i32_0 = arith.constant 0 : i32
    %c0_i32_1 = arith.constant 0 : i32
    return %c0_i32, %c0_i32_0 : i32, i32
  }
  func.func @transform_7(%arg0: i32) -> (i32, i32) {
    %c0_i32 = arith.constant 0 : i32
    %c0_i32_0 = arith.constant 0 : i32
    %c0_i32_1 = arith.constant 0 : i32
    return %c0_i32, %c0_i32_0 : i32, i32
  }
  func.func @transform_8(%arg0: i32) -> (i32, i32) {
    %c0_i32 = arith.constant 0 : i32
    %c0_i32_0 = arith.constant 0 : i32
    return %arg0, %c0_i32 : i32, i32
  }
}

</mosaic_0001>

<llo_original>
// kernel: tpu_custom_call.1
$region0: #{tpu_custom_call.1}
  #allocation0 [shape = 'u32[]', space=smem, size = 0x4, offset = 0x4, fixed_abs, tag = 'smem constant byte address 0x4 - core index']
  #allocation1 [shape = 'u32[144,128]{1,0:T(1,128)}', space=vmem, size = 0x12000, scoped, tag = 'internal scratch']
  #allocation2 [shape = 'bf16[139,128]{1,0:T(8,128)(2,1)}', space=vmem, size = 0x9000, scoped, tag = 'scratch operand']
  %s0 = inlined_call_operand.vmem [shape: bf16[224,128], index: 0, kind: input, shape index: {}]
  %s1 = inlined_call_operand.vmem [shape: f32[112,1], index: 1, kind: input, shape index: {}]
  %s2 = inlined_call_operand.hbm [shape: bf16[128,128], index: 2, kind: input, shape index: {}]
  %s3 = inlined_call_operand.vmem [shape: f32[1,128], index: 3, kind: input, shape index: {}]
  %s4 = inlined_call_operand.hbm [shape: bf16[9,128,128], index: 4, kind: input, shape index: {}]
  %s5 = inlined_call_operand.vmem [shape: f32[1,128], index: 5, kind: input, shape index: {}]
  %s6 = inlined_call_operand.hbm [shape: bf16[128,128], index: 6, kind: input, shape index: {}]
  %s7 = inlined_call_operand.vmem [shape: f32[1,128], index: 7, kind: input, shape index: {}]
  %s8 = inlined_call_operand.hbm [shape: f32[224,128], index: 8, kind: output, shape index: {}]
  %s9 = sld [smem:[#allocation0]]
  $region77: #{tpu_custom_call.1} parent=0
    _
  %s11 = ssub.s32 1, %s9
  %s12 = scalar_select 0, %s11, %s9
  $region1: #{tpu_custom_call.1} parent=0
    #allocation3 [shape = 'u8[32768]{0}', space=vmem, size = 0x8000, scoped, tag = 'input window, operand 2, single buffered']
    #allocation4 [shape = 's32[2]{0}', space=sflag, size = 0x8, scoped, tag = 'scoped memory for tpu_custom_call.1']
    #allocation5 [shape = 's32[2]{0}', space=sflag, size = 0x8, scoped, tag = 'scoped memory for tpu_custom_call.1']
    #allocation6 [shape = 'u8[294912]{0}', space=vmem, size = 0x48000, scoped, tag = 'input window, operand 4, single buffered']
    #allocation7 [shape = 's32[1]{0}', space=sflag, size = 0x4, scoped, tag = 'scoped memory for tpu_custom_call.1']
    #allocation8 [shape = 'u8[32768]{0}', space=vmem, size = 0x8000, scoped, tag = 'input window, operand 6, single buffered']
    #allocation9 [shape = 'u8[114688]{0}', space=vmem, size = 0x1c000, scoped, tag = 'output window, operand 0']
    %13 = vsyncpa [#allocation4], 0
    %14 = vsyncpa [#allocation7], 0
    %15 = vsyncpa [#allocation5], 0
    %s16 = scalar_lea.sflag [#allocation5], 1
    %17 = vsyncpa %s16, 0
    loop: start=0, step=1, limit=4
    $region2: #{tpu_custom_call.1} parent=1 // loop_pre_header
      _
    $region3: #{tpu_custom_call.1} parent=1 // loop_header
      %s19 = sphi 0, %s23
      %p20 = scmp.ge.s32.totalorder %s19, 4
      %s29 = sphi 0, %s31
      %s32 = sphi 0, %s29
      %s33 = sphi 0, %s32
      %s49 = sphi 0, %s33
      %s53 = sphi 0, %s53
      %s55 = sphi 0, %s53
      %s56 = sphi 0, %s55
      %s70 = sphi 0, %s56
      %s74 = sphi 0, %s74
      %s76 = sphi 0, %s74
      %s77 = sphi 0, %s76
      %s91 = sphi 0, %s77
      %s95 = sphi 0, %s95
      %s97 = sphi 0, %s95
      %s98 = sphi 0, %s97
      %s112 = sphi 0, %s98
      %s116 = sphi 0, %s116
      %s118 = sphi 0, %s116
      %s119 = sphi 0, %s118
      %s133 = sphi 0, %s119
      %s137 = sphi 0, %s137
      %s139 = sphi 0, %s137
      %s140 = sphi 0, %s139
      %s154 = sphi 0, %s140
      %s158 = sphi 0, %s158
      %s160 = sphi 0, %s158
      %s161 = sphi 0, %s160
      %s175 = sphi 0, %s161
      %s179 = sphi 0, %s179
      %s181 = sphi 0, %s179
      %s182 = sphi 0, %s181
      %s196 = sphi 0, %s182
      %s202 = sphi 0, %s204
      %s205 = sphi 0, %s202
      %s206 = sphi 0, %s205
      %s222 = sphi 0, %s206
    $region4: #{tpu_custom_call.1} parent=1 // loop_header_branch
      %22 = sbr.rel (%p20) target = $region8
    $region5: #{tpu_custom_call.1} parent=1 // loop_body
      %s24 = ssub.s32 %s19, 1
      %s25 = ssub.s32 %s19, 2
      %s26 = sadd.s32 %s19, 1
      %s27 = ssub.s32 %s19, %s26
      %p28 = scmp.eq.s32.totalorder %s27, 0
      %s30 = sadd.s32 %s29, 1
      %s31 = scalar_select %p28, %s29, %s30
      %p34 = pneg %p28
      %p35 = scmp.eq.s32.totalorder %s19, 1
      %p36 = por %p34, %p35
      %p37 = scmp.ne.s32.totalorder %s29, %s32
      %p38 = scmp.eq.s32.totalorder %s19, 0
      %p39 = por %p37, %p38
      %p40 = scmp.ne.s32.totalorder %s29, %s32
      %p41 = scmp.eq.s32.totalorder %s24, 1
      %p42 = por %p40, %p41
      %p43 = scmp.ne.s32.totalorder %s32, %s33
      %p44 = scmp.eq.s32.totalorder %s24, 0
      %p45 = por %p43, %p44
      %p46 = scmp.ne.s32.totalorder %s32, %s33
      %p47 = scmp.eq.s32.totalorder %s25, 1
      %p48 = por %p46, %p47
      %p50 = scmp.ne.s32.totalorder %s33, %s49
      %p51 = scmp.eq.s32.totalorder %s25, 0
      %p52 = por %p50, %p51
      %s54 = sadd.s32 %s53, 1
      %p57 = scmp.eq.s32.totalorder %s19, 1
      %p58 = scmp.ne.s32.totalorder %s53, %s55
      %p59 = scmp.eq.s32.totalorder %s19, 0
      %p60 = por %p58, %p59
      %p61 = scmp.ne.s32.totalorder %s53, %s55
      %p62 = scmp.eq.s32.totalorder %s24, 1
      %p63 = por %p61, %p62
      %p64 = scmp.ne.s32.totalorder %s55, %s56
      %p65 = scmp.eq.s32.totalorder %s24, 0
      %p66 = por %p64, %p65
      %p67 = scmp.ne.s32.totalorder %s55, %s56
      %p68 = scmp.eq.s32.totalorder %s25, 1
      %p69 = por %p67, %p68
      %p71 = scmp.ne.s32.totalorder %s56, %s70
      %p72 = scmp.eq.s32.totalorder %s25, 0
      %p73 = por %p71, %p72
      %s75 = sadd.s32 %s74, 1
      %p78 = scmp.eq.s32.totalorder %s19, 1
      %p79 = scmp.ne.s32.totalorder %s74, %s76
      %p80 = scmp.eq.s32.totalorder %s19, 0
      %p81 = por %p79, %p80
      %p82 = scmp.ne.s32.totalorder %s74, %s76
      %p83 = scmp.eq.s32.totalorder %s24, 1
      %p84 = por %p82, %p83
      %p85 = scmp.ne.s32.totalorder %s76, %s77
      %p86 = scmp.eq.s32.totalorder %s24, 0
      %p87 = por %p85, %p86
      %p88 = scmp.ne.s32.totalorder %s76, %s77
      %p89 = scmp.eq.s32.totalorder %s25, 1
      %p90 = por %p88, %p89
      %p92 = scmp.ne.s32.totalorder %s77, %s91
      %p93 = scmp.eq.s32.totalorder %s25, 0
      %p94 = por %p92, %p93
      %s96 = sadd.s32 %s95, 1
      %p99 = scmp.eq.s32.totalorder %s19, 1
      %p100 = scmp.ne.s32.totalorder %s95, %s97
      %p101 = scmp.eq.s32.totalorder %s19, 0
      %p102 = por %p100, %p101
      %p103 = scmp.ne.s32.totalorder %s95, %s97
      %p104 = scmp.eq.s32.totalorder %s24, 1
      %p105 = por %p103, %p104
      %p106 = scmp.ne.s32.totalorder %s97, %s98
      %p107 = scmp.eq.s32.totalorder %s24, 0
      %p108 = por %p106, %p107
      %p109 = scmp.ne.s32.totalorder %s97, %s98
      %p110 = scmp.eq.s32.totalorder %s25, 1
      %p111 = por %p109, %p110
      %p113 = scmp.ne.s32.totalorder %s98, %s112
      %p114 = scmp.eq.s32.totalorder %s25, 0
      %p115 = por %p113, %p114
      %s117 = sadd.s32 %s116, 1
      %p120 = scmp.eq.s32.totalorder %s19, 1
      %p121 = scmp.ne.s32.totalorder %s116, %s118
      %p122 = scmp.eq.s32.totalorder %s19, 0
      %p123 = por %p121, %p122
      %p124 = scmp.ne.s32.totalorder %s116, %s118
      %p125 = scmp.eq.s32.totalorder %s24, 1
      %p126 = por %p124, %p125
      %p127 = scmp.ne.s32.totalorder %s118, %s119
      %p128 = scmp.eq.s32.totalorder %s24, 0
      %p129 = por %p127, %p128
      %p130 = scmp.ne.s32.totalorder %s118, %s119
      %p131 = scmp.eq.s32.totalorder %s25, 1
      %p132 = por %p130, %p131
      %p134 = scmp.ne.s32.totalorder %s119, %s133
      %p135 = scmp.eq.s32.totalorder %s25, 0
      %p136 = por %p134, %p135
      %s138 = sadd.s32 %s137, 1
      %p141 = scmp.eq.s32.totalorder %s19, 1
      %p142 = scmp.ne.s32.totalorder %s137, %s139
      %p143 = scmp.eq.s32.totalorder %s19, 0
      %p144 = por %p142, %p143
      %p145 = scmp.ne.s32.totalorder %s137, %s139
      %p146 = scmp.eq.s32.totalorder %s24, 1
      %p147 = por %p145, %p146
      %p148 = scmp.ne.s32.totalorder %s139, %s140
      %p149 = scmp.eq.s32.totalorder %s24, 0
      %p150 = por %p148, %p149
      %p151 = scmp.ne.s32.totalorder %s139, %s140
      %p152 = scmp.eq.s32.totalorder %s25, 1
      %p153 = por %p151, %p152
      %p155 = scmp.ne.s32.totalorder %s140, %s154
      %p156 = scmp.eq.s32.totalorder %s25, 0
      %p157 = por %p155, %p156
      %s159 = sadd.s32 %s158, 1
      %p162 = scmp.eq.s32.totalorder %s19, 1
      %p163 = scmp.ne.s32.totalorder %s158, %s160
      %p164 = scmp.eq.s32.totalorder %s19, 0
      %p165 = por %p163, %p164
      %p166 = scmp.ne.s32.totalorder %s158, %s160
      %p167 = scmp.eq.s32.totalorder %s24, 1
      %p168 = por %p166, %p167
      %p169 = scmp.ne.s32.totalorder %s160, %s161
      %p170 = scmp.eq.s32.totalorder %s24, 0
      %p171 = por %p169, %p170
      %p172 = scmp.ne.s32.totalorder %s160, %s161
      %p173 = scmp.eq.s32.totalorder %s25, 1
      %p174 = por %p172, %p173
      %p176 = scmp.ne.s32.totalorder %s161, %s175
      %p177 = scmp.eq.s32.totalorder %s25, 0
      %p178 = por %p176, %p177
      %s180 = sadd.s32 %s179, 1
      %p183 = scmp.eq.s32.totalorder %s19, 1
      %p184 = scmp.ne.s32.totalorder %s179, %s181
      %p185 = scmp.eq.s32.totalorder %s19, 0
      %p186 = por %p184, %p185
      %p187 = scmp.ne.s32.totalorder %s179, %s181
      %p188 = scmp.eq.s32.totalorder %s24, 1
      %p189 = por %p187, %p188
      %p190 = scmp.ne.s32.totalorder %s181, %s182
      %p191 = scmp.eq.s32.totalorder %s24, 0
      %p192 = por %p190, %p191
      %p193 = scmp.ne.s32.totalorder %s181, %s182
      %p194 = scmp.eq.s32.totalorder %s25, 1
      %p195 = por %p193, %p194
      %p197 = scmp.ne.s32.totalorder %s182, %s196
      %p198 = scmp.eq.s32.totalorder %s25, 0
      %p199 = por %p197, %p198
      %s200 = ssub.s32 %s19, %s26
      %p201 = scmp.eq.s32.totalorder %s200, 0
      %s203 = sadd.s32 %s202, 1
      %s204 = scalar_select %p201, %s202, %s203
      %p207 = pneg %p201
      %p208 = scmp.eq.s32.totalorder %s19, 1
      %p209 = por %p207, %p208
      %p210 = scmp.ne.s32.totalorder %s202, %s205
      %p211 = scmp.eq.s32.totalorder %s19, 0
      %p212 = por %p210, %p211
      %p213 = scmp.ne.s32.totalorder %s202, %s205
      %p214 = scmp.eq.s32.totalorder %s24, 1
      %p215 = por %p213, %p214
      %p216 = scmp.ne.s32.totalorder %s205, %s206
      %p217 = scmp.eq.s32.totalorder %s24, 0
      %p218 = por %p216, %p217
      %p219 = scmp.ne.s32.totalorder %s205, %s206
      %p220 = scmp.eq.s32.totalorder %s25, 1
      %p221 = por %p219, %p220
      %p223 = scmp.ne.s32.totalorder %s206, %s222
      %p224 = scmp.eq.s32.totalorder %s25, 0
      %p225 = por %p223, %p224
      %p226 = scmp.le.s32.totalorder 1, %s19
      %p227 = scmp.lt.s32.totalorder %s19, 3
      %p228 = pnand %p226, %p227
      %p229 = pneg %p228
      // Predicated region
      $region9: #{tpu_custom_call.1} parent=5 // pred_check
        _
      $region10: #{tpu_custom_call.1} parent=5 // pred_check_branch
        %231 = sbr.rel (%p228) target = $region12
      $region11: #{tpu_custom_call.1} parent=5 // pred_region
        %s232 = ssub.s32 %s19, 1
        // Predicated region
        $region13: #{tpu_custom_call.1} parent=11 // pred_check
          %p233 = pneg %p66
        $region14: #{tpu_custom_call.1} parent=11 // pred_check_branch
          %235 = sbr.rel (%p233) target = $region16
        $region15: #{tpu_custom_call.1} parent=11 // pred_region
          _
        $region16: #{tpu_custom_call.1} parent=11 // pred_fallthru
          _
        // Predicated region
        $region17: #{tpu_custom_call.1} parent=11 // pred_check
          %p236 = pneg %p87
        $region18: #{tpu_custom_call.1} parent=11 // pred_check_branch
          %238 = sbr.rel (%p236) target = $region20
        $region19: #{tpu_custom_call.1} parent=11 // pred_region
          %s240 = ssub.s32 1024, 1024
          %241 = vsyncadd [#allocation4], %s240
          %s242 = sshll.u32 [#allocation3], 4
          %s243 = int_to_ptr.vmem [resolvable:$true] %s242
          %248 = dma.hbm_to_vmem [thread:$0]  %s2, 1024, %s243, [#allocation4], 64, 64, 4
        $region20: #{tpu_custom_call.1} parent=11 // pred_fallthru
          _
        // Predicated region
        $region21: #{tpu_custom_call.1} parent=11 // pred_check
          %p249 = pneg %p108
        $region22: #{tpu_custom_call.1} parent=11 // pred_check_branch
          %251 = sbr.rel (%p249) target = $region24
        $region23: #{tpu_custom_call.1} parent=11 // pred_region
          _
        $region24: #{tpu_custom_call.1} parent=11 // pred_fallthru
          _
        // Predicated region
        $region25: #{tpu_custom_call.1} parent=11 // pred_check
          %p252 = pneg %p129
        $region26: #{tpu_custom_call.1} parent=11 // pred_check_branch
          %254 = sbr.rel (%p252) target = $region28
        $region27: #{tpu_custom_call.1} parent=11 // pred_region
          %s256 = ssub.s32 9216, 9216
          %257 = vsyncadd [#allocation7], %s256
          %s258 = sshll.u32 [#allocation6], 4
          %s259 = int_to_ptr.vmem [resolvable:$true] %s258
          %264 = dma.hbm_to_vmem [thread:$0]  %s4, 9216, %s259, [#allocation7], 64, 64, 4
        $region28: #{tpu_custom_call.1} parent=11 // pred_fallthru
          _
        // Predicated region
        $region29: #{tpu_custom_call.1} parent=11 // pred_check
          %p265 = pneg %p150
        $region30: #{tpu_custom_call.1} parent=11 // pred_check_branch
          %267 = sbr.rel (%p265) target = $region32
        $region31: #{tpu_custom_call.1} parent=11 // pred_region
          _
        $region32: #{tpu_custom_call.1} parent=11 // pred_fallthru
          _
        // Predicated region
        $region33: #{tpu_custom_call.1} parent=11 // pred_check
          %p268 = pneg %p171
        $region34: #{tpu_custom_call.1} parent=11 // pred_check_branch
          %270 = sbr.rel (%p268) target = $region36
        $region35: #{tpu_custom_call.1} parent=11 // pred_region
          %s272 = ssub.s32 1024, 1024
          %273 = vsyncadd [#allocation7], %s272
          %s274 = sshll.u32 [#allocation8], 4
          %s275 = int_to_ptr.vmem [resolvable:$true] %s274
          %280 = dma.hbm_to_vmem [thread:$0]  %s6, 1024, %s275, [#allocation7], 64, 64, 4
        $region36: #{tpu_custom_call.1} parent=11 // pred_fallthru
          _
        // Predicated region
        $region37: #{tpu_custom_call.1} parent=11 // pred_check
          %p281 = pneg %p192
        $region38: #{tpu_custom_call.1} parent=11 // pred_check_branch
          %283 = sbr.rel (%p281) target = $region40
        $region39: #{tpu_custom_call.1} parent=11 // pred_region
          _
        $region40: #{tpu_custom_call.1} parent=11 // pred_fallthru
          _
      $region12: #{tpu_custom_call.1} parent=5 // pred_fallthru
        _
      %p284 = scmp.lt.s32.totalorder %s19, 2
      // Predicated region
      $region41: #{tpu_custom_call.1} parent=5 // pred_check
        %p285 = pneg %p284
      $region42: #{tpu_custom_call.1} parent=5 // pred_check_branch
        %287 = sbr.rel (%p285) target = $region44
      $region43: #{tpu_custom_call.1} parent=5 // pred_region
        // Predicated region
        $region45: #{tpu_custom_call.1} parent=43 // pred_check
          %p288 = pneg %p39
        $region46: #{tpu_custom_call.1} parent=43 // pred_check_branch
          %290 = sbr.rel (%p288) target = $region48
        $region47: #{tpu_custom_call.1} parent=43 // pred_region
          %s291 = smul.u32 14, %s19
          %p292 = scmp.lt.s32.totalorder %s291, 27
          %s293 = scalar_select %p292, %s291, 27
          %s294 = smul.addr %s293, 4
          %s295 = scalar_lea.vmem %s0, %s294
          %s296 = smul.u32 14, %s19
        $region48: #{tpu_custom_call.1} parent=43 // pred_fallthru
          _
      $region44: #{tpu_custom_call.1} parent=5 // pred_fallthru
        _
      %p297 = scmp.le.s32.totalorder 1, %s19
      %p298 = scmp.lt.s32.totalorder %s19, 3
      %p299 = pnand %p297, %p298
      %p300 = pneg %p299
      // Predicated region
      $region49: #{tpu_custom_call.1} parent=5 // pred_check
        _
      $region50: #{tpu_custom_call.1} parent=5 // pred_check_branch
        %302 = sbr.rel (%p299) target = $region52
      $region51: #{tpu_custom_call.1} parent=5 // pred_region
        %s303 = ssub.s32 %s19, 1
        // Predicated region
        $region53: #{tpu_custom_call.1} parent=51 // pred_check
          %p304 = pneg %p87
        $region54: #{tpu_custom_call.1} parent=51 // pred_check_branch
          %306 = sbr.rel (%p304) target = $region56
        $region55: #{tpu_custom_call.1} parent=51 // pred_region
          %307 = dma.done [#allocation4], 1024
        $region56: #{tpu_custom_call.1} parent=51 // pred_fallthru
          _
        // Predicated region
        $region57: #{tpu_custom_call.1} parent=51 // pred_check
          %p308 = pneg %p129
        $region58: #{tpu_custom_call.1} parent=51 // pred_check_branch
          %310 = sbr.rel (%p308) target = $region60
        $region59: #{tpu_custom_call.1} parent=51 // pred_region
          %311 = dma.done [#allocation7], 9216
        $region60: #{tpu_custom_call.1} parent=51 // pred_fallthru
          _
        // Predicated region
        $region61: #{tpu_custom_call.1} parent=51 // pred_check
          %p312 = pneg %p171
        $region62: #{tpu_custom_call.1} parent=51 // pred_check_branch
          %314 = sbr.rel (%p312) target = $region64
        $region63: #{tpu_custom_call.1} parent=51 // pred_region
          %315 = dma.done [#allocation7], 1024
        $region64: #{tpu_custom_call.1} parent=51 // pred_fallthru
          _
        %s316 = smul.u32 14, %s24
        %p317 = scmp.lt.s32.totalorder %s316, 27
        %s318 = scalar_select %p317, %s316, 27
        %s319 = smul.addr %s318, 4
        %s320 = scalar_lea.vmem %s0, %s319
        %p321 = pneg %p45
        %p322 = pneg %p42
        %p323 = pneg %p66
        %p324 = pneg %p63
        %p325 = pneg %p87
        %p326 = pneg %p84
        %p327 = pneg %p108
        %p328 = pneg %p105
        %p329 = pneg %p129
        %p330 = pneg %p126
        %p331 = pneg %p150
        %p332 = pneg %p147
        %p333 = pneg %p171
        %p334 = pneg %p168
        %p335 = pneg %p192
        %p336 = pneg %p189
        %p337 = pneg %p218
        %p338 = pneg %p215
        %s339 = sand.u32 %s205, 1
        %s340 = scalar_lea.sflag [#allocation5], %s339
        %s341 = sand.u32 %s205, 1
        %s342 = smul.addr %s341, 112
        %s343 = scalar_lea.vmem [#allocation9], %s342
        %s344 = smul.u32 14, %s24
        %p345 = scmp.lt.s32.totalorder %s344, 27
        %s346 = scalar_select %p345, %s344, 27
        %s347 = smul.addr %s346, 4
        %s348 = scalar_lea.vmem %s0, %s347
        %s349 = smul.u32 14, %s24
        %s350 = smul.u32 14, %s24
        %352 = vst [vmem:[#allocation2] sm:$0xf] 0
        %353 = vst [vmem:[#allocation2 + $0x4] sm:$0xf] 0
        %354 = vst [vmem:[#allocation2 + $0x40] sm:$0xf] 0
        %vm355 = vcmask 1041408
        %vm356 = vsmask.f32 1280
        %vm357 = vmand %vm355, %vm356
        %v358 = vld [vmem:[#allocation2 + $0x44] sm:$0x3]
        %v359 = vsel %vm357, 0, %v358
        %360 = vst [vmem:[#allocation2 + $0x44] sm:$0x3] %v359
        %v361 = vld [vmem:[%s348] sm:$0xf]
        %v362 = vld [vmem:[%s348 + $0x4] sm:$0xf]
        %v363 = vld [vmem:[%s348 + $0x8] sm:$0xf]
        %v364 = vld [vmem:[%s348 + $0xc] sm:$0xf]
        %v365 = vld [vmem:[%s348 + $0x10] sm:$0xf]
        %v366 = vld [vmem:[%s348 + $0x14] sm:$0xf]
        %v367 = vld [vmem:[%s348 + $0x18] sm:$0xf]
        %v368 = vld [vmem:[%s348 + $0x1c] sm:$0xf]
        %v369 = vld [vmem:[%s348 + $0x20] sm:$0xf]
        %v370 = vld [vmem:[%s348 + $0x24] sm:$0xf]
        %v371 = vld [vmem:[%s348 + $0x28] sm:$0xf]
        %v372 = vld [vmem:[%s348 + $0x2c] sm:$0xf]
        %v373 = vld [vmem:[%s348 + $0x30] sm:$0xf]
        %v374 = vld [vmem:[%s348 + $0x34] sm:$0xf]
        %v375 = vld [vmem:[#allocation3] sm:$0xf]
        %v376 = vld [vmem:[#allocation3 + $0x4] sm:$0xf]
        %v377 = vld [vmem:[#allocation3 + $0x8] sm:$0xf]
        %v378 = vld [vmem:[#allocation3 + $0xc] sm:$0xf]
        %v379 = vld [vmem:[#allocation3 + $0x10] sm:$0xf]
        %v380 = vld [vmem:[#allocation3 + $0x14] sm:$0xf]
        %v381 = vld [vmem:[#allocation3 + $0x18] sm:$0xf]
        %v382 = vld [vmem:[#allocation3 + $0x1c] sm:$0xf]
        %v383 = vld [vmem:[#allocation3 + $0x20] sm:$0xf]
        %v384 = vld [vmem:[#allocation3 + $0x24] sm:$0xf]
        %v385 = vld [vmem:[#allocation3 + $0x28] sm:$0xf]
        %v386 = vld [vmem:[#allocation3 + $0x2c] sm:$0xf]
        %v387 = vld [vmem:[#allocation3 + $0x30] sm:$0xf]
        %v388 = vld [vmem:[#allocation3 + $0x34] sm:$0xf]
        %v389 = vld [vmem:[#allocation3 + $0x38] sm:$0xf]
        %v390 = vld [vmem:[#allocation3 + $0x3c] sm:$0xf]
        %v391 = vld [vmem:[%s3] sm:$0x1]
        %v393 = vlaneseq
        %v394 = vshrl.u32 %v393, 7
        %v395 = vsub.s32 0, %v394
        %v396 = vrot.slane %v391, %v395
        %v412 = vunpack.c.l.b16 %v361
        %v413 = vunpack.c.l.b16 %v362
        %v414 = vunpack.c.l.b16 %v363
        %v415 = vunpack.c.l.b16 %v364
        %v416 = vunpack.c.l.b16 %v365
        %v417 = vunpack.c.l.b16 %v366
        %v418 = vunpack.c.l.b16 %v367
        %v419 = vunpack.c.l.b16 %v368
        %v420 = vunpack.c.l.b16 %v369
        %v421 = vunpack.c.l.b16 %v370
        %v422 = vunpack.c.l.b16 %v371
        %v423 = vunpack.c.l.b16 %v372
        %v424 = vunpack.c.l.b16 %v373
        %v425 = vunpack.c.l.b16 %v374
        %v426 = vpack.c.b16 %v413, %v412
        %v427 = vpack.c.b16 %v415, %v414
        %v428 = vpack.c.b16 %v417, %v416
        %v429 = vpack.c.b16 %v419, %v418
        %v430 = vpack.c.b16 %v421, %v420
        %v431 = vpack.c.b16 %v423, %v422
        %v432 = vpack.c.b16 %v425, %v424
        %v456 = vunpack.c.l.b16 %v375
        %v457 = vunpack.c.l.b16 %v376
        %v458 = vunpack.c.l.b16 %v377
        %v459 = vunpack.c.l.b16 %v378
        %v460 = vunpack.c.l.b16 %v379
        %v461 = vunpack.c.l.b16 %v380
        %v462 = vunpack.c.l.b16 %v381
        %v463 = vunpack.c.l.b16 %v382
        %v464 = vunpack.c.l.b16 %v383
        %v465 = vunpack.c.l.b16 %v384
        %v466 = vunpack.c.l.b16 %v385
        %v467 = vunpack.c.l.b16 %v386
        %v468 = vunpack.c.l.b16 %v387
        %v469 = vunpack.c.l.b16 %v388
        %v470 = vunpack.c.l.b16 %v389
        %v471 = vunpack.c.l.b16 %v390
        %v472 = vpack.c.b16 %v457, %v456
        %v473 = vpack.c.b16 %v459, %v458
        %v474 = vpack.c.b16 %v461, %v460
        %v475 = vpack.c.b16 %v463, %v462
        %v476 = vpack.c.b16 %v465, %v464
        %v477 = vpack.c.b16 %v467, %v466
        %v478 = vpack.c.b16 %v469, %v468
        %v479 = vpack.c.b16 %v471, %v470
        %488 = vmatprep.subr.bf16.mxu0 0
        %489 = vmatpush1.bf16.msra.mxu0 %v472
        %490 = vmatprep.subr.bf16.mxu0 0
        %491 = vmatpush1.bf16.msra.mxu0 %v473
        %492 = vmatprep.subr.bf16.mxu0 0
        %493 = vmatpush1.bf16.msra.mxu0 %v474
        %494 = vmatprep.subr.bf16.mxu0 0
        %495 = vmatpush1.bf16.msra.mxu0 %v475
        %496 = vmatprep.subr.bf16.mxu0 0
        %497 = vmatpush1.bf16.msra.mxu0 %v476
        %498 = vmatprep.subr.bf16.mxu0 0
        %499 = vmatpush1.bf16.msra.mxu0 %v477
        %500 = vmatprep.subr.bf16.mxu0 0
        %501 = vmatpush1.bf16.msra.mxu0 %v478
        %502 = vmatprep.subr.bf16.mxu0 0
        %503 = vmatpush1.bf16.msra.mxu0 %v479
        %504 = vmatprep.subr.bf16.mxu0 0
        %505 = vmatpush1.bf16.msra.mxu0 0
        %506 = vmatprep.subr.bf16.mxu0 0
        %507 = vmatpush1.bf16.msra.mxu0 0
        %508 = vmatprep.subr.bf16.mxu0 0
        %509 = vmatpush1.bf16.msra.mxu0 0
        %510 = vmatprep.subr.bf16.mxu0 0
        %511 = vmatpush1.bf16.msra.mxu0 0
        %512 = vmatprep.subr.bf16.mxu0 0
        %513 = vmatpush1.bf16.msra.mxu0 0
        %514 = vmatprep.subr.bf16.mxu0 0
        %515 = vmatpush1.bf16.msra.mxu0 0
        %516 = vmatprep.subr.bf16.mxu0 0
        %517 = vmatpush1.bf16.msra.mxu0 0
        %518 = vmatprep.subr.bf16.mxu0 0
        %519 = vmatpush1.bf16.msra.mxu0 0
        %520 = vmatprep.mubr.bf16.mxu0 0
        %521 = vmatmul.mubr.bf16.gmra.mrb[0].mxu0 %v426
        %v522 = vpop.f32.mrb[0].mxu0
        %v523 = vadd.f32 %v396, %v522
        %v524 = vpop.f32.mrb[0].mxu0
        %v525 = vpop.f32.mrb[0].mxu0
        %v526 = vadd.f32 %v396, %v525
        %v527 = vpop.f32.mrb[0].mxu0
        %528 = vmatprep.mubr.bf16.mxu0 0
        %529 = vmatmul.mubr.bf16.gmra.mrb[0].mxu0 %v427
        %v530 = vpop.f32.mrb[0].mxu0
        %v531 = vadd.f32 %v396, %v530
        %v532 = vpop.f32.mrb[0].mxu0
        %v533 = vpop.f32.mrb[0].mxu0
        %v534 = vadd.f32 %v396, %v533
        %v535 = vpop.f32.mrb[0].mxu0
        %536 = vmatprep.mubr.bf16.mxu0 0
        %537 = vmatmul.mubr.bf16.gmra.mrb[0].mxu0 %v428
        %v538 = vpop.f32.mrb[0].mxu0
        %v539 = vadd.f32 %v396, %v538
        %v540 = vpop.f32.mrb[0].mxu0
        %v541 = vpop.f32.mrb[0].mxu0
        %v542 = vadd.f32 %v396, %v541
        %v543 = vpop.f32.mrb[0].mxu0
        %544 = vmatprep.mubr.bf16.mxu0 0
        %545 = vmatmul.mubr.bf16.gmra.mrb[0].mxu0 %v429
        %v546 = vpop.f32.mrb[0].mxu0
        %v547 = vadd.f32 %v396, %v546
        %v548 = vpop.f32.mrb[0].mxu0
        %v549 = vpop.f32.mrb[0].mxu0
        %v550 = vadd.f32 %v396, %v549
        %v551 = vpop.f32.mrb[0].mxu0
        %552 = vmatprep.mubr.bf16.mxu0 0
        %553 = vmatmul.mubr.bf16.gmra.mrb[0].mxu0 %v430
        %v554 = vpop.f32.mrb[0].mxu0
        %v555 = vadd.f32 %v396, %v554
        %v556 = vpop.f32.mrb[0].mxu0
        %v557 = vpop.f32.mrb[0].mxu0
        %v558 = vadd.f32 %v396, %v557
        %v559 = vpop.f32.mrb[0].mxu0
        %560 = vmatprep.mubr.bf16.mxu0 0
        %561 = vmatmul.mubr.bf16.gmra.mrb[0].mxu0 %v431
        %v562 = vpop.f32.mrb[0].mxu0
        %v563 = vadd.f32 %v396, %v562
        %v564 = vpop.f32.mrb[0].mxu0
        %v565 = vpop.f32.mrb[0].mxu0
        %v566 = vadd.f32 %v396, %v565
        %v567 = vpop.f32.mrb[0].mxu0
        %568 = vmatprep.mubr.bf16.mxu0 0
        %569 = vmatmul.mubr.bf16.gmra.mrb[0].mxu0 %v432
        %v570 = vpop.f32.mrb[0].mxu0
        %v571 = vadd.f32 %v396, %v570
        %v572 = vpop.f32.mrb[0].mxu0
        %v573 = vpop.f32.mrb[0].mxu0
        %v574 = vadd.f32 %v396, %v573
        %v575 = vpop.f32.mrb[0].mxu0
        %576 = vdwg.mxu0
        %v577 = vmax.f32 %v523, 0.0
        %v578 = vmax.f32 %v526, 0.0
        %v579 = vmax.f32 %v531, 0.0
        %v580 = vmax.f32 %v534, 0.0
        %v581 = vmax.f32 %v539, 0.0
        %v582 = vmax.f32 %v542, 0.0
        %v583 = vmax.f32 %v547, 0.0
        %v584 = vmax.f32 %v550, 0.0
        %v585 = vmax.f32 %v555, 0.0
        %v586 = vmax.f32 %v558, 0.0
        %v587 = vmax.f32 %v563, 0.0
        %v588 = vmax.f32 %v566, 0.0
        %v589 = vmax.f32 %v571, 0.0
        %v590 = vmax.f32 %v574, 0.0
        %v591 = vld [vmem:[%s1] sm:$0xff]
        %v592 = vld [vmem:[%s1 + $0x8] sm:$0xff]
        %v593 = vld [vmem:[%s1 + $0x10] sm:$0xff]
        %v594 = vld [vmem:[%s1 + $0x18] sm:$0xff]
        %v595 = vld [vmem:[%s1 + $0x20] sm:$0xff]
        %v596 = vld [vmem:[%s1 + $0x28] sm:$0xff]
        %v597 = vld [vmem:[%s1 + $0x30] sm:$0xff]
        %v598 = vld [vmem:[%s1 + $0x38] sm:$0xff]
        %v599 = vld [vmem:[%s1 + $0x40] sm:$0xff]
        %v600 = vld [vmem:[%s1 + $0x48] sm:$0xff]
        %v601 = vld [vmem:[%s1 + $0x50] sm:$0xff]
        %v602 = vld [vmem:[%s1 + $0x58] sm:$0xff]
        %v603 = vld [vmem:[%s1 + $0x60] sm:$0xff]
        %v604 = vld [vmem:[%s1 + $0x68] sm:$0xff]
        %606 = vset.pattern.permute.xlu0 0
        %607 = vperm.xlu0 %606, %v591
        %v608 = vpop.permute.xlu0 %607
        %611 = vset.pattern.permute.xlu0 0
        %612 = vperm.xlu0 %611, %v592
        %v613 = vpop.permute.xlu0 %612
        %616 = vset.pattern.permute.xlu0 0
        %617 = vperm.xlu0 %616, %v593
        %v618 = vpop.permute.xlu0 %617
        %621 = vset.pattern.permute.xlu0 0
        %622 = vperm.xlu0 %621, %v594
        %v623 = vpop.permute.xlu0 %622
        %626 = vset.pattern.permute.xlu0 0
        %627 = vperm.xlu0 %626, %v595
        %v628 = vpop.permute.xlu0 %627
        %631 = vset.pattern.permute.xlu0 0
        %632 = vperm.xlu0 %631, %v596
        %v633 = vpop.permute.xlu0 %632
        %636 = vset.pattern.permute.xlu0 0
        %637 = vperm.xlu0 %636, %v597
        %v638 = vpop.permute.xlu0 %637
        %641 = vset.pattern.permute.xlu0 0
        %642 = vperm.xlu0 %641, %v598
        %v643 = vpop.permute.xlu0 %642
        %646 = vset.pattern.permute.xlu0 0
        %647 = vperm.xlu0 %646, %v599
        %v648 = vpop.permute.xlu0 %647
        %651 = vset.pattern.permute.xlu0 0
        %652 = vperm.xlu0 %651, %v600
        %v653 = vpop.permute.xlu0 %652
        %656 = vset.pattern.permute.xlu0 0
        %657 = vperm.xlu0 %656, %v601
        %v658 = vpop.permute.xlu0 %657
        %661 = vset.pattern.permute.xlu0 0
        %662 = vperm.xlu0 %661, %v602
        %v663 = vpop.permute.xlu0 %662
        %666 = vset.pattern.permute.xlu0 0
        %667 = vperm.xlu0 %666, %v603
        %v668 = vpop.permute.xlu0 %667
        %671 = vset.pattern.permute.xlu0 0
        %672 = vperm.xlu0 %671, %v604
        %v673 = vpop.permute.xlu0 %672
        %v675 = vmul.f32 %v577, %v608
        %v676 = vmul.f32 %v578, %v613
        %v677 = vmul.f32 %v579, %v618
        %v678 = vmul.f32 %v580, %v623
        %v679 = vmul.f32 %v581, %v628
        %v680 = vmul.f32 %v582, %v633
        %v681 = vmul.f32 %v583, %v638
        %v682 = vmul.f32 %v584, %v643
        %v683 = vmul.f32 %v585, %v648
        %v684 = vmul.f32 %v586, %v653
        %v685 = vmul.f32 %v587, %v658
        %v686 = vmul.f32 %v588, %v663
        %v687 = vmul.f32 %v589, %v668
        %v688 = vmul.f32 %v590, %v673
        %v689 = vpack.c.bf16 %v676, %v675
        %v690 = vpack.c.bf16 %v678, %v677
        %v691 = vpack.c.bf16 %v680, %v679
        %v692 = vpack.c.bf16 %v682, %v681
        %v693 = vpack.c.bf16 %v684, %v683
        %v694 = vpack.c.bf16 %v686, %v685
        %v695 = vpack.c.bf16 %v688, %v687
        %v703 = vunpack.c.l.b16 %v689
        %v704 = vunpack.c.h.b16 %v689
        %v705 = vunpack.c.l.b16 %v690
        %v706 = vunpack.c.h.b16 %v690
        %v707 = vunpack.c.l.b16 %v691
        %v708 = vunpack.c.h.b16 %v691
        %v709 = vunpack.c.l.b16 %v692
        %v710 = vunpack.c.h.b16 %v692
        %v711 = vunpack.c.l.b16 %v693
        %v712 = vunpack.c.h.b16 %v693
        %v713 = vunpack.c.l.b16 %v694
        %v714 = vunpack.c.h.b16 %v694
        %v715 = vunpack.c.l.b16 %v695
        %v716 = vunpack.c.h.b16 %v695
        %v717 = vpack.c.b16 %v703, %v703
        %v718 = vpack.c.b16 %v704, %v704
        %v719 = vpack.c.b16 %v705, %v705
        %v720 = vpack.c.b16 %v706, %v706
        %v721 = vpack.c.b16 %v707, %v707
        %v722 = vpack.c.b16 %v708, %v708
        %v723 = vpack.c.b16 %v709, %v709
        %v724 = vpack.c.b16 %v710, %v710
        %v725 = vpack.c.b16 %v711, %v711
        %v726 = vpack.c.b16 %v712, %v712
        %v727 = vpack.c.b16 %v713, %v713
        %v728 = vpack.c.b16 %v714, %v714
        %v729 = vpack.c.b16 %v715, %v715
        %v730 = vpack.c.b16 %v716, %v716
        %745 = vst [vmem:[#allocation2 + $0x8] sm:$0xf] %v717
        %746 = vst [vmem:[#allocation2 + $0xc] sm:$0xf] %v718
        %747 = vst [vmem:[#allocation2 + $0x10] sm:$0xf] %v719
        %748 = vst [vmem:[#allocation2 + $0x14] sm:$0xf] %v720
        %749 = vst [vmem:[#allocation2 + $0x18] sm:$0xf] %v721
        %750 = vst [vmem:[#allocation2 + $0x1c] sm:$0xf] %v722
        %751 = vst [vmem:[#allocation2 + $0x20] sm:$0xf] %v723
        %752 = vst [vmem:[#allocation2 + $0x24] sm:$0xf] %v724
        %753 = vst [vmem:[#allocation2 + $0x28] sm:$0xf] %v725
        %754 = vst [vmem:[#allocation2 + $0x2c] sm:$0xf] %v726
        %755 = vst [vmem:[#allocation2 + $0x30] sm:$0xf] %v727
        %756 = vst [vmem:[#allocation2 + $0x34] sm:$0xf] %v728
        %757 = vst [vmem:[#allocation2 + $0x38] sm:$0xf] %v729
        %758 = vst [vmem:[#allocation2 + $0x3c] sm:$0xf] %v730
        %v759 = vld [vmem:[#allocation2] sm:$0xc]
        %v760 = vld [vmem:[#allocation2 + $0x4] sm:$0xf]
        %v761 = vld [vmem:[#allocation2 + $0x8] sm:$0xf]
        %v762 = vld [vmem:[#allocation2 + $0xc] sm:$0xf]
        %v763 = vld [vmem:[#allocation2 + $0x10] sm:$0xf]
        %v764 = vld [vmem:[#allocation2 + $0x14] sm:$0xf]
        %v765 = vld [vmem:[#allocation2 + $0x18] sm:$0xf]
        %v766 = vld [vmem:[#allocation2 + $0x1c] sm:$0xf]
        %v767 = vld [vmem:[#allocation2 + $0x20] sm:$0xf]
        %v768 = vld [vmem:[#allocation2 + $0x24] sm:$0xf]
        %v769 = vld [vmem:[#allocation2 + $0x28] sm:$0xf]
        %v770 = vld [vmem:[#allocation2 + $0x2c] sm:$0xf]
        %v771 = vld [vmem:[#allocation2 + $0x30] sm:$0xf]
        %v772 = vld [vmem:[#allocation2 + $0x34] sm:$0xf]
        %v773 = vld [vmem:[#allocation2 + $0x38] sm:$0x7]
        %v774 = vld [vmem:[#allocation6] sm:$0xf]
        %v775 = vld [vmem:[#allocation6 + $0x4] sm:$0xf]
        %v776 = vld [vmem:[#allocation6 + $0x8] sm:$0xf]
        %v777 = vld [vmem:[#allocation6 + $0xc] sm:$0xf]
        %v778 = vld [vmem:[#allocation6 + $0x10] sm:$0xf]
        %v779 = vld [vmem:[#allocation6 + $0x14] sm:$0xf]
        %v780 = vld [vmem:[#allocation6 + $0x18] sm:$0xf]
        %v781 = vld [vmem:[#allocation6 + $0x1c] sm:$0xf]
        %v782 = vld [vmem:[#allocation6 + $0x20] sm:$0xf]
        %v783 = vld [vmem:[#allocation6 + $0x24] sm:$0xf]
        %v784 = vld [vmem:[#allocation6 + $0x28] sm:$0xf]
        %v785 = vld [vmem:[#allocation6 + $0x2c] sm:$0xf]
        %v786 = vld [vmem:[#allocation6 + $0x30] sm:$0xf]
        %v787 = vld [vmem:[#allocation6 + $0x34] sm:$0xf]
        %v788 = vld [vmem:[#allocation6 + $0x38] sm:$0xf]
        %v789 = vld [vmem:[#allocation6 + $0x3c] sm:$0xf]
        %v790 = vld [vmem:[#allocation2] sm:$0x8]
        %s791 = scalar_lea.vmem [#allocation6], 64
        %v792 = vld [vmem:[%s791] sm:$0xf]
        %v793 = vld [vmem:[%s791 + $0x4] sm:$0xf]
        %v794 = vld [vmem:[%s791 + $0x8] sm:$0xf]
        %v795 = vld [vmem:[%s791 + $0xc] sm:$0xf]
        %v796 = vld [vmem:[%s791 + $0x10] sm:$0xf]
        %v797 = vld [vmem:[%s791 + $0x14] sm:$0xf]
        %v798 = vld [vmem:[%s791 + $0x18] sm:$0xf]
        %v799 = vld [vmem:[%s791 + $0x1c] sm:$0xf]
        %v800 = vld [vmem:[%s791 + $0x20] sm:$0xf]
        %v801 = vld [vmem:[%s791 + $0x24] sm:$0xf]
        %v802 = vld [vmem:[%s791 + $0x28] sm:$0xf]
        %v803 = vld [vmem:[%s791 + $0x2c] sm:$0xf]
        %v804 = vld [vmem:[%s791 + $0x30] sm:$0xf]
        %v805 = vld [vmem:[%s791 + $0x34] sm:$0xf]
        %v806 = vld [vmem:[%s791 + $0x38] sm:$0xf]
        %v807 = vld [vmem:[%s791 + $0x3c] sm:$0xf]
        %v823 = vunpack.c.l.b16 %v790
        %v824 = vunpack.c.l.b16 %v760
        %v825 = vunpack.c.l.b16 %v761
        %v826 = vunpack.c.l.b16 %v762
        %v827 = vunpack.c.l.b16 %v763
        %v828 = vunpack.c.l.b16 %v764
        %v829 = vunpack.c.l.b16 %v765
        %v830 = vunpack.c.l.b16 %v766
        %v831 = vunpack.c.l.b16 %v767
        %v832 = vunpack.c.l.b16 %v768
        %v833 = vunpack.c.l.b16 %v769
        %v834 = vunpack.c.l.b16 %v770
        %v835 = vunpack.c.l.b16 %v771
        %v836 = vunpack.c.l.b16 %v772
        %v837 = vunpack.c.l.b16 %v773
        %v838 = vpack.c.b16 %v824, %v823
        %v839 = vpack.c.b16 %v826, %v825
        %v840 = vpack.c.b16 %v828, %v827
        %v841 = vpack.c.b16 %v830, %v829
        %v842 = vpack.c.b16 %v832, %v831
        %v843 = vpack.c.b16 %v834, %v833
        %v844 = vpack.c.b16 %v836, %v835
        %v845 = vpack.c.b16 %v837, %v837
        %vm846 = vcmask 1044480
        %v847 = vrot.slane %v838, 3
        %v848 = vrot.slane %v839, 3
        %v849 = vsel %vm846, %v847, %v848
        %v850 = vrot.slane %v840, 3
        %v851 = vsel %vm846, %v848, %v850
        %v852 = vrot.slane %v841, 3
        %v853 = vsel %vm846, %v850, %v852
        %v854 = vrot.slane %v842, 3
        %v855 = vsel %vm846, %v852, %v854
        %v856 = vrot.slane %v843, 3
        %v857 = vsel %vm846, %v854, %v856
        %v858 = vrot.slane %v844, 3
        %v859 = vsel %vm846, %v856, %v858
        %v860 = vrot.slane %v845, 3
        %v861 = vsel %vm846, %v858, %v860
        %v885 = vunpack.c.l.b16 %v792
        %v886 = vunpack.c.l.b16 %v793
        %v887 = vunpack.c.l.b16 %v794
        %v888 = vunpack.c.l.b16 %v795
        %v889 = vunpack.c.l.b16 %v796
        %v890 = vunpack.c.l.b16 %v797
        %v891 = vunpack.c.l.b16 %v798
        %v892 = vunpack.c.l.b16 %v799
        %v893 = vunpack.c.l.b16 %v800
        %v894 = vunpack.c.l.b16 %v801
        %v895 = vunpack.c.l.b16 %v802
        %v896 = vunpack.c.l.b16 %v803
        %v897 = vunpack.c.l.b16 %v804
        %v898 = vunpack.c.l.b16 %v805
        %v899 = vunpack.c.l.b16 %v806
        %v900 = vunpack.c.l.b16 %v807
        %v901 = vpack.c.b16 %v886, %v885
        %v902 = vpack.c.b16 %v888, %v887
        %v903 = vpack.c.b16 %v890, %v889
        %v904 = vpack.c.b16 %v892, %v891
        %v905 = vpack.c.b16 %v894, %v893
        %v906 = vpack.c.b16 %v896, %v895
        %v907 = vpack.c.b16 %v898, %v897
        %v908 = vpack.c.b16 %v900, %v899
        %917 = vmatprep.subr.bf16.mxu0 0
        %918 = vmatpush1.bf16.msra.mxu0 %v901
        %919 = vmatprep.subr.bf16.mxu0 0
        %920 = vmatpush1.bf16.msra.mxu0 %v902
        %921 = vmatprep.subr.bf16.mxu0 0
        %922 = vmatpush1.bf16.msra.mxu0 %v903
        %923 = vmatprep.subr.bf16.mxu0 0
        %924 = vmatpush1.bf16.msra.mxu0 %v904
        %925 = vmatprep.subr.bf16.mxu0 0
        %926 = vmatpush1.bf16.msra.mxu0 %v905
        %927 = vmatprep.subr.bf16.mxu0 0
        %928 = vmatpush1.bf16.msra.mxu0 %v906
        %929 = vmatprep.subr.bf16.mxu0 0
        %930 = vmatpush1.bf16.msra.mxu0 %v907
        %931 = vmatprep.subr.bf16.mxu0 0
        %932 = vmatpush1.bf16.msra.mxu0 %v908
        %933 = vmatprep.subr.bf16.mxu0 0
        %934 = vmatpush1.bf16.msra.mxu0 0
        %935 = vmatprep.subr.bf16.mxu0 0
        %936 = vmatpush1.bf16.msra.mxu0 0
        %937 = vmatprep.subr.bf16.mxu0 0
        %938 = vmatpush1.bf16.msra.mxu0 0
        %939 = vmatprep.subr.bf16.mxu0 0
        %940 = vmatpush1.bf16.msra.mxu0 0
        %941 = vmatprep.subr.bf16.mxu0 0
        %942 = vmatpush1.bf16.msra.mxu0 0
        %943 = vmatprep.subr.bf16.mxu0 0
        %944 = vmatpush1.bf16.msra.mxu0 0
        %945 = vmatprep.subr.bf16.mxu0 0
        %946 = vmatpush1.bf16.msra.mxu0 0
        %947 = vmatprep.subr.bf16.mxu0 0
        %948 = vmatpush1.bf16.msra.mxu0 0
        %949 = vmatprep.mubr.bf16.mxu0 0
        %950 = vmatmul.mubr.bf16.gmra.mrb[0].mxu0 %v849
        %v951 = vpop.f32.mrb[0].mxu0
        %v952 = vadd.f32 0.0, %v951
        %v953 = vpop.f32.mrb[0].mxu0
        %v954 = vpop.f32.mrb[0].mxu0
        %v955 = vadd.f32 0.0, %v954
        %v956 = vpop.f32.mrb[0].mxu0
        %957 = vmatprep.mubr.bf16.mxu0 0
        %958 = vmatmul.mubr.bf16.gmra.mrb[0].mxu0 %v851
        %v959 = vpop.f32.mrb[0].mxu0
        %v960 = vadd.f32 0.0, %v959
        %v961 = vpop.f32.mrb[0].mxu0
        %v962 = vpop.f32.mrb[0].mxu0
        %v963 = vadd.f32 0.0, %v962
        %v964 = vpop.f32.mrb[0].mxu0
        %965 = vmatprep.mubr.bf16.mxu0 0
        %966 = vmatmul.mubr.bf16.gmra.mrb[0].mxu0 %v853
        %v967 = vpop.f32.mrb[0].mxu0
        %v968 = vadd.f32 0.0, %v967
        %v969 = vpop.f32.mrb[0].mxu0
        %v970 = vpop.f32.mrb[0].mxu0
        %v971 = vadd.f32 0.0, %v970
        %v972 = vpop.f32.mrb[0].mxu0
        %973 = vmatprep.mubr.bf16.mxu0 0
        %974 = vmatmul.mubr.bf16.gmra.mrb[0].mxu0 %v855
        %v975 = vpop.f32.mrb[0].mxu0
        %v976 = vadd.f32 0.0, %v975
        %v977 = vpop.f32.mrb[0].mxu0
        %v978 = vpop.f32.mrb[0].mxu0
        %v979 = vadd.f32 0.0, %v978
        %v980 = vpop.f32.mrb[0].mxu0
        %981 = vmatprep.mubr.bf16.mxu0 0
        %982 = vmatmul.mubr.bf16.gmra.mrb[0].mxu0 %v857
        %v983 = vpop.f32.mrb[0].mxu0
        %v984 = vadd.f32 0.0, %v983
        %v985 = vpop.f32.mrb[0].mxu0
        %v986 = vpop.f32.mrb[0].mxu0
        %v987 = vadd.f32 0.0, %v986
        %v988 = vpop.f32.mrb[0].mxu0
        %989 = vmatprep.mubr.bf16.mxu0 0
        %990 = vmatmul.mubr.bf16.gmra.mrb[0].mxu0 %v859
        %v991 = vpop.f32.mrb[0].mxu0
        %v992 = vadd.f32 0.0, %v991
        %v993 = vpop.f32.mrb[0].mxu0
        %v994 = vpop.f32.mrb[0].mxu0
        %v995 = vadd.f32 0.0, %v994
        %v996 = vpop.f32.mrb[0].mxu0
        %997 = vmatprep.mubr.bf16.mxu0 0
        %998 = vmatmul.mubr.bf16.gmra.mrb[0].mxu0 %v861
        %v999 = vpop.f32.mrb[0].mxu0
        %v1000 = vadd.f32 0.0, %v999
        %v1001 = vpop.f32.mrb[0].mxu0
        %v1002 = vpop.f32.mrb[0].mxu0
        %v1003 = vadd.f32 0.0, %v1002
        %v1004 = vpop.f32.mrb[0].mxu0
        %1005 = vdwg.mxu0
        %v1007 = vunpack.c.l.b16 %v759
        %v1008 = vpack.c.b16 %v824, %v1007
        %vm1009 = vsmask.f32 5376
        %v1011 = vshrl.u32 %v1008, 16
        %v1013 = vrot.slane %v1011, 2
        %v1014 = vshll.u32 %v1008, 16
        %v1016 = vrot.slane %v1014, 3
        %v1017 = vor.u32 %v1013, %v1016
        %v1019 = vshrl.u32 %v839, 16
        %v1021 = vrot.slane %v1019, 2
        %v1022 = vshll.u32 %v839, 16
        %v1024 = vrot.slane %v1022, 3
        %v1025 = vor.u32 %v1021, %v1024
        %v1026 = vsel %vm1009, %v1017, %v1025
        %v1028 = vshrl.u32 %v840, 16
        %v1030 = vrot.slane %v1028, 2
        %v1031 = vshll.u32 %v840, 16
        %v1033 = vrot.slane %v1031, 3
        %v1034 = vor.u32 %v1030, %v1033
        %v1035 = vsel %vm1009, %v1025, %v1034
        %v1037 = vshrl.u32 %v841, 16
        %v1039 = vrot.slane %v1037, 2
        %v1040 = vshll.u32 %v841, 16
        %v1042 = vrot.slane %v1040, 3
        %v1043 = vor.u32 %v1039, %v1042
        %v1044 = vsel %vm1009, %v1034, %v1043
        %v1046 = vshrl.u32 %v842, 16
        %v1048 = vrot.slane %v1046, 2
        %v1049 = vshll.u32 %v842, 16
        %v1051 = vrot.slane %v1049, 3
        %v1052 = vor.u32 %v1048, %v1051
        %v1053 = vsel %vm1009, %v1043, %v1052
        %v1055 = vshrl.u32 %v843, 16
        %v1057 = vrot.slane %v1055, 2
        %v1058 = vshll.u32 %v843, 16
        %v1060 = vrot.slane %v1058, 3
        %v1061 = vor.u32 %v1057, %v1060
        %v1062 = vsel %vm1009, %v1052, %v1061
        %v1064 = vshrl.u32 %v844, 16
        %v1066 = vrot.slane %v1064, 2
        %v1067 = vshll.u32 %v844, 16
        %v1069 = vrot.slane %v1067, 3
        %v1070 = vor.u32 %v1066, %v1069
        %v1071 = vsel %vm1009, %v1061, %v1070
        %v1073 = vshrl.u32 %v845, 16
        %v1075 = vrot.slane %v1073, 2
        %v1076 = vshll.u32 %v845, 16
        %v1078 = vrot.slane %v1076, 3
        %v1079 = vor.u32 %v1075, %v1078
        %v1080 = vsel %vm1009, %v1070, %v1079
        %v1104 = vunpack.c.l.b16 %v774
        %v1105 = vunpack.c.l.b16 %v775
        %v1106 = vunpack.c.l.b16 %v776
        %v1107 = vunpack.c.l.b16 %v777
        %v1108 = vunpack.c.l.b16 %v778
        %v1109 = vunpack.c.l.b16 %v779
        %v1110 = vunpack.c.l.b16 %v780
        %v1111 = vunpack.c.l.b16 %v781
        %v1112 = vunpack.c.l.b16 %v782
        %v1113 = vunpack.c.l.b16 %v783
        %v1114 = vunpack.c.l.b16 %v784
        %v1115 = vunpack.c.l.b16 %v785
        %v1116 = vunpack.c.l.b16 %v786
        %v1117 = vunpack.c.l.b16 %v787
        %v1118 = vunpack.c.l.b16 %v788
        %v1119 = vunpack.c.l.b16 %v789
        %v1120 = vpack.c.b16 %v1105, %v1104
        %v1121 = vpack.c.b16 %v1107, %v1106
        %v1122 = vpack.c.b16 %v1109, %v1108
        %v1123 = vpack.c.b16 %v1111, %v1110
        %v1124 = vpack.c.b16 %v1113, %v1112
        %v1125 = vpack.c.b16 %v1115, %v1114
        %v1126 = vpack.c.b16 %v1117, %v1116
        %v1127 = vpack.c.b16 %v1119, %v1118
        %1136 = vmatprep.subr.bf16.mxu0 0
        %1137 = vmatpush1.bf16.msra.mxu0 %v1120
        %1138 = vmatprep.subr.bf16.mxu0 0
        %1139 = vmatpush1.bf16.msra.mxu0 %v1121
        %1140 = vmatprep.subr.bf16.mxu0 0
        %1141 = vmatpush1.bf16.msra.mxu0 %v1122
        %1142 = vmatprep.subr.bf16.mxu0 0
        %1143 = vmatpush1.bf16.msra.mxu0 %v1123
        %1144 = vmatprep.subr.bf16.mxu0 0
        %1145 = vmatpush1.bf16.msra.mxu0 %v1124
        %1146 = vmatprep.subr.bf16.mxu0 0
        %1147 = vmatpush1.bf16.msra.mxu0 %v1125
        %1148 = vmatprep.subr.bf16.mxu0 0
        %1149 = vmatpush1.bf16.msra.mxu0 %v1126
        %1150 = vmatprep.subr.bf16.mxu0 0
        %1151 = vmatpush1.bf16.msra.mxu0 %v1127
        %1152 = vmatprep.subr.bf16.mxu0 0
        %1153 = vmatpush1.bf16.msra.mxu0 0
        %1154 = vmatprep.subr.bf16.mxu0 0
        %1155 = vmatpush1.bf16.msra.mxu0 0
        %1156 = vmatprep.subr.bf16.mxu0 0
        %1157 = vmatpush1.bf16.msra.mxu0 0
        %1158 = vmatprep.subr.bf16.mxu0 0
        %1159 = vmatpush1.bf16.msra.mxu0 0
        %1160 = vmatprep.subr.bf16.mxu0 0
        %1161 = vmatpush1.bf16.msra.mxu0 0
        %1162 = vmatprep.subr.bf16.mxu0 0
        %1163 = vmatpush1.bf16.msra.mxu0 0
        %1164 = vmatprep.subr.bf16.mxu0 0
        %1165 = vmatpush1.bf16.msra.mxu0 0
        %1166 = vmatprep.subr.bf16.mxu0 0
        %1167 = vmatpush1.bf16.msra.mxu0 0
        %1168 = vmatprep.mubr.bf16.mxu0 0
        %1169 = vmatmul.mubr.bf16.gmra.mrb[0].mxu0 %v1026
        %v1170 = vpop.f32.mrb[0].mxu0
        %v1171 = vadd.f32 %v952, %v1170
        %v1172 = vpop.f32.mrb[0].mxu0
        %v1173 = vpop.f32.mrb[0].mxu0
        %v1174 = vadd.f32 %v955, %v1173
        %v1175 = vpop.f32.mrb[0].mxu0
        %1176 = vmatprep.mubr.bf16.mxu0 0
        %1177 = vmatmul.mubr.bf16.gmra.mrb[0].mxu0 %v1035
        %v1178 = vpop.f32.mrb[0].mxu0
        %v1179 = vadd.f32 %v960, %v1178
        %v1180 = vpop.f32.mrb[0].mxu0
        %v1181 = vpop.f32.mrb[0].mxu0
        %v1182 = vadd.f32 %v963, %v1181
        %v1183 = vpop.f32.mrb[0].mxu0
        %1184 = vmatprep.mubr.bf16.mxu0 0
        %1185 = vmatmul.mubr.bf16.gmra.mrb[0].mxu0 %v1044
        %v1186 = vpop.f32.mrb[0].mxu0
        %v1187 = vadd.f32 %v968, %v1186
        %v1188 = vpop.f32.mrb[0].mxu0
        %v1189 = vpop.f32.mrb[0].mxu0
        %v1190 = vadd.f32 %v971, %v1189
        %v1191 = vpop.f32.mrb[0].mxu0
        %1192 = vmatprep.mubr.bf16.mxu0 0
        %1193 = vmatmul.mubr.bf16.gmra.mrb[0].mxu0 %v1053
        %v1194 = vpop.f32.mrb[0].mxu0
        %v1195 = vadd.f32 %v976, %v1194
        %v1196 = vpop.f32.mrb[0].mxu0
        %v1197 = vpop.f32.mrb[0].mxu0
        %v1198 = vadd.f32 %v979, %v1197
        %v1199 = vpop.f32.mrb[0].mxu0
        %1200 = vmatprep.mubr.bf16.mxu0 0
        %1201 = vmatmul.mubr.bf16.gmra.mrb[0].mxu0 %v1062
        %v1202 = vpop.f32.mrb[0].mxu0
        %v1203 = vadd.f32 %v984, %v1202
        %v1204 = vpop.f32.mrb[0].mxu0
        %v1205 = vpop.f32.mrb[0].mxu0
        %v1206 = vadd.f32 %v987, %v1205
        %v1207 = vpop.f32.mrb[0].mxu0
        %1208 = vmatprep.mubr.bf16.mxu0 0
        %1209 = vmatmul.mubr.bf16.gmra.mrb[0].mxu0 %v1071
        %v1210 = vpop.f32.mrb[0].mxu0
        %v1211 = vadd.f32 %v992, %v1210
        %v1212 = vpop.f32.mrb[0].mxu0
        %v1213 = vpop.f32.mrb[0].mxu0
        %v1214 = vadd.f32 %v995, %v1213
        %v1215 = vpop.f32.mrb[0].mxu0
        %1216 = vmatprep.mubr.bf16.mxu0 0
        %1217 = vmatmul.mubr.bf16.gmra.mrb[0].mxu0 %v1080
        %v1218 = vpop.f32.mrb[0].mxu0
        %v1219 = vadd.f32 %v1000, %v1218
        %v1220 = vpop.f32.mrb[0].mxu0
        %v1221 = vpop.f32.mrb[0].mxu0
        %v1222 = vadd.f32 %v1003, %v1221
        %v1223 = vpop.f32.mrb[0].mxu0
        %1224 = vdwg.mxu0
        %v1225 = vld [vmem:[#allocation2 + $0x38] sm:$0xf]
        %s1226 = scalar_lea.vmem [#allocation6], 128
        %v1227 = vld [vmem:[%s1226] sm:$0xf]
        %v1228 = vld [vmem:[%s1226 + $0x4] sm:$0xf]
        %v1229 = vld [vmem:[%s1226 + $0x8] sm:$0xf]
        %v1230 = vld [vmem:[%s1226 + $0xc] sm:$0xf]
        %v1231 = vld [vmem:[%s1226 + $0x10] sm:$0xf]
        %v1232 = vld [vmem:[%s1226 + $0x14] sm:$0xf]
        %v1233 = vld [vmem:[%s1226 + $0x18] sm:$0xf]
        %v1234 = vld [vmem:[%s1226 + $0x1c] sm:$0xf]
        %v1235 = vld [vmem:[%s1226 + $0x20] sm:$0xf]
        %v1236 = vld [vmem:[%s1226 + $0x24] sm:$0xf]
        %v1237 = vld [vmem:[%s1226 + $0x28] sm:$0xf]
        %v1238 = vld [vmem:[%s1226 + $0x2c] sm:$0xf]
        %v1239 = vld [vmem:[%s1226 + $0x30] sm:$0xf]
        %v1240 = vld [vmem:[%s1226 + $0x34] sm:$0xf]
        %v1241 = vld [vmem:[%s1226 + $0x38] sm:$0xf]
        %v1242 = vld [vmem:[%s1226 + $0x3c] sm:$0xf]
        %v1244 = vunpack.c.l.b16 %v1225
        %v1245 = vpack.c.b16 %v1244, %v1244
        %vm1246 = vsmask.f32 4352
        %v1248 = vshrl.u32 %v838, 16
        %v1250 = vrot.slane %v1248, 3
        %v1251 = vshll.u32 %v838, 16
        %v1253 = vrot.slane %v1251, 4
        %v1254 = vor.u32 %v1250, %v1253
        %v1255 = vrot.slane %v1019, 3
        %v1256 = vrot.slane %v1022, 4
        %v1257 = vor.u32 %v1255, %v1256
        %v1258 = vsel %vm1246, %v1254, %v1257
        %v1259 = vrot.slane %v1028, 3
        %v1260 = vrot.slane %v1031, 4
        %v1261 = vor.u32 %v1259, %v1260
        %v1262 = vsel %vm1246, %v1257, %v1261
        %v1263 = vrot.slane %v1037, 3
        %v1264 = vrot.slane %v1040, 4
        %v1265 = vor.u32 %v1263, %v1264
        %v1266 = vsel %vm1246, %v1261, %v1265
        %v1267 = vrot.slane %v1046, 3
        %v1268 = vrot.slane %v1049, 4
        %v1269 = vor.u32 %v1267, %v1268
        %v1270 = vsel %vm1246, %v1265, %v1269
        %v1271 = vrot.slane %v1055, 3
        %v1272 = vrot.slane %v1058, 4
        %v1273 = vor.u32 %v1271, %v1272
        %v1274 = vsel %vm1246, %v1269, %v1273
        %v1275 = vrot.slane %v1064, 3
        %v1276 = vrot.slane %v1067, 4
        %v1277 = vor.u32 %v1275, %v1276
        %v1278 = vsel %vm1246, %v1273, %v1277
        %v1280 = vshrl.u32 %v1245, 16
        %v1282 = vrot.slane %v1280, 3
        %v1283 = vshll.u32 %v1245, 16
        %v1285 = vrot.slane %v1283, 4
        %v1286 = vor.u32 %v1282, %v1285
        %v1287 = vsel %vm1246, %v1277, %v1286
        %v1311 = vunpack.c.l.b16 %v1227
        %v1312 = vunpack.c.l.b16 %v1228
        %v1313 = vunpack.c.l.b16 %v1229
        %v1314 = vunpack.c.l.b16 %v1230
        %v1315 = vunpack.c.l.b16 %v1231
        %v1316 = vunpack.c.l.b16 %v1232
        %v1317 = vunpack.c.l.b16 %v1233
        %v1318 = vunpack.c.l.b16 %v1234
        %v1319 = vunpack.c.l.b16 %v1235
        %v1320 = vunpack.c.l.b16 %v1236
        %v1321 = vunpack.c.l.b16 %v1237
        %v1322 = vunpack.c.l.b16 %v1238
        %v1323 = vunpack.c.l.b16 %v1239
        %v1324 = vunpack.c.l.b16 %v1240
        %v1325 = vunpack.c.l.b16 %v1241
        %v1326 = vunpack.c.l.b16 %v1242
        %v1327 = vpack.c.b16 %v1312, %v1311
        %v1328 = vpack.c.b16 %v1314, %v1313
        %v1329 = vpack.c.b16 %v1316, %v1315
        %v1330 = vpack.c.b16 %v1318, %v1317
        %v1331 = vpack.c.b16 %v1320, %v1319
        %v1332 = vpack.c.b16 %v1322, %v1321
        %v1333 = vpack.c.b16 %v1324, %v1323
        %v1334 = vpack.c.b16 %v1326, %v1325
        %1343 = vmatprep.subr.bf16.mxu0 0
        %1344 = vmatpush1.bf16.msra.mxu0 %v1327
        %1345 = vmatprep.subr.bf16.mxu0 0
        %1346 = vmatpush1.bf16.msra.mxu0 %v1328
        %1347 = vmatprep.subr.bf16.mxu0 0
        %1348 = vmatpush1.bf16.msra.mxu0 %v1329
        %1349 = vmatprep.subr.bf16.mxu0 0
        %1350 = vmatpush1.bf16.msra.mxu0 %v1330
        %1351 = vmatprep.subr.bf16.mxu0 0
        %1352 = vmatpush1.bf16.msra.mxu0 %v1331
        %1353 = vmatprep.subr.bf16.mxu0 0
        %1354 = vmatpush1.bf16.msra.mxu0 %v1332
        %1355 = vmatprep.subr.bf16.mxu0 0
        %1356 = vmatpush1.bf16.msra.mxu0 %v1333
        %1357 = vmatprep.subr.bf16.mxu0 0
        %1358 = vmatpush1.bf16.msra.mxu0 %v1334
        %1359 = vmatprep.subr.bf16.mxu0 0
        %1360 = vmatpush1.bf16.msra.mxu0 0
        %1361 = vmatprep.subr.bf16.mxu0 0
        %1362 = vmatpush1.bf16.msra.mxu0 0
        %1363 = vmatprep.subr.bf16.mxu0 0
        %1364 = vmatpush1.bf16.msra.mxu0 0
        %1365 = vmatprep.subr.bf16.mxu0 0
        %1366 = vmatpush1.bf16.msra.mxu0 0
        %1367 = vmatprep.subr.bf16.mxu0 0
        %1368 = vmatpush1.bf16.msra.mxu0 0
        %1369 = vmatprep.subr.bf16.mxu0 0
        %1370 = vmatpush1.bf16.msra.mxu0 0
        %1371 = vmatprep.subr.bf16.mxu0 0
        %1372 = vmatpush1.bf16.msra.mxu0 0
        %1373 = vmatprep.subr.bf16.mxu0 0
        %1374 = vmatpush1.bf16.msra.mxu0 0
        %1375 = vmatprep.mubr.bf16.mxu0 0
        %1376 = vmatmul.mubr.bf16.gmra.mrb[0].mxu0 %v1258
        %v1377 = vpop.f32.mrb[0].mxu0
        %v1378 = vadd.f32 0.0, %v1377
        %v1379 = vpop.f32.mrb[0].mxu0
        %v1380 = vpop.f32.mrb[0].mxu0
        %v1381 = vadd.f32 0.0, %v1380
        %v1382 = vpop.f32.mrb[0].mxu0
        %1383 = vmatprep.mubr.bf16.mxu0 0
        %1384 = vmatmul.mubr.bf16.gmra.mrb[0].mxu0 %v1262
        %v1385 = vpop.f32.mrb[0].mxu0
        %v1386 = vadd.f32 0.0, %v1385
        %v1387 = vpop.f32.mrb[0].mxu0
        %v1388 = vpop.f32.mrb[0].mxu0
        %v1389 = vadd.f32 0.0, %v1388
        %v1390 = vpop.f32.mrb[0].mxu0
        %1391 = vmatprep.mubr.bf16.mxu0 0
        %1392 = vmatmul.mubr.bf16.gmra.mrb[0].mxu0 %v1266
        %v1393 = vpop.f32.mrb[0].mxu0
        %v1394 = vadd.f32 0.0, %v1393
        %v1395 = vpop.f32.mrb[0].mxu0
        %v1396 = vpop.f32.mrb[0].mxu0
        %v1397 = vadd.f32 0.0, %v1396
        %v1398 = vpop.f32.mrb[0].mxu0
        %1399 = vmatprep.mubr.bf16.mxu0 0
        %1400 = vmatmul.mubr.bf16.gmra.mrb[0].mxu0 %v1270
        %v1401 = vpop.f32.mrb[0].mxu0
        %v1402 = vadd.f32 0.0, %v1401
        %v1403 = vpop.f32.mrb[0].mxu0
        %v1404 = vpop.f32.mrb[0].mxu0
        %v1405 = vadd.f32 0.0, %v1404
        %v1406 = vpop.f32.mrb[0].mxu0
        %1407 = vmatprep.mubr.bf16.mxu0 0
        %1408 = vmatmul.mubr.bf16.gmra.mrb[0].mxu0 %v1274
        %v1409 = vpop.f32.mrb[0].mxu0
        %v1410 = vadd.f32 0.0, %v1409
        %v1411 = vpop.f32.mrb[0].mxu0
        %v1412 = vpop.f32.mrb[0].mxu0
        %v1413 = vadd.f32 0.0, %v1412
        %v1414 = vpop.f32.mrb[0].mxu0
        %1415 = vmatprep.mubr.bf16.mxu0 0
        %1416 = vmatmul.mubr.bf16.gmra.mrb[0].mxu0 %v1278
        %v1417 = vpop.f32.mrb[0].mxu0
        %v1418 = vadd.f32 0.0, %v1417
        %v1419 = vpop.f32.mrb[0].mxu0
        %v1420 = vpop.f32.mrb[0].mxu0
        %v1421 = vadd.f32 0.0, %v1420
        %v1422 = vpop.f32.mrb[0].mxu0
        %1423 = vmatprep.mubr.bf16.mxu0 0
        %1424 = vmatmul.mubr.bf16.gmra.mrb[0].mxu0 %v1287
        %v1425 = vpop.f32.mrb[0].mxu0
        %v1426 = vadd.f32 0.0, %v1425
        %v1427 = vpop.f32.mrb[0].mxu0
        %v1428 = vpop.f32.mrb[0].mxu0
        %v1429 = vadd.f32 0.0, %v1428
        %v1430 = vpop.f32.mrb[0].mxu0
        %1431 = vdwg.mxu0
        %v1432 = vadd.f32 %v1171, %v1378
        %v1433 = vadd.f32 %v1174, %v1381
        %v1434 = vadd.f32 %v1179, %v1386
        %v1435 = vadd.f32 %v1182, %v1389
        %v1436 = vadd.f32 %v1187, %v1394
        %v1437 = vadd.f32 %v1190, %v1397
        %v1438 = vadd.f32 %v1195, %v1402
        %v1439 = vadd.f32 %v1198, %v1405
        %v1440 = vadd.f32 %v1203, %v1410
        %v1441 = vadd.f32 %v1206, %v1413
        %v1442 = vadd.f32 %v1211, %v1418
        %v1443 = vadd.f32 %v1214, %v1421
        %v1444 = vadd.f32 %v1219, %v1426
        %v1445 = vadd.f32 %v1222, %v1429
        %v1446 = vld [vmem:[#allocation2 + $0x4] sm:$0x8]
        %v1447 = vld [vmem:[#allocation2 + $0x8] sm:$0xf]
        %v1448 = vld [vmem:[#allocation2 + $0xc] sm:$0xf]
        %v1449 = vld [vmem:[#allocation2 + $0x10] sm:$0xf]
        %v1450 = vld [vmem:[#allocation2 + $0x14] sm:$0xf]
        %v1451 = vld [vmem:[#allocation2 + $0x18] sm:$0xf]
        %v1452 = vld [vmem:[#allocation2 + $0x1c] sm:$0xf]
        %v1453 = vld [vmem:[#allocation2 + $0x20] sm:$0xf]
        %v1454 = vld [vmem:[#allocation2 + $0x24] sm:$0xf]
        %v1455 = vld [vmem:[#allocation2 + $0x28] sm:$0xf]
        %v1456 = vld [vmem:[#allocation2 + $0x2c] sm:$0xf]
        %v1457 = vld [vmem:[#allocation2 + $0x30] sm:$0xf]
        %v1458 = vld [vmem:[#allocation2 + $0x34] sm:$0xf]
        %v1459 = vld [vmem:[#allocation2 + $0x38] sm:$0xf]
        %v1460 = vld [vmem:[#allocation2 + $0x3c] sm:$0xf]
        %s1461 = scalar_lea.vmem [#allocation6], 192
        %v1462 = vld [vmem:[%s1461] sm:$0xf]
        %v1463 = vld [vmem:[%s1461 + $0x4] sm:$0xf]
        %v1464 = vld [vmem:[%s1461 + $0x8] sm:$0xf]
        %v1465 = vld [vmem:[%s1461 + $0xc] sm:$0xf]
        %v1466 = vld [vmem:[%s1461 + $0x10] sm:$0xf]
        %v1467 = vld [vmem:[%s1461 + $0x14] sm:$0xf]
        %v1468 = vld [vmem:[%s1461 + $0x18] sm:$0xf]
        %v1469 = vld [vmem:[%s1461 + $0x1c] sm:$0xf]
        %v1470 = vld [vmem:[%s1461 + $0x20] sm:$0xf]
        %v1471 = vld [vmem:[%s1461 + $0x24] sm:$0xf]
        %v1472 = vld [vmem:[%s1461 + $0x28] sm:$0xf]
        %v1473 = vld [vmem:[%s1461 + $0x2c] sm:$0xf]
        %v1474 = vld [vmem:[%s1461 + $0x30] sm:$0xf]
        %v1475 = vld [vmem:[%s1461 + $0x34] sm:$0xf]
        %v1476 = vld [vmem:[%s1461 + $0x38] sm:$0xf]
        %v1477 = vld [vmem:[%s1461 + $0x3c] sm:$0xf]
        %v1493 = vunpack.c.l.b16 %v1446
        %v1494 = vunpack.c.l.b16 %v1447
        %v1495 = vunpack.c.l.b16 %v1448
        %v1496 = vunpack.c.l.b16 %v1449
        %v1497 = vunpack.c.l.b16 %v1450
        %v1498 = vunpack.c.l.b16 %v1451
        %v1499 = vunpack.c.l.b16 %v1452
        %v1500 = vunpack.c.l.b16 %v1453
        %v1501 = vunpack.c.l.b16 %v1454
        %v1502 = vunpack.c.l.b16 %v1455
        %v1503 = vunpack.c.l.b16 %v1456
        %v1504 = vunpack.c.l.b16 %v1457
        %v1505 = vunpack.c.l.b16 %v1458
        %v1506 = vunpack.c.l.b16 %v1459
        %v1507 = vunpack.c.l.b16 %v1460
        %v1508 = vpack.c.b16 %v1494, %v1493
        %v1509 = vpack.c.b16 %v1496, %v1495
        %v1510 = vpack.c.b16 %v1498, %v1497
        %v1511 = vpack.c.b16 %v1500, %v1499
        %v1512 = vpack.c.b16 %v1502, %v1501
        %v1513 = vpack.c.b16 %v1504, %v1503
        %v1514 = vpack.c.b16 %v1506, %v1505
        %v1515 = vpack.c.b16 %v1507, %v1507
        %v1517 = vshrl.u32 %v1508, 16
        %v1519 = vrot.slane %v1517, 3
        %v1520 = vshll.u32 %v1508, 16
        %v1522 = vrot.slane %v1520, 4
        %v1523 = vor.u32 %v1519, %v1522
        %v1525 = vshrl.u32 %v1509, 16
        %v1527 = vrot.slane %v1525, 3
        %v1528 = vshll.u32 %v1509, 16
        %v1530 = vrot.slane %v1528, 4
        %v1531 = vor.u32 %v1527, %v1530
        %v1532 = vsel %vm1246, %v1523, %v1531
        %v1534 = vshrl.u32 %v1510, 16
        %v1536 = vrot.slane %v1534, 3
        %v1537 = vshll.u32 %v1510, 16
        %v1539 = vrot.slane %v1537, 4
        %v1540 = vor.u32 %v1536, %v1539
        %v1541 = vsel %vm1246, %v1531, %v1540
        %v1543 = vshrl.u32 %v1511, 16
        %v1545 = vrot.slane %v1543, 3
        %v1546 = vshll.u32 %v1511, 16
        %v1548 = vrot.slane %v1546, 4
        %v1549 = vor.u32 %v1545, %v1548
        %v1550 = vsel %vm1246, %v1540, %v1549
        %v1552 = vshrl.u32 %v1512, 16
        %v1554 = vrot.slane %v1552, 3
        %v1555 = vshll.u32 %v1512, 16
        %v1557 = vrot.slane %v1555, 4
        %v1558 = vor.u32 %v1554, %v1557
        %v1559 = vsel %vm1246, %v1549, %v1558
        %v1561 = vshrl.u32 %v1513, 16
        %v1563 = vrot.slane %v1561, 3
        %v1564 = vshll.u32 %v1513, 16
        %v1566 = vrot.slane %v1564, 4
        %v1567 = vor.u32 %v1563, %v1566
        %v1568 = vsel %vm1246, %v1558, %v1567
        %v1570 = vshrl.u32 %v1514, 16
        %v1572 = vrot.slane %v1570, 3
        %v1573 = vshll.u32 %v1514, 16
        %v1575 = vrot.slane %v1573, 4
        %v1576 = vor.u32 %v1572, %v1575
        %v1577 = vsel %vm1246, %v1567, %v1576
        %v1579 = vshrl.u32 %v1515, 16
        %v1581 = vrot.slane %v1579, 3
        %v1582 = vshll.u32 %v1515, 16
        %v1584 = vrot.slane %v1582, 4
        %v1585 = vor.u32 %v1581, %v1584
        %v1586 = vsel %vm1246, %v1576, %v1585
        %v1610 = vunpack.c.l.b16 %v1462
        %v1611 = vunpack.c.l.b16 %v1463
        %v1612 = vunpack.c.l.b16 %v1464
        %v1613 = vunpack.c.l.b16 %v1465
        %v1614 = vunpack.c.l.b16 %v1466
        %v1615 = vunpack.c.l.b16 %v1467
        %v1616 = vunpack.c.l.b16 %v1468
        %v1617 = vunpack.c.l.b16 %v1469
        %v1618 = vunpack.c.l.b16 %v1470
        %v1619 = vunpack.c.l.b16 %v1471
        %v1620 = vunpack.c.l.b16 %v1472
        %v1621 = vunpack.c.l.b16 %v1473
        %v1622 = vunpack.c.l.b16 %v1474
        %v1623 = vunpack.c.l.b16 %v1475
        %v1624 = vunpack.c.l.b16 %v1476
        %v1625 = vunpack.c.l.b16 %v1477
        %v1626 = vpack.c.b16 %v1611, %v1610
        %v1627 = vpack.c.b16 %v1613, %v1612
        %v1628 = vpack.c.b16 %v1615, %v1614
        %v1629 = vpack.c.b16 %v1617, %v1616
        %v1630 = vpack.c.b16 %v1619, %v1618
        %v1631 = vpack.c.b16 %v1621, %v1620
        %v1632 = vpack.c.b16 %v1623, %v1622
        %v1633 = vpack.c.b16 %v1625, %v1624
        %1642 = vmatprep.subr.bf16.mxu0 0
        %1643 = vmatpush1.bf16.msra.mxu0 %v1626
        %1644 = vmatprep.subr.bf16.mxu0 0
        %1645 = vmatpush1.bf16.msra.mxu0 %v1627
        %1646 = vmatprep.subr.bf16.mxu0 0
        %1647 = vmatpush1.bf16.msra.mxu0 %v1628
        %1648 = vmatprep.subr.bf16.mxu0 0
        %1649 = vmatpush1.bf16.msra.mxu0 %v1629
        %1650 = vmatprep.subr.bf16.mxu0 0
        %1651 = vmatpush1.bf16.msra.mxu0 %v1630
        %1652 = vmatprep.subr.bf16.mxu0 0
        %1653 = vmatpush1.bf16.msra.mxu0 %v1631
        %1654 = vmatprep.subr.bf16.mxu0 0
        %1655 = vmatpush1.bf16.msra.mxu0 %v1632
        %1656 = vmatprep.subr.bf16.mxu0 0
        %1657 = vmatpush1.bf16.msra.mxu0 %v1633
        %1658 = vmatprep.subr.bf16.mxu0 0
        %1659 = vmatpush1.bf16.msra.mxu0 0
        %1660 = vmatprep.subr.bf16.mxu0 0
        %1661 = vmatpush1.bf16.msra.mxu0 0
        %1662 = vmatprep.subr.bf16.mxu0 0
        %1663 = vmatpush1.bf16.msra.mxu0 0
        %1664 = vmatprep.subr.bf16.mxu0 0
        %1665 = vmatpush1.bf16.msra.mxu0 0
        %1666 = vmatprep.subr.bf16.mxu0 0
        %1667 = vmatpush1.bf16.msra.mxu0 0
        %1668 = vmatprep.subr.bf16.mxu0 0
        %1669 = vmatpush1.bf16.msra.mxu0 0
        %1670 = vmatprep.subr.bf16.mxu0 0
        %1671 = vmatpush1.bf16.msra.mxu0 0
        %1672 = vmatprep.subr.bf16.mxu0 0
        %1673 = vmatpush1.bf16.msra.mxu0 0
        %1674 = vmatprep.mubr.bf16.mxu0 0
        %1675 = vmatmul.mubr.bf16.gmra.mrb[0].mxu0 %v1532
        %v1676 = vpop.f32.mrb[0].mxu0
        %v1677 = vadd.f32 0.0, %v1676
        %v1678 = vpop.f32.mrb[0].mxu0
        %v1679 = vpop.f32.mrb[0].mxu0
        %v1680 = vadd.f32 0.0, %v1679
        %v1681 = vpop.f32.mrb[0].mxu0
        %1682 = vmatprep.mubr.bf16.mxu0 0
        %1683 = vmatmul.mubr.bf16.gmra.mrb[0].mxu0 %v1541
        %v1684 = vpop.f32.mrb[0].mxu0
        %v1685 = vadd.f32 0.0, %v1684
        %v1686 = vpop.f32.mrb[0].mxu0
        %v1687 = vpop.f32.mrb[0].mxu0
        %v1688 = vadd.f32 0.0, %v1687
        %v1689 = vpop.f32.mrb[0].mxu0
        %1690 = vmatprep.mubr.bf16.mxu0 0
        %1691 = vmatmul.mubr.bf16.gmra.mrb[0].mxu0 %v1550
        %v1692 = vpop.f32.mrb[0].mxu0
        %v1693 = vadd.f32 0.0, %v1692
        %v1694 = vpop.f32.mrb[0].mxu0
        %v1695 = vpop.f32.mrb[0].mxu0
        %v1696 = vadd.f32 0.0, %v1695
        %v1697 = vpop.f32.mrb[0].mxu0
        %1698 = vmatprep.mubr.bf16.mxu0 0
        %1699 = vmatmul.mubr.bf16.gmra.mrb[0].mxu0 %v1559
        %v1700 = vpop.f32.mrb[0].mxu0
        %v1701 = vadd.f32 0.0, %v1700
        %v1702 = vpop.f32.mrb[0].mxu0
        %v1703 = vpop.f32.mrb[0].mxu0
        %v1704 = vadd.f32 0.0, %v1703
        %v1705 = vpop.f32.mrb[0].mxu0
        %1706 = vmatprep.mubr.bf16.mxu0 0
        %1707 = vmatmul.mubr.bf16.gmra.mrb[0].mxu0 %v1568
        %v1708 = vpop.f32.mrb[0].mxu0
        %v1709 = vadd.f32 0.0, %v1708
        %v1710 = vpop.f32.mrb[0].mxu0
        %v1711 = vpop.f32.mrb[0].mxu0
        %v1712 = vadd.f32 0.0, %v1711
        %v1713 = vpop.f32.mrb[0].mxu0
        %1714 = vmatprep.mubr.bf16.mxu0 0
        %1715 = vmatmul.mubr.bf16.gmra.mrb[0].mxu0 %v1577
        %v1716 = vpop.f32.mrb[0].mxu0
        %v1717 = vadd.f32 0.0, %v1716
        %v1718 = vpop.f32.mrb[0].mxu0
        %v1719 = vpop.f32.mrb[0].mxu0
        %v1720 = vadd.f32 0.0, %v1719
        %v1721 = vpop.f32.mrb[0].mxu0
        %1722 = vmatprep.mubr.bf16.mxu0 0
        %1723 = vmatmul.mubr.bf16.gmra.mrb[0].mxu0 %v1586
        %v1724 = vpop.f32.mrb[0].mxu0
        %v1725 = vadd.f32 0.0, %v1724
        %v1726 = vpop.f32.mrb[0].mxu0
        %v1727 = vpop.f32.mrb[0].mxu0
        %v1728 = vadd.f32 0.0, %v1727
        %v1729 = vpop.f32.mrb[0].mxu0
        %1730 = vdwg.mxu0
        %v1731 = vadd.f32 %v1432, %v1677
        %v1732 = vadd.f32 %v1433, %v1680
        %v1733 = vadd.f32 %v1434, %v1685
        %v1734 = vadd.f32 %v1435, %v1688
        %v1735 = vadd.f32 %v1436, %v1693
        %v1736 = vadd.f32 %v1437, %v1696
        %v1737 = vadd.f32 %v1438, %v1701
        %v1738 = vadd.f32 %v1439, %v1704
        %v1739 = vadd.f32 %v1440, %v1709
        %v1740 = vadd.f32 %v1441, %v1712
        %v1741 = vadd.f32 %v1442, %v1717
        %v1742 = vadd.f32 %v1443, %v1720
        %v1743 = vadd.f32 %v1444, %v1725
        %v1744 = vadd.f32 %v1445, %v1728
        %s1745 = scalar_lea.vmem [#allocation6], 256
        %v1746 = vld [vmem:[%s1745] sm:$0xf]
        %v1747 = vld [vmem:[%s1745 + $0x4] sm:$0xf]
        %v1748 = vld [vmem:[%s1745 + $0x8] sm:$0xf]
        %v1749 = vld [vmem:[%s1745 + $0xc] sm:$0xf]
        %v1750 = vld [vmem:[%s1745 + $0x10] sm:$0xf]
        %v1751 = vld [vmem:[%s1745 + $0x14] sm:$0xf]
        %v1752 = vld [vmem:[%s1745 + $0x18] sm:$0xf]
        %v1753 = vld [vmem:[%s1745 + $0x1c] sm:$0xf]
        %v1754 = vld [vmem:[%s1745 + $0x20] sm:$0xf]
        %v1755 = vld [vmem:[%s1745 + $0x24] sm:$0xf]
        %v1756 = vld [vmem:[%s1745 + $0x28] sm:$0xf]
        %v1757 = vld [vmem:[%s1745 + $0x2c] sm:$0xf]
        %v1758 = vld [vmem:[%s1745 + $0x30] sm:$0xf]
        %v1759 = vld [vmem:[%s1745 + $0x34] sm:$0xf]
        %v1760 = vld [vmem:[%s1745 + $0x38] sm:$0xf]
        %v1761 = vld [vmem:[%s1745 + $0x3c] sm:$0xf]
        %v1762 = vpack.c.b16 %v1495, %v1494
        %v1763 = vpack.c.b16 %v1497, %v1496
        %v1764 = vpack.c.b16 %v1499, %v1498
        %v1765 = vpack.c.b16 %v1501, %v1500
        %v1766 = vpack.c.b16 %v1503, %v1502
        %v1767 = vpack.c.b16 %v1505, %v1504
        %v1768 = vpack.c.b16 %v1507, %v1506
        %v1792 = vunpack.c.l.b16 %v1746
        %v1793 = vunpack.c.l.b16 %v1747
        %v1794 = vunpack.c.l.b16 %v1748
        %v1795 = vunpack.c.l.b16 %v1749
        %v1796 = vunpack.c.l.b16 %v1750
        %v1797 = vunpack.c.l.b16 %v1751
        %v1798 = vunpack.c.l.b16 %v1752
        %v1799 = vunpack.c.l.b16 %v1753
        %v1800 = vunpack.c.l.b16 %v1754
        %v1801 = vunpack.c.l.b16 %v1755
        %v1802 = vunpack.c.l.b16 %v1756
        %v1803 = vunpack.c.l.b16 %v1757
        %v1804 = vunpack.c.l.b16 %v1758
        %v1805 = vunpack.c.l.b16 %v1759
        %v1806 = vunpack.c.l.b16 %v1760
        %v1807 = vunpack.c.l.b16 %v1761
        %v1808 = vpack.c.b16 %v1793, %v1792
        %v1809 = vpack.c.b16 %v1795, %v1794
        %v1810 = vpack.c.b16 %v1797, %v1796
        %v1811 = vpack.c.b16 %v1799, %v1798
        %v1812 = vpack.c.b16 %v1801, %v1800
        %v1813 = vpack.c.b16 %v1803, %v1802
        %v1814 = vpack.c.b16 %v1805, %v1804
        %v1815 = vpack.c.b16 %v1807, %v1806
        %1824 = vmatprep.subr.bf16.mxu0 0
        %1825 = vmatpush1.bf16.msra.mxu0 %v1808
        %1826 = vmatprep.subr.bf16.mxu0 0
        %1827 = vmatpush1.bf16.msra.mxu0 %v1809
        %1828 = vmatprep.subr.bf16.mxu0 0
        %1829 = vmatpush1.bf16.msra.mxu0 %v1810
        %1830 = vmatprep.subr.bf16.mxu0 0
        %1831 = vmatpush1.bf16.msra.mxu0 %v1811
        %1832 = vmatprep.subr.bf16.mxu0 0
        %1833 = vmatpush1.bf16.msra.mxu0 %v1812
        %1834 = vmatprep.subr.bf16.mxu0 0
        %1835 = vmatpush1.bf16.msra.mxu0 %v1813
        %1836 = vmatprep.subr.bf16.mxu0 0
        %1837 = vmatpush1.bf16.msra.mxu0 %v1814
        %1838 = vmatprep.subr.bf16.mxu0 0
        %1839 = vmatpush1.bf16.msra.mxu0 %v1815
        %1840 = vmatprep.subr.bf16.mxu0 0
        %1841 = vmatpush1.bf16.msra.mxu0 0
        %1842 = vmatprep.subr.bf16.mxu0 0
        %1843 = vmatpush1.bf16.msra.mxu0 0
        %1844 = vmatprep.subr.bf16.mxu0 0
        %1845 = vmatpush1.bf16.msra.mxu0 0
        %1846 = vmatprep.subr.bf16.mxu0 0
        %1847 = vmatpush1.bf16.msra.mxu0 0
        %1848 = vmatprep.subr.bf16.mxu0 0
        %1849 = vmatpush1.bf16.msra.mxu0 0
        %1850 = vmatprep.subr.bf16.mxu0 0
        %1851 = vmatpush1.bf16.msra.mxu0 0
        %1852 = vmatprep.subr.bf16.mxu0 0
        %1853 = vmatpush1.bf16.msra.mxu0 0
        %1854 = vmatprep.subr.bf16.mxu0 0
        %1855 = vmatpush1.bf16.msra.mxu0 0
        %1856 = vmatprep.mubr.bf16.mxu0 0
        %1857 = vmatmul.mubr.bf16.gmra.mrb[0].mxu0 %v1762
        %v1858 = vpop.f32.mrb[0].mxu0
        %v1859 = vadd.f32 0.0, %v1858
        %v1860 = vpop.f32.mrb[0].mxu0
        %v1861 = vpop.f32.mrb[0].mxu0
        %v1862 = vadd.f32 0.0, %v1861
        %v1863 = vpop.f32.mrb[0].mxu0
        %1864 = vmatprep.mubr.bf16.mxu0 0
        %1865 = vmatmul.mubr.bf16.gmra.mrb[0].mxu0 %v1763
        %v1866 = vpop.f32.mrb[0].mxu0
        %v1867 = vadd.f32 0.0, %v1866
        %v1868 = vpop.f32.mrb[0].mxu0
        %v1869 = vpop.f32.mrb[0].mxu0
        %v1870 = vadd.f32 0.0, %v1869
        %v1871 = vpop.f32.mrb[0].mxu0
        %1872 = vmatprep.mubr.bf16.mxu0 0
        %1873 = vmatmul.mubr.bf16.gmra.mrb[0].mxu0 %v1764
        %v1874 = vpop.f32.mrb[0].mxu0
        %v1875 = vadd.f32 0.0, %v1874
        %v1876 = vpop.f32.mrb[0].mxu0
        %v1877 = vpop.f32.mrb[0].mxu0
        %v1878 = vadd.f32 0.0, %v1877
        %v1879 = vpop.f32.mrb[0].mxu0
        %1880 = vmatprep.mubr.bf16.mxu0 0
        %1881 = vmatmul.mubr.bf16.gmra.mrb[0].mxu0 %v1765
        %v1882 = vpop.f32.mrb[0].mxu0
        %v1883 = vadd.f32 0.0, %v1882
        %v1884 = vpop.f32.mrb[0].mxu0
        %v1885 = vpop.f32.mrb[0].mxu0
        %v1886 = vadd.f32 0.0, %v1885
        %v1887 = vpop.f32.mrb[0].mxu0
        %1888 = vmatprep.mubr.bf16.mxu0 0
        %1889 = vmatmul.mubr.bf16.gmra.mrb[0].mxu0 %v1766
        %v1890 = vpop.f32.mrb[0].mxu0
        %v1891 = vadd.f32 0.0, %v1890
        %v1892 = vpop.f32.mrb[0].mxu0
        %v1893 = vpop.f32.mrb[0].mxu0
        %v1894 = vadd.f32 0.0, %v1893
        %v1895 = vpop.f32.mrb[0].mxu0
        %1896 = vmatprep.mubr.bf16.mxu0 0
        %1897 = vmatmul.mubr.bf16.gmra.mrb[0].mxu0 %v1767
        %v1898 = vpop.f32.mrb[0].mxu0
        %v1899 = vadd.f32 0.0, %v1898
        %v1900 = vpop.f32.mrb[0].mxu0
        %v1901 = vpop.f32.mrb[0].mxu0
        %v1902 = vadd.f32 0.0, %v1901
        %v1903 = vpop.f32.mrb[0].mxu0
        %1904 = vmatprep.mubr.bf16.mxu0 0
        %1905 = vmatmul.mubr.bf16.gmra.mrb[0].mxu0 %v1768
        %v1906 = vpop.f32.mrb[0].mxu0
        %v1907 = vadd.f32 0.0, %v1906
        %v1908 = vpop.f32.mrb[0].mxu0
        %v1909 = vpop.f32.mrb[0].mxu0
        %v1910 = vadd.f32 0.0, %v1909
        %v1911 = vpop.f32.mrb[0].mxu0
        %1912 = vdwg.mxu0
        %v1913 = vadd.f32 %v1731, %v1859
        %v1914 = vadd.f32 %v1732, %v1862
        %v1915 = vadd.f32 %v1733, %v1867
        %v1916 = vadd.f32 %v1734, %v1870
        %v1917 = vadd.f32 %v1735, %v1875
        %v1918 = vadd.f32 %v1736, %v1878
        %v1919 = vadd.f32 %v1737, %v1883
        %v1920 = vadd.f32 %v1738, %v1886
        %v1921 = vadd.f32 %v1739, %v1891
        %v1922 = vadd.f32 %v1740, %v1894
        %v1923 = vadd.f32 %v1741, %v1899
        %v1924 = vadd.f32 %v1742, %v1902
        %v1925 = vadd.f32 %v1743, %v1907
        %v1926 = vadd.f32 %v1744, %v1910
        %v1927 = vld [vmem:[#allocation2 + $0x8] sm:$0xf]
        %v1928 = vld [vmem:[#allocation2 + $0xc] sm:$0xf]
        %v1929 = vld [vmem:[#allocation2 + $0x10] sm:$0xf]
        %v1930 = vld [vmem:[#allocation2 + $0x14] sm:$0xf]
        %v1931 = vld [vmem:[#allocation2 + $0x18] sm:$0xf]
        %v1932 = vld [vmem:[#allocation2 + $0x1c] sm:$0xf]
        %v1933 = vld [vmem:[#allocation2 + $0x20] sm:$0xf]
        %v1934 = vld [vmem:[#allocation2 + $0x24] sm:$0xf]
        %v1935 = vld [vmem:[#allocation2 + $0x28] sm:$0xf]
        %v1936 = vld [vmem:[#allocation2 + $0x2c] sm:$0xf]
        %v1937 = vld [vmem:[#allocation2 + $0x30] sm:$0xf]
        %v1938 = vld [vmem:[#allocation2 + $0x34] sm:$0xf]
        %v1939 = vld [vmem:[#allocation2 + $0x38] sm:$0xf]
        %v1940 = vld [vmem:[#allocation2 + $0x3c] sm:$0xf]
        %v1941 = vld [vmem:[#allocation2 + $0x40] sm:$0x1]
        %s1942 = scalar_lea.vmem [#allocation6], 320
        %v1943 = vld [vmem:[%s1942] sm:$0xf]
        %v1944 = vld [vmem:[%s1942 + $0x4] sm:$0xf]
        %v1945 = vld [vmem:[%s1942 + $0x8] sm:$0xf]
        %v1946 = vld [vmem:[%s1942 + $0xc] sm:$0xf]
        %v1947 = vld [vmem:[%s1942 + $0x10] sm:$0xf]
        %v1948 = vld [vmem:[%s1942 + $0x14] sm:$0xf]
        %v1949 = vld [vmem:[%s1942 + $0x18] sm:$0xf]
        %v1950 = vld [vmem:[%s1942 + $0x1c] sm:$0xf]
        %v1951 = vld [vmem:[%s1942 + $0x20] sm:$0xf]
        %v1952 = vld [vmem:[%s1942 + $0x24] sm:$0xf]
        %v1953 = vld [vmem:[%s1942 + $0x28] sm:$0xf]
        %v1954 = vld [vmem:[%s1942 + $0x2c] sm:$0xf]
        %v1955 = vld [vmem:[%s1942 + $0x30] sm:$0xf]
        %v1956 = vld [vmem:[%s1942 + $0x34] sm:$0xf]
        %v1957 = vld [vmem:[%s1942 + $0x38] sm:$0xf]
        %v1958 = vld [vmem:[%s1942 + $0x3c] sm:$0xf]
        %v1974 = vunpack.c.l.b16 %v1927
        %v1975 = vunpack.c.l.b16 %v1928
        %v1976 = vunpack.c.l.b16 %v1929
        %v1977 = vunpack.c.l.b16 %v1930
        %v1978 = vunpack.c.l.b16 %v1931
        %v1979 = vunpack.c.l.b16 %v1932
        %v1980 = vunpack.c.l.b16 %v1933
        %v1981 = vunpack.c.l.b16 %v1934
        %v1982 = vunpack.c.l.b16 %v1935
        %v1983 = vunpack.c.l.b16 %v1936
        %v1984 = vunpack.c.l.b16 %v1937
        %v1985 = vunpack.c.l.b16 %v1938
        %v1986 = vunpack.c.l.b16 %v1939
        %v1987 = vunpack.c.l.b16 %v1940
        %v1988 = vunpack.c.l.b16 %v1941
        %v1989 = vpack.c.b16 %v1975, %v1974
        %v1990 = vpack.c.b16 %v1977, %v1976
        %v1991 = vpack.c.b16 %v1979, %v1978
        %v1992 = vpack.c.b16 %v1981, %v1980
        %v1993 = vpack.c.b16 %v1983, %v1982
        %v1994 = vpack.c.b16 %v1985, %v1984
        %v1995 = vpack.c.b16 %v1987, %v1986
        %v1996 = vpack.c.b16 %v1988, %v1988
        %vm1997 = vsmask.f32 7424
        %v1999 = vshrl.u32 %v1989, 16
        %v2001 = vshll.u32 %v1989, 16
        %v2003 = vrot.slane %v2001, 1
        %v2004 = vor.u32 %v1999, %v2003
        %v2006 = vshll.u32 %v1990, 16
        %v2008 = vrot.slane %v2006, 1
        %v2009 = vsel %vm1997, %v2004, %v2008
        %v2010 = vshrl.u32 %v1990, 16
        %v2012 = vor.u32 %v2010, %v2008
        %v2014 = vshll.u32 %v1991, 16
        %v2016 = vrot.slane %v2014, 1
        %v2017 = vsel %vm1997, %v2012, %v2016
        %v2018 = vshrl.u32 %v1991, 16
        %v2020 = vor.u32 %v2018, %v2016
        %v2022 = vshll.u32 %v1992, 16
        %v2024 = vrot.slane %v2022, 1
        %v2025 = vsel %vm1997, %v2020, %v2024
        %v2026 = vshrl.u32 %v1992, 16
        %v2028 = vor.u32 %v2026, %v2024
        %v2030 = vshll.u32 %v1993, 16
        %v2032 = vrot.slane %v2030, 1
        %v2033 = vsel %vm1997, %v2028, %v2032
        %v2034 = vshrl.u32 %v1993, 16
        %v2036 = vor.u32 %v2034, %v2032
        %v2038 = vshll.u32 %v1994, 16
        %v2040 = vrot.slane %v2038, 1
        %v2041 = vsel %vm1997, %v2036, %v2040
        %v2042 = vshrl.u32 %v1994, 16
        %v2044 = vor.u32 %v2042, %v2040
        %v2046 = vshll.u32 %v1995, 16
        %v2048 = vrot.slane %v2046, 1
        %v2049 = vsel %vm1997, %v2044, %v2048
        %v2050 = vshrl.u32 %v1995, 16
        %v2052 = vor.u32 %v2050, %v2048
        %v2054 = vshll.u32 %v1996, 16
        %v2056 = vrot.slane %v2054, 1
        %v2057 = vsel %vm1997, %v2052, %v2056
        %v2081 = vunpack.c.l.b16 %v1943
        %v2082 = vunpack.c.l.b16 %v1944
        %v2083 = vunpack.c.l.b16 %v1945
        %v2084 = vunpack.c.l.b16 %v1946
        %v2085 = vunpack.c.l.b16 %v1947
        %v2086 = vunpack.c.l.b16 %v1948
        %v2087 = vunpack.c.l.b16 %v1949
        %v2088 = vunpack.c.l.b16 %v1950
        %v2089 = vunpack.c.l.b16 %v1951
        %v2090 = vunpack.c.l.b16 %v1952
        %v2091 = vunpack.c.l.b16 %v1953
        %v2092 = vunpack.c.l.b16 %v1954
        %v2093 = vunpack.c.l.b16 %v1955
        %v2094 = vunpack.c.l.b16 %v1956
        %v2095 = vunpack.c.l.b16 %v1957
        %v2096 = vunpack.c.l.b16 %v1958
        %v2097 = vpack.c.b16 %v2082, %v2081
        %v2098 = vpack.c.b16 %v2084, %v2083
        %v2099 = vpack.c.b16 %v2086, %v2085
        %v2100 = vpack.c.b16 %v2088, %v2087
        %v2101 = vpack.c.b16 %v2090, %v2089
        %v2102 = vpack.c.b16 %v2092, %v2091
        %v2103 = vpack.c.b16 %v2094, %v2093
        %v2104 = vpack.c.b16 %v2096, %v2095
        %2113 = vmatprep.subr.bf16.mxu0 0
        %2114 = vmatpush1.bf16.msra.mxu0 %v2097
        %2115 = vmatprep.subr.bf16.mxu0 0
        %2116 = vmatpush1.bf16.msra.mxu0 %v2098
        %2117 = vmatprep.subr.bf16.mxu0 0
        %2118 = vmatpush1.bf16.msra.mxu0 %v2099
        %2119 = vmatprep.subr.bf16.mxu0 0
        %2120 = vmatpush1.bf16.msra.mxu0 %v2100
        %2121 = vmatprep.subr.bf16.mxu0 0
        %2122 = vmatpush1.bf16.msra.mxu0 %v2101
        %2123 = vmatprep.subr.bf16.mxu0 0
        %2124 = vmatpush1.bf16.msra.mxu0 %v2102
        %2125 = vmatprep.subr.bf16.mxu0 0
        %2126 = vmatpush1.bf16.msra.mxu0 %v2103
        %2127 = vmatprep.subr.bf16.mxu0 0
        %2128 = vmatpush1.bf16.msra.mxu0 %v2104
        %2129 = vmatprep.subr.bf16.mxu0 0
        %2130 = vmatpush1.bf16.msra.mxu0 0
        %2131 = vmatprep.subr.bf16.mxu0 0
        %2132 = vmatpush1.bf16.msra.mxu0 0
        %2133 = vmatprep.subr.bf16.mxu0 0
        %2134 = vmatpush1.bf16.msra.mxu0 0
        %2135 = vmatprep.subr.bf16.mxu0 0
        %2136 = vmatpush1.bf16.msra.mxu0 0
        %2137 = vmatprep.subr.bf16.mxu0 0
        %2138 = vmatpush1.bf16.msra.mxu0 0
        %2139 = vmatprep.subr.bf16.mxu0 0
        %2140 = vmatpush1.bf16.msra.mxu0 0
        %2141 = vmatprep.subr.bf16.mxu0 0
        %2142 = vmatpush1.bf16.msra.mxu0 0
        %2143 = vmatprep.subr.bf16.mxu0 0
        %2144 = vmatpush1.bf16.msra.mxu0 0
        %2145 = vmatprep.mubr.bf16.mxu0 0
        %2146 = vmatmul.mubr.bf16.gmra.mrb[0].mxu0 %v2009
        %v2147 = vpop.f32.mrb[0].mxu0
        %v2148 = vadd.f32 0.0, %v2147
        %v2149 = vpop.f32.mrb[0].mxu0
        %v2150 = vpop.f32.mrb[0].mxu0
        %v2151 = vadd.f32 0.0, %v2150
        %v2152 = vpop.f32.mrb[0].mxu0
        %2153 = vmatprep.mubr.bf16.mxu0 0
        %2154 = vmatmul.mubr.bf16.gmra.mrb[0].mxu0 %v2017
        %v2155 = vpop.f32.mrb[0].mxu0
        %v2156 = vadd.f32 0.0, %v2155
        %v2157 = vpop.f32.mrb[0].mxu0
        %v2158 = vpop.f32.mrb[0].mxu0
        %v2159 = vadd.f32 0.0, %v2158
        %v2160 = vpop.f32.mrb[0].mxu0
        %2161 = vmatprep.mubr.bf16.mxu0 0
        %2162 = vmatmul.mubr.bf16.gmra.mrb[0].mxu0 %v2025
        %v2163 = vpop.f32.mrb[0].mxu0
        %v2164 = vadd.f32 0.0, %v2163
        %v2165 = vpop.f32.mrb[0].mxu0
        %v2166 = vpop.f32.mrb[0].mxu0
        %v2167 = vadd.f32 0.0, %v2166
        %v2168 = vpop.f32.mrb[0].mxu0
        %2169 = vmatprep.mubr.bf16.mxu0 0
        %2170 = vmatmul.mubr.bf16.gmra.mrb[0].mxu0 %v2033
        %v2171 = vpop.f32.mrb[0].mxu0
        %v2172 = vadd.f32 0.0, %v2171
        %v2173 = vpop.f32.mrb[0].mxu0
        %v2174 = vpop.f32.mrb[0].mxu0
        %v2175 = vadd.f32 0.0, %v2174
        %v2176 = vpop.f32.mrb[0].mxu0
        %2177 = vmatprep.mubr.bf16.mxu0 0
        %2178 = vmatmul.mubr.bf16.gmra.mrb[0].mxu0 %v2041
        %v2179 = vpop.f32.mrb[0].mxu0
        %v2180 = vadd.f32 0.0, %v2179
        %v2181 = vpop.f32.mrb[0].mxu0
        %v2182 = vpop.f32.mrb[0].mxu0
        %v2183 = vadd.f32 0.0, %v2182
        %v2184 = vpop.f32.mrb[0].mxu0
        %2185 = vmatprep.mubr.bf16.mxu0 0
        %2186 = vmatmul.mubr.bf16.gmra.mrb[0].mxu0 %v2049
        %v2187 = vpop.f32.mrb[0].mxu0
        %v2188 = vadd.f32 0.0, %v2187
        %v2189 = vpop.f32.mrb[0].mxu0
        %v2190 = vpop.f32.mrb[0].mxu0
        %v2191 = vadd.f32 0.0, %v2190
        %v2192 = vpop.f32.mrb[0].mxu0
        %2193 = vmatprep.mubr.bf16.mxu0 0
        %2194 = vmatmul.mubr.bf16.gmra.mrb[0].mxu0 %v2057
        %v2195 = vpop.f32.mrb[0].mxu0
        %v2196 = vadd.f32 0.0, %v2195
        %v2197 = vpop.f32.mrb[0].mxu0
        %v2198 = vpop.f32.mrb[0].mxu0
        %v2199 = vadd.f32 0.0, %v2198
        %v2200 = vpop.f32.mrb[0].mxu0
        %2201 = vdwg.mxu0
        %v2202 = vadd.f32 %v1913, %v2148
        %v2203 = vadd.f32 %v1914, %v2151
        %v2204 = vadd.f32 %v1915, %v2156
        %v2205 = vadd.f32 %v1916, %v2159
        %v2206 = vadd.f32 %v1917, %v2164
        %v2207 = vadd.f32 %v1918, %v2167
        %v2208 = vadd.f32 %v1919, %v2172
        %v2209 = vadd.f32 %v1920, %v2175
        %v2210 = vadd.f32 %v1921, %v2180
        %v2211 = vadd.f32 %v1922, %v2183
        %v2212 = vadd.f32 %v1923, %v2188
        %v2213 = vadd.f32 %v1924, %v2191
        %v2214 = vadd.f32 %v1925, %v2196
        %v2215 = vadd.f32 %v1926, %v2199
        %v2216 = vld [vmem:[#allocation2 + $0xc] sm:$0xf]
        %v2217 = vld [vmem:[#allocation2 + $0x10] sm:$0xf]
        %v2218 = vld [vmem:[#allocation2 + $0x14] sm:$0xf]
        %v2219 = vld [vmem:[#allocation2 + $0x18] sm:$0xf]
        %v2220 = vld [vmem:[#allocation2 + $0x1c] sm:$0xf]
        %v2221 = vld [vmem:[#allocation2 + $0x20] sm:$0xf]
        %v2222 = vld [vmem:[#allocation2 + $0x24] sm:$0xf]
        %v2223 = vld [vmem:[#allocation2 + $0x28] sm:$0xf]
        %v2224 = vld [vmem:[#allocation2 + $0x2c] sm:$0xf]
        %v2225 = vld [vmem:[#allocation2 + $0x30] sm:$0xf]
        %v2226 = vld [vmem:[#allocation2 + $0x34] sm:$0xf]
        %v2227 = vld [vmem:[#allocation2 + $0x38] sm:$0xf]
        %v2228 = vld [vmem:[#allocation2 + $0x3c] sm:$0xf]
        %v2229 = vld [vmem:[#allocation2 + $0x40] sm:$0xf]
        %v2230 = vld [vmem:[#allocation2 + $0x44] sm:$0x1]
        %s2231 = scalar_lea.vmem [#allocation6], 384
        %v2232 = vld [vmem:[%s2231] sm:$0xf]
        %v2233 = vld [vmem:[%s2231 + $0x4] sm:$0xf]
        %v2234 = vld [vmem:[%s2231 + $0x8] sm:$0xf]
        %v2235 = vld [vmem:[%s2231 + $0xc] sm:$0xf]
        %v2236 = vld [vmem:[%s2231 + $0x10] sm:$0xf]
        %v2237 = vld [vmem:[%s2231 + $0x14] sm:$0xf]
        %v2238 = vld [vmem:[%s2231 + $0x18] sm:$0xf]
        %v2239 = vld [vmem:[%s2231 + $0x1c] sm:$0xf]
        %v2240 = vld [vmem:[%s2231 + $0x20] sm:$0xf]
        %v2241 = vld [vmem:[%s2231 + $0x24] sm:$0xf]
        %v2242 = vld [vmem:[%s2231 + $0x28] sm:$0xf]
        %v2243 = vld [vmem:[%s2231 + $0x2c] sm:$0xf]
        %v2244 = vld [vmem:[%s2231 + $0x30] sm:$0xf]
        %v2245 = vld [vmem:[%s2231 + $0x34] sm:$0xf]
        %v2246 = vld [vmem:[%s2231 + $0x38] sm:$0xf]
        %v2247 = vld [vmem:[%s2231 + $0x3c] sm:$0xf]
        %v2263 = vunpack.c.l.b16 %v2216
        %v2264 = vunpack.c.l.b16 %v2217
        %v2265 = vunpack.c.l.b16 %v2218
        %v2266 = vunpack.c.l.b16 %v2219
        %v2267 = vunpack.c.l.b16 %v2220
        %v2268 = vunpack.c.l.b16 %v2221
        %v2269 = vunpack.c.l.b16 %v2222
        %v2270 = vunpack.c.l.b16 %v2223
        %v2271 = vunpack.c.l.b16 %v2224
        %v2272 = vunpack.c.l.b16 %v2225
        %v2273 = vunpack.c.l.b16 %v2226
        %v2274 = vunpack.c.l.b16 %v2227
        %v2275 = vunpack.c.l.b16 %v2228
        %v2276 = vunpack.c.l.b16 %v2229
        %v2277 = vunpack.c.l.b16 %v2230
        %v2278 = vpack.c.b16 %v2264, %v2263
        %v2279 = vpack.c.b16 %v2266, %v2265
        %v2280 = vpack.c.b16 %v2268, %v2267
        %v2281 = vpack.c.b16 %v2270, %v2269
        %v2282 = vpack.c.b16 %v2272, %v2271
        %v2283 = vpack.c.b16 %v2274, %v2273
        %v2284 = vpack.c.b16 %v2276, %v2275
        %v2285 = vpack.c.b16 %v2277, %v2277
        %v2287 = vshrl.u32 %v2278, 16
        %v2289 = vshll.u32 %v2278, 16
        %v2291 = vrot.slane %v2289, 1
        %v2292 = vor.u32 %v2287, %v2291
        %v2294 = vshll.u32 %v2279, 16
        %v2296 = vrot.slane %v2294, 1
        %v2297 = vsel %vm1997, %v2292, %v2296
        %v2298 = vshrl.u32 %v2279, 16
        %v2300 = vor.u32 %v2298, %v2296
        %v2302 = vshll.u32 %v2280, 16
        %v2304 = vrot.slane %v2302, 1
        %v2305 = vsel %vm1997, %v2300, %v2304
        %v2306 = vshrl.u32 %v2280, 16
        %v2308 = vor.u32 %v2306, %v2304
        %v2310 = vshll.u32 %v2281, 16
        %v2312 = vrot.slane %v2310, 1
        %v2313 = vsel %vm1997, %v2308, %v2312
        %v2314 = vshrl.u32 %v2281, 16
        %v2316 = vor.u32 %v2314, %v2312
        %v2318 = vshll.u32 %v2282, 16
        %v2320 = vrot.slane %v2318, 1
        %v2321 = vsel %vm1997, %v2316, %v2320
        %v2322 = vshrl.u32 %v2282, 16
        %v2324 = vor.u32 %v2322, %v2320
        %v2326 = vshll.u32 %v2283, 16
        %v2328 = vrot.slane %v2326, 1
        %v2329 = vsel %vm1997, %v2324, %v2328
        %v2330 = vshrl.u32 %v2283, 16
        %v2332 = vor.u32 %v2330, %v2328
        %v2334 = vshll.u32 %v2284, 16
        %v2336 = vrot.slane %v2334, 1
        %v2337 = vsel %vm1997, %v2332, %v2336
        %v2338 = vshrl.u32 %v2284, 16
        %v2340 = vor.u32 %v2338, %v2336
        %v2342 = vshll.u32 %v2285, 16
        %v2344 = vrot.slane %v2342, 1
        %v2345 = vsel %vm1997, %v2340, %v2344
        %v2369 = vunpack.c.l.b16 %v2232
        %v2370 = vunpack.c.l.b16 %v2233
        %v2371 = vunpack.c.l.b16 %v2234
        %v2372 = vunpack.c.l.b16 %v2235
        %v2373 = vunpack.c.l.b16 %v2236
        %v2374 = vunpack.c.l.b16 %v2237
        %v2375 = vunpack.c.l.b16 %v2238
        %v2376 = vunpack.c.l.b16 %v2239
        %v2377 = vunpack.c.l.b16 %v2240
        %v2378 = vunpack.c.l.b16 %v2241
        %v2379 = vunpack.c.l.b16 %v2242
        %v2380 = vunpack.c.l.b16 %v2243
        %v2381 = vunpack.c.l.b16 %v2244
        %v2382 = vunpack.c.l.b16 %v2245
        %v2383 = vunpack.c.l.b16 %v2246
        %v2384 = vunpack.c.l.b16 %v2247
        %v2385 = vpack.c.b16 %v2370, %v2369
        %v2386 = vpack.c.b16 %v2372, %v2371
        %v2387 = vpack.c.b16 %v2374, %v2373
        %v2388 = vpack.c.b16 %v2376, %v2375
        %v2389 = vpack.c.b16 %v2378, %v2377
        %v2390 = vpack.c.b16 %v2380, %v2379
        %v2391 = vpack.c.b16 %v2382, %v2381
        %v2392 = vpack.c.b16 %v2384, %v2383
        %2401 = vmatprep.subr.bf16.mxu0 0
        %2402 = vmatpush1.bf16.msra.mxu0 %v2385
        %2403 = vmatprep.subr.bf16.mxu0 0
        %2404 = vmatpush1.bf16.msra.mxu0 %v2386
        %2405 = vmatprep.subr.bf16.mxu0 0
        %2406 = vmatpush1.bf16.msra.mxu0 %v2387
        %2407 = vmatprep.subr.bf16.mxu0 0
        %2408 = vmatpush1.bf16.msra.mxu0 %v2388
        %2409 = vmatprep.subr.bf16.mxu0 0
        %2410 = vmatpush1.bf16.msra.mxu0 %v2389
        %2411 = vmatprep.subr.bf16.mxu0 0
        %2412 = vmatpush1.bf16.msra.mxu0 %v2390
        %2413 = vmatprep.subr.bf16.mxu0 0
        %2414 = vmatpush1.bf16.msra.mxu0 %v2391
        %2415 = vmatprep.subr.bf16.mxu0 0
        %2416 = vmatpush1.bf16.msra.mxu0 %v2392
        %2417 = vmatprep.subr.bf16.mxu0 0
        %2418 = vmatpush1.bf16.msra.mxu0 0
        %2419 = vmatprep.subr.bf16.mxu0 0
        %2420 = vmatpush1.bf16.msra.mxu0 0
        %2421 = vmatprep.subr.bf16.mxu0 0
        %2422 = vmatpush1.bf16.msra.mxu0 0
        %2423 = vmatprep.subr.bf16.mxu0 0
        %2424 = vmatpush1.bf16.msra.mxu0 0
        %2425 = vmatprep.subr.bf16.mxu0 0
        %2426 = vmatpush1.bf16.msra.mxu0 0
        %2427 = vmatprep.subr.bf16.mxu0 0
        %2428 = vmatpush1.bf16.msra.mxu0 0
        %2429 = vmatprep.subr.bf16.mxu0 0
        %2430 = vmatpush1.bf16.msra.mxu0 0
        %2431 = vmatprep.subr.bf16.mxu0 0
        %2432 = vmatpush1.bf16.msra.mxu0 0
        %2433 = vmatprep.mubr.bf16.mxu0 0
        %2434 = vmatmul.mubr.bf16.gmra.mrb[0].mxu0 %v2297
        %v2435 = vpop.f32.mrb[0].mxu0
        %v2436 = vadd.f32 0.0, %v2435
        %v2437 = vpop.f32.mrb[0].mxu0
        %v2438 = vpop.f32.mrb[0].mxu0
        %v2439 = vadd.f32 0.0, %v2438
        %v2440 = vpop.f32.mrb[0].mxu0
        %2441 = vmatprep.mubr.bf16.mxu0 0
        %2442 = vmatmul.mubr.bf16.gmra.mrb[0].mxu0 %v2305
        %v2443 = vpop.f32.mrb[0].mxu0
        %v2444 = vadd.f32 0.0, %v2443
        %v2445 = vpop.f32.mrb[0].mxu0
        %v2446 = vpop.f32.mrb[0].mxu0
        %v2447 = vadd.f32 0.0, %v2446
        %v2448 = vpop.f32.mrb[0].mxu0
        %2449 = vmatprep.mubr.bf16.mxu0 0
        %2450 = vmatmul.mubr.bf16.gmra.mrb[0].mxu0 %v2313
        %v2451 = vpop.f32.mrb[0].mxu0
        %v2452 = vadd.f32 0.0, %v2451
        %v2453 = vpop.f32.mrb[0].mxu0
        %v2454 = vpop.f32.mrb[0].mxu0
        %v2455 = vadd.f32 0.0, %v2454
        %v2456 = vpop.f32.mrb[0].mxu0
        %2457 = vmatprep.mubr.bf16.mxu0 0
        %2458 = vmatmul.mubr.bf16.gmra.mrb[0].mxu0 %v2321
        %v2459 = vpop.f32.mrb[0].mxu0
        %v2460 = vadd.f32 0.0, %v2459
        %v2461 = vpop.f32.mrb[0].mxu0
        %v2462 = vpop.f32.mrb[0].mxu0
        %v2463 = vadd.f32 0.0, %v2462
        %v2464 = vpop.f32.mrb[0].mxu0
        %2465 = vmatprep.mubr.bf16.mxu0 0
        %2466 = vmatmul.mubr.bf16.gmra.mrb[0].mxu0 %v2329
        %v2467 = vpop.f32.mrb[0].mxu0
        %v2468 = vadd.f32 0.0, %v2467
        %v2469 = vpop.f32.mrb[0].mxu0
        %v2470 = vpop.f32.mrb[0].mxu0
        %v2471 = vadd.f32 0.0, %v2470
        %v2472 = vpop.f32.mrb[0].mxu0
        %2473 = vmatprep.mubr.bf16.mxu0 0
        %2474 = vmatmul.mubr.bf16.gmra.mrb[0].mxu0 %v2337
        %v2475 = vpop.f32.mrb[0].mxu0
        %v2476 = vadd.f32 0.0, %v2475
        %v2477 = vpop.f32.mrb[0].mxu0
        %v2478 = vpop.f32.mrb[0].mxu0
        %v2479 = vadd.f32 0.0, %v2478
        %v2480 = vpop.f32.mrb[0].mxu0
        %2481 = vmatprep.mubr.bf16.mxu0 0
        %2482 = vmatmul.mubr.bf16.gmra.mrb[0].mxu0 %v2345
        %v2483 = vpop.f32.mrb[0].mxu0
        %v2484 = vadd.f32 0.0, %v2483
        %v2485 = vpop.f32.mrb[0].mxu0
        %v2486 = vpop.f32.mrb[0].mxu0
        %v2487 = vadd.f32 0.0, %v2486
        %v2488 = vpop.f32.mrb[0].mxu0
        %2489 = vdwg.mxu0
        %v2490 = vadd.f32 %v2202, %v2436
        %v2491 = vadd.f32 %v2203, %v2439
        %v2492 = vadd.f32 %v2204, %v2444
        %v2493 = vadd.f32 %v2205, %v2447
        %v2494 = vadd.f32 %v2206, %v2452
        %v2495 = vadd.f32 %v2207, %v2455
        %v2496 = vadd.f32 %v2208, %v2460
        %v2497 = vadd.f32 %v2209, %v2463
        %v2498 = vadd.f32 %v2210, %v2468
        %v2499 = vadd.f32 %v2211, %v2471
        %v2500 = vadd.f32 %v2212, %v2476
        %v2501 = vadd.f32 %v2213, %v2479
        %v2502 = vadd.f32 %v2214, %v2484
        %v2503 = vadd.f32 %v2215, %v2487
        %v2504 = vld [vmem:[#allocation2 + $0xc] sm:$0xe]
        %s2505 = scalar_lea.vmem [#allocation6], 448
        %v2506 = vld [vmem:[%s2505] sm:$0xf]
        %v2507 = vld [vmem:[%s2505 + $0x4] sm:$0xf]
        %v2508 = vld [vmem:[%s2505 + $0x8] sm:$0xf]
        %v2509 = vld [vmem:[%s2505 + $0xc] sm:$0xf]
        %v2510 = vld [vmem:[%s2505 + $0x10] sm:$0xf]
        %v2511 = vld [vmem:[%s2505 + $0x14] sm:$0xf]
        %v2512 = vld [vmem:[%s2505 + $0x18] sm:$0xf]
        %v2513 = vld [vmem:[%s2505 + $0x1c] sm:$0xf]
        %v2514 = vld [vmem:[%s2505 + $0x20] sm:$0xf]
        %v2515 = vld [vmem:[%s2505 + $0x24] sm:$0xf]
        %v2516 = vld [vmem:[%s2505 + $0x28] sm:$0xf]
        %v2517 = vld [vmem:[%s2505 + $0x2c] sm:$0xf]
        %v2518 = vld [vmem:[%s2505 + $0x30] sm:$0xf]
        %v2519 = vld [vmem:[%s2505 + $0x34] sm:$0xf]
        %v2520 = vld [vmem:[%s2505 + $0x38] sm:$0xf]
        %v2521 = vld [vmem:[%s2505 + $0x3c] sm:$0xf]
        %v2523 = vunpack.c.l.b16 %v2504
        %v2524 = vpack.c.b16 %v2264, %v2523
        %vm2525 = vcmask 1046528
        %v2526 = vrot.slane %v2524, 1
        %v2527 = vrot.slane %v2279, 1
        %v2528 = vsel %vm2525, %v2526, %v2527
        %v2529 = vrot.slane %v2280, 1
        %v2530 = vsel %vm2525, %v2527, %v2529
        %v2531 = vrot.slane %v2281, 1
        %v2532 = vsel %vm2525, %v2529, %v2531
        %v2533 = vrot.slane %v2282, 1
        %v2534 = vsel %vm2525, %v2531, %v2533
        %v2535 = vrot.slane %v2283, 1
        %v2536 = vsel %vm2525, %v2533, %v2535
        %v2537 = vrot.slane %v2284, 1
        %v2538 = vsel %vm2525, %v2535, %v2537
        %v2539 = vrot.slane %v2285, 1
        %v2540 = vsel %vm2525, %v2537, %v2539
        %v2564 = vunpack.c.l.b16 %v2506
        %v2565 = vunpack.c.l.b16 %v2507
        %v2566 = vunpack.c.l.b16 %v2508
        %v2567 = vunpack.c.l.b16 %v2509
        %v2568 = vunpack.c.l.b16 %v2510
        %v2569 = vunpack.c.l.b16 %v2511
        %v2570 = vunpack.c.l.b16 %v2512
        %v2571 = vunpack.c.l.b16 %v2513
        %v2572 = vunpack.c.l.b16 %v2514
        %v2573 = vunpack.c.l.b16 %v2515
        %v2574 = vunpack.c.l.b16 %v2516
        %v2575 = vunpack.c.l.b16 %v2517
        %v2576 = vunpack.c.l.b16 %v2518
        %v2577 = vunpack.c.l.b16 %v2519
        %v2578 = vunpack.c.l.b16 %v2520
        %v2579 = vunpack.c.l.b16 %v2521
        %v2580 = vpack.c.b16 %v2565, %v2564
        %v2581 = vpack.c.b16 %v2567, %v2566
        %v2582 = vpack.c.b16 %v2569, %v2568
        %v2583 = vpack.c.b16 %v2571, %v2570
        %v2584 = vpack.c.b16 %v2573, %v2572
        %v2585 = vpack.c.b16 %v2575, %v2574
        %v2586 = vpack.c.b16 %v2577, %v2576
        %v2587 = vpack.c.b16 %v2579, %v2578
        %2596 = vmatprep.subr.bf16.mxu0 0
        %2597 = vmatpush1.bf16.msra.mxu0 %v2580
        %2598 = vmatprep.subr.bf16.mxu0 0
        %2599 = vmatpush1.bf16.msra.mxu0 %v2581
        %2600 = vmatprep.subr.bf16.mxu0 0
        %2601 = vmatpush1.bf16.msra.mxu0 %v2582
        %2602 = vmatprep.subr.bf16.mxu0 0
        %2603 = vmatpush1.bf16.msra.mxu0 %v2583
        %2604 = vmatprep.subr.bf16.mxu0 0
        %2605 = vmatpush1.bf16.msra.mxu0 %v2584
        %2606 = vmatprep.subr.bf16.mxu0 0
        %2607 = vmatpush1.bf16.msra.mxu0 %v2585
        %2608 = vmatprep.subr.bf16.mxu0 0
        %2609 = vmatpush1.bf16.msra.mxu0 %v2586
        %2610 = vmatprep.subr.bf16.mxu0 0
        %2611 = vmatpush1.bf16.msra.mxu0 %v2587
        %2612 = vmatprep.subr.bf16.mxu0 0
        %2613 = vmatpush1.bf16.msra.mxu0 0
        %2614 = vmatprep.subr.bf16.mxu0 0
        %2615 = vmatpush1.bf16.msra.mxu0 0
        %2616 = vmatprep.subr.bf16.mxu0 0
        %2617 = vmatpush1.bf16.msra.mxu0 0
        %2618 = vmatprep.subr.bf16.mxu0 0
        %2619 = vmatpush1.bf16.msra.mxu0 0
        %2620 = vmatprep.subr.bf16.mxu0 0
        %2621 = vmatpush1.bf16.msra.mxu0 0
        %2622 = vmatprep.subr.bf16.mxu0 0
        %2623 = vmatpush1.bf16.msra.mxu0 0
        %2624 = vmatprep.subr.bf16.mxu0 0
        %2625 = vmatpush1.bf16.msra.mxu0 0
        %2626 = vmatprep.subr.bf16.mxu0 0
        %2627 = vmatpush1.bf16.msra.mxu0 0
        %2628 = vmatprep.mubr.bf16.mxu0 0
        %2629 = vmatmul.mubr.bf16.gmra.mrb[0].mxu0 %v2528
        %v2630 = vpop.f32.mrb[0].mxu0
        %v2631 = vadd.f32 0.0, %v2630
        %v2632 = vpop.f32.mrb[0].mxu0
        %v2633 = vpop.f32.mrb[0].mxu0
        %v2634 = vadd.f32 0.0, %v2633
        %v2635 = vpop.f32.mrb[0].mxu0
        %2636 = vmatprep.mubr.bf16.mxu0 0
        %2637 = vmatmul.mubr.bf16.gmra.mrb[0].mxu0 %v2530
        %v2638 = vpop.f32.mrb[0].mxu0
        %v2639 = vadd.f32 0.0, %v2638
        %v2640 = vpop.f32.mrb[0].mxu0
        %v2641 = vpop.f32.mrb[0].mxu0
        %v2642 = vadd.f32 0.0, %v2641
        %v2643 = vpop.f32.mrb[0].mxu0
        %2644 = vmatprep.mubr.bf16.mxu0 0
        %2645 = vmatmul.mubr.bf16.gmra.mrb[0].mxu0 %v2532
        %v2646 = vpop.f32.mrb[0].mxu0
        %v2647 = vadd.f32 0.0, %v2646
        %v2648 = vpop.f32.mrb[0].mxu0
        %v2649 = vpop.f32.mrb[0].mxu0
        %v2650 = vadd.f32 0.0, %v2649
        %v2651 = vpop.f32.mrb[0].mxu0
        %2652 = vmatprep.mubr.bf16.mxu0 0
        %2653 = vmatmul.mubr.bf16.gmra.mrb[0].mxu0 %v2534
        %v2654 = vpop.f32.mrb[0].mxu0
        %v2655 = vadd.f32 0.0, %v2654
        %v2656 = vpop.f32.mrb[0].mxu0
        %v2657 = vpop.f32.mrb[0].mxu0
        %v2658 = vadd.f32 0.0, %v2657
        %v2659 = vpop.f32.mrb[0].mxu0
        %2660 = vmatprep.mubr.bf16.mxu0 0
        %2661 = vmatmul.mubr.bf16.gmra.mrb[0].mxu0 %v2536
        %v2662 = vpop.f32.mrb[0].mxu0
        %v2663 = vadd.f32 0.0, %v2662
        %v2664 = vpop.f32.mrb[0].mxu0
        %v2665 = vpop.f32.mrb[0].mxu0
        %v2666 = vadd.f32 0.0, %v2665
        %v2667 = vpop.f32.mrb[0].mxu0
        %2668 = vmatprep.mubr.bf16.mxu0 0
        %2669 = vmatmul.mubr.bf16.gmra.mrb[0].mxu0 %v2538
        %v2670 = vpop.f32.mrb[0].mxu0
        %v2671 = vadd.f32 0.0, %v2670
        %v2672 = vpop.f32.mrb[0].mxu0
        %v2673 = vpop.f32.mrb[0].mxu0
        %v2674 = vadd.f32 0.0, %v2673
        %v2675 = vpop.f32.mrb[0].mxu0
        %2676 = vmatprep.mubr.bf16.mxu0 0
        %2677 = vmatmul.mubr.bf16.gmra.mrb[0].mxu0 %v2540
        %v2678 = vpop.f32.mrb[0].mxu0
        %v2679 = vadd.f32 0.0, %v2678
        %v2680 = vpop.f32.mrb[0].mxu0
        %v2681 = vpop.f32.mrb[0].mxu0
        %v2682 = vadd.f32 0.0, %v2681
        %v2683 = vpop.f32.mrb[0].mxu0
        %2684 = vdwg.mxu0
        %v2685 = vadd.f32 %v2490, %v2631
        %v2686 = vadd.f32 %v2491, %v2634
        %v2687 = vadd.f32 %v2492, %v2639
        %v2688 = vadd.f32 %v2493, %v2642
        %v2689 = vadd.f32 %v2494, %v2647
        %v2690 = vadd.f32 %v2495, %v2650
        %v2691 = vadd.f32 %v2496, %v2655
        %v2692 = vadd.f32 %v2497, %v2658
        %v2693 = vadd.f32 %v2498, %v2663
        %v2694 = vadd.f32 %v2499, %v2666
        %v2695 = vadd.f32 %v2500, %v2671
        %v2696 = vadd.f32 %v2501, %v2674
        %v2697 = vadd.f32 %v2502, %v2679
        %v2698 = vadd.f32 %v2503, %v2682
        %v2699 = vld [vmem:[#allocation2 + $0x44] sm:$0x3]
        %s2700 = scalar_lea.vmem [#allocation6], 512
        %v2701 = vld [vmem:[%s2700] sm:$0xf]
        %v2702 = vld [vmem:[%s2700 + $0x4] sm:$0xf]
        %v2703 = vld [vmem:[%s2700 + $0x8] sm:$0xf]
        %v2704 = vld [vmem:[%s2700 + $0xc] sm:$0xf]
        %v2705 = vld [vmem:[%s2700 + $0x10] sm:$0xf]
        %v2706 = vld [vmem:[%s2700 + $0x14] sm:$0xf]
        %v2707 = vld [vmem:[%s2700 + $0x18] sm:$0xf]
        %v2708 = vld [vmem:[%s2700 + $0x1c] sm:$0xf]
        %v2709 = vld [vmem:[%s2700 + $0x20] sm:$0xf]
        %v2710 = vld [vmem:[%s2700 + $0x24] sm:$0xf]
        %v2711 = vld [vmem:[%s2700 + $0x28] sm:$0xf]
        %v2712 = vld [vmem:[%s2700 + $0x2c] sm:$0xf]
        %v2713 = vld [vmem:[%s2700 + $0x30] sm:$0xf]
        %v2714 = vld [vmem:[%s2700 + $0x34] sm:$0xf]
        %v2715 = vld [vmem:[%s2700 + $0x38] sm:$0xf]
        %v2716 = vld [vmem:[%s2700 + $0x3c] sm:$0xf]
        %v2718 = vunpack.c.l.b16 %v2699
        %v2719 = vpack.c.b16 %v2718, %v2718
        %vm2720 = vsmask.f32 6400
        %v2722 = vshrl.u32 %v2524, 16
        %v2724 = vrot.slane %v2722, 1
        %v2725 = vshll.u32 %v2524, 16
        %v2727 = vrot.slane %v2725, 2
        %v2728 = vor.u32 %v2724, %v2727
        %v2729 = vrot.slane %v2298, 1
        %v2730 = vrot.slane %v2294, 2
        %v2731 = vor.u32 %v2729, %v2730
        %v2732 = vsel %vm2720, %v2728, %v2731
        %v2733 = vrot.slane %v2306, 1
        %v2734 = vrot.slane %v2302, 2
        %v2735 = vor.u32 %v2733, %v2734
        %v2736 = vsel %vm2720, %v2731, %v2735
        %v2737 = vrot.slane %v2314, 1
        %v2738 = vrot.slane %v2310, 2
        %v2739 = vor.u32 %v2737, %v2738
        %v2740 = vsel %vm2720, %v2735, %v2739
        %v2741 = vrot.slane %v2322, 1
        %v2742 = vrot.slane %v2318, 2
        %v2743 = vor.u32 %v2741, %v2742
        %v2744 = vsel %vm2720, %v2739, %v2743
        %v2745 = vrot.slane %v2330, 1
        %v2746 = vrot.slane %v2326, 2
        %v2747 = vor.u32 %v2745, %v2746
        %v2748 = vsel %vm2720, %v2743, %v2747
        %v2749 = vrot.slane %v2338, 1
        %v2750 = vrot.slane %v2334, 2
        %v2751 = vor.u32 %v2749, %v2750
        %v2752 = vsel %vm2720, %v2747, %v2751
        %v2754 = vshrl.u32 %v2719, 16
        %v2756 = vrot.slane %v2754, 1
        %v2757 = vshll.u32 %v2719, 16
        %v2759 = vrot.slane %v2757, 2
        %v2760 = vor.u32 %v2756, %v2759
        %v2761 = vsel %vm2720, %v2751, %v2760
        %v2785 = vunpack.c.l.b16 %v2701
        %v2786 = vunpack.c.l.b16 %v2702
        %v2787 = vunpack.c.l.b16 %v2703
        %v2788 = vunpack.c.l.b16 %v2704
        %v2789 = vunpack.c.l.b16 %v2705
        %v2790 = vunpack.c.l.b16 %v2706
        %v2791 = vunpack.c.l.b16 %v2707
        %v2792 = vunpack.c.l.b16 %v2708
        %v2793 = vunpack.c.l.b16 %v2709
        %v2794 = vunpack.c.l.b16 %v2710
        %v2795 = vunpack.c.l.b16 %v2711
        %v2796 = vunpack.c.l.b16 %v2712
        %v2797 = vunpack.c.l.b16 %v2713
        %v2798 = vunpack.c.l.b16 %v2714
        %v2799 = vunpack.c.l.b16 %v2715
        %v2800 = vunpack.c.l.b16 %v2716
        %v2801 = vpack.c.b16 %v2786, %v2785
        %v2802 = vpack.c.b16 %v2788, %v2787
        %v2803 = vpack.c.b16 %v2790, %v2789
        %v2804 = vpack.c.b16 %v2792, %v2791
        %v2805 = vpack.c.b16 %v2794, %v2793
        %v2806 = vpack.c.b16 %v2796, %v2795
        %v2807 = vpack.c.b16 %v2798, %v2797
        %v2808 = vpack.c.b16 %v2800, %v2799
        %2817 = vmatprep.subr.bf16.mxu0 0
        %2818 = vmatpush1.bf16.msra.mxu0 %v2801
        %2819 = vmatprep.subr.bf16.mxu0 0
        %2820 = vmatpush1.bf16.msra.mxu0 %v2802
        %2821 = vmatprep.subr.bf16.mxu0 0
        %2822 = vmatpush1.bf16.msra.mxu0 %v2803
        %2823 = vmatprep.subr.bf16.mxu0 0
        %2824 = vmatpush1.bf16.msra.mxu0 %v2804
        %2825 = vmatprep.subr.bf16.mxu0 0
        %2826 = vmatpush1.bf16.msra.mxu0 %v2805
        %2827 = vmatprep.subr.bf16.mxu0 0
        %2828 = vmatpush1.bf16.msra.mxu0 %v2806
        %2829 = vmatprep.subr.bf16.mxu0 0
        %2830 = vmatpush1.bf16.msra.mxu0 %v2807
        %2831 = vmatprep.subr.bf16.mxu0 0
        %2832 = vmatpush1.bf16.msra.mxu0 %v2808
        %2833 = vmatprep.subr.bf16.mxu0 0
        %2834 = vmatpush1.bf16.msra.mxu0 0
        %2835 = vmatprep.subr.bf16.mxu0 0
        %2836 = vmatpush1.bf16.msra.mxu0 0
        %2837 = vmatprep.subr.bf16.mxu0 0
        %2838 = vmatpush1.bf16.msra.mxu0 0
        %2839 = vmatprep.subr.bf16.mxu0 0
        %2840 = vmatpush1.bf16.msra.mxu0 0
        %2841 = vmatprep.subr.bf16.mxu0 0
        %2842 = vmatpush1.bf16.msra.mxu0 0
        %2843 = vmatprep.subr.bf16.mxu0 0
        %2844 = vmatpush1.bf16.msra.mxu0 0
        %2845 = vmatprep.subr.bf16.mxu0 0
        %2846 = vmatpush1.bf16.msra.mxu0 0
        %2847 = vmatprep.subr.bf16.mxu0 0
        %2848 = vmatpush1.bf16.msra.mxu0 0
        %2849 = vmatprep.mubr.bf16.mxu0 0
        %2850 = vmatmul.mubr.bf16.gmra.mrb[0].mxu0 %v2732
        %v2851 = vpop.f32.mrb[0].mxu0
        %v2852 = vadd.f32 0.0, %v2851
        %v2853 = vpop.f32.mrb[0].mxu0
        %v2854 = vpop.f32.mrb[0].mxu0
        %v2855 = vadd.f32 0.0, %v2854
        %v2856 = vpop.f32.mrb[0].mxu0
        %2857 = vmatprep.mubr.bf16.mxu0 0
        %2858 = vmatmul.mubr.bf16.gmra.mrb[0].mxu0 %v2736
        %v2859 = vpop.f32.mrb[0].mxu0
        %v2860 = vadd.f32 0.0, %v2859
        %v2861 = vpop.f32.mrb[0].mxu0
        %v2862 = vpop.f32.mrb[0].mxu0
        %v2863 = vadd.f32 0.0, %v2862
        %v2864 = vpop.f32.mrb[0].mxu0
        %2865 = vmatprep.mubr.bf16.mxu0 0
        %2866 = vmatmul.mubr.bf16.gmra.mrb[0].mxu0 %v2740
        %v2867 = vpop.f32.mrb[0].mxu0
        %v2868 = vadd.f32 0.0, %v2867
        %v2869 = vpop.f32.mrb[0].mxu0
        %v2870 = vpop.f32.mrb[0].mxu0
        %v2871 = vadd.f32 0.0, %v2870
        %v2872 = vpop.f32.mrb[0].mxu0
        %2873 = vmatprep.mubr.bf16.mxu0 0
        %2874 = vmatmul.mubr.bf16.gmra.mrb[0].mxu0 %v2744
        %v2875 = vpop.f32.mrb[0].mxu0
        %v2876 = vadd.f32 0.0, %v2875
        %v2877 = vpop.f32.mrb[0].mxu0
        %v2878 = vpop.f32.mrb[0].mxu0
        %v2879 = vadd.f32 0.0, %v2878
        %v2880 = vpop.f32.mrb[0].mxu0
        %2881 = vmatprep.mubr.bf16.mxu0 0
        %2882 = vmatmul.mubr.bf16.gmra.mrb[0].mxu0 %v2748
        %v2883 = vpop.f32.mrb[0].mxu0
        %v2884 = vadd.f32 0.0, %v2883
        %v2885 = vpop.f32.mrb[0].mxu0
        %v2886 = vpop.f32.mrb[0].mxu0
        %v2887 = vadd.f32 0.0, %v2886
        %v2888 = vpop.f32.mrb[0].mxu0
        %2889 = vmatprep.mubr.bf16.mxu0 0
        %2890 = vmatmul.mubr.bf16.gmra.mrb[0].mxu0 %v2752
        %v2891 = vpop.f32.mrb[0].mxu0
        %v2892 = vadd.f32 0.0, %v2891
        %v2893 = vpop.f32.mrb[0].mxu0
        %v2894 = vpop.f32.mrb[0].mxu0
        %v2895 = vadd.f32 0.0, %v2894
        %v2896 = vpop.f32.mrb[0].mxu0
        %2897 = vmatprep.mubr.bf16.mxu0 0
        %2898 = vmatmul.mubr.bf16.gmra.mrb[0].mxu0 %v2761
        %v2899 = vpop.f32.mrb[0].mxu0
        %v2900 = vadd.f32 0.0, %v2899
        %v2901 = vpop.f32.mrb[0].mxu0
        %v2902 = vpop.f32.mrb[0].mxu0
        %v2903 = vadd.f32 0.0, %v2902
        %v2904 = vpop.f32.mrb[0].mxu0
        %2905 = vdwg.mxu0
        %v2906 = vadd.f32 %v2685, %v2852
        %v2907 = vadd.f32 %v2686, %v2855
        %v2908 = vadd.f32 %v2687, %v2860
        %v2909 = vadd.f32 %v2688, %v2863
        %v2910 = vadd.f32 %v2689, %v2868
        %v2911 = vadd.f32 %v2690, %v2871
        %v2912 = vadd.f32 %v2691, %v2876
        %v2913 = vadd.f32 %v2692, %v2879
        %v2914 = vadd.f32 %v2693, %v2884
        %v2915 = vadd.f32 %v2694, %v2887
        %v2916 = vadd.f32 %v2695, %v2892
        %v2917 = vadd.f32 %v2696, %v2895
        %v2918 = vadd.f32 %v2697, %v2900
        %v2919 = vadd.f32 %v2698, %v2903
        %v2920 = vld [vmem:[%s5] sm:$0x1]
        %v2922 = vlaneseq
        %v2923 = vshrl.u32 %v2922, 7
        %v2924 = vsub.s32 0, %v2923
        %v2925 = vrot.slane %v2920, %v2924
        %v2927 = vadd.f32 %v2906, %v2925
        %v2928 = vadd.f32 %v2907, %v2925
        %v2929 = vadd.f32 %v2908, %v2925
        %v2930 = vadd.f32 %v2909, %v2925
        %v2931 = vadd.f32 %v2910, %v2925
        %v2932 = vadd.f32 %v2911, %v2925
        %v2933 = vadd.f32 %v2912, %v2925
        %v2934 = vadd.f32 %v2913, %v2925
        %v2935 = vadd.f32 %v2914, %v2925
        %v2936 = vadd.f32 %v2915, %v2925
        %v2937 = vadd.f32 %v2916, %v2925
        %v2938 = vadd.f32 %v2917, %v2925
        %v2939 = vadd.f32 %v2918, %v2925
        %v2940 = vadd.f32 %v2919, %v2925
        %v2941 = vmax.f32 %v2927, 0.0
        %v2942 = vmax.f32 %v2928, 0.0
        %v2943 = vmax.f32 %v2929, 0.0
        %v2944 = vmax.f32 %v2930, 0.0
        %v2945 = vmax.f32 %v2931, 0.0
        %v2946 = vmax.f32 %v2932, 0.0
        %v2947 = vmax.f32 %v2933, 0.0
        %v2948 = vmax.f32 %v2934, 0.0
        %v2949 = vmax.f32 %v2935, 0.0
        %v2950 = vmax.f32 %v2936, 0.0
        %v2951 = vmax.f32 %v2937, 0.0
        %v2952 = vmax.f32 %v2938, 0.0
        %v2953 = vmax.f32 %v2939, 0.0
        %v2954 = vmax.f32 %v2940, 0.0
        %v2955 = vpack.c.bf16 %v2942, %v2941
        %v2956 = vpack.c.bf16 %v2944, %v2943
        %v2957 = vpack.c.bf16 %v2946, %v2945
        %v2958 = vpack.c.bf16 %v2948, %v2947
        %v2959 = vpack.c.bf16 %v2950, %v2949
        %v2960 = vpack.c.bf16 %v2952, %v2951
        %v2961 = vpack.c.bf16 %v2954, %v2953
        %v2962 = vld [vmem:[#allocation8] sm:$0xf]
        %v2963 = vld [vmem:[#allocation8 + $0x4] sm:$0xf]
        %v2964 = vld [vmem:[#allocation8 + $0x8] sm:$0xf]
        %v2965 = vld [vmem:[#allocation8 + $0xc] sm:$0xf]
        %v2966 = vld [vmem:[#allocation8 + $0x10] sm:$0xf]
        %v2967 = vld [vmem:[#allocation8 + $0x14] sm:$0xf]
        %v2968 = vld [vmem:[#allocation8 + $0x18] sm:$0xf]
        %v2969 = vld [vmem:[#allocation8 + $0x1c] sm:$0xf]
        %v2970 = vld [vmem:[#allocation8 + $0x20] sm:$0xf]
        %v2971 = vld [vmem:[#allocation8 + $0x24] sm:$0xf]
        %v2972 = vld [vmem:[#allocation8 + $0x28] sm:$0xf]
        %v2973 = vld [vmem:[#allocation8 + $0x2c] sm:$0xf]
        %v2974 = vld [vmem:[#allocation8 + $0x30] sm:$0xf]
        %v2975 = vld [vmem:[#allocation8 + $0x34] sm:$0xf]
        %v2976 = vld [vmem:[#allocation8 + $0x38] sm:$0xf]
        %v2977 = vld [vmem:[#allocation8 + $0x3c] sm:$0xf]
        %v2978 = vld [vmem:[%s7] sm:$0x1]
        %v2980 = vlaneseq
        %v2981 = vshrl.u32 %v2980, 7
        %v2982 = vsub.s32 0, %v2981
        %v2983 = vrot.slane %v2978, %v2982
        %v3001 = vunpack.c.l.b16 %v2962
        %v3002 = vunpack.c.l.b16 %v2963
        %v3003 = vunpack.c.l.b16 %v2964
        %v3004 = vunpack.c.l.b16 %v2965
        %v3005 = vunpack.c.l.b16 %v2966
        %v3006 = vunpack.c.l.b16 %v2967
        %v3007 = vunpack.c.l.b16 %v2968
        %v3008 = vunpack.c.l.b16 %v2969
        %v3009 = vunpack.c.l.b16 %v2970
        %v3010 = vunpack.c.l.b16 %v2971
        %v3011 = vunpack.c.l.b16 %v2972
        %v3012 = vunpack.c.l.b16 %v2973
        %v3013 = vunpack.c.l.b16 %v2974
        %v3014 = vunpack.c.l.b16 %v2975
        %v3015 = vunpack.c.l.b16 %v2976
        %v3016 = vunpack.c.l.b16 %v2977
        %v3017 = vpack.c.b16 %v3002, %v3001
        %v3018 = vpack.c.b16 %v3004, %v3003
        %v3019 = vpack.c.b16 %v3006, %v3005
        %v3020 = vpack.c.b16 %v3008, %v3007
        %v3021 = vpack.c.b16 %v3010, %v3009
        %v3022 = vpack.c.b16 %v3012, %v3011
        %v3023 = vpack.c.b16 %v3014, %v3013
        %v3024 = vpack.c.b16 %v3016, %v3015
        %3033 = vmatprep.subr.bf16.mxu0 0
        %3034 = vmatpush1.bf16.msra.mxu0 %v3017
        %3035 = vmatprep.subr.bf16.mxu0 0
        %3036 = vmatpush1.bf16.msra.mxu0 %v3018
        %3037 = vmatprep.subr.bf16.mxu0 0
        %3038 = vmatpush1.bf16.msra.mxu0 %v3019
        %3039 = vmatprep.subr.bf16.mxu0 0
        %3040 = vmatpush1.bf16.msra.mxu0 %v3020
        %3041 = vmatprep.subr.bf16.mxu0 0
        %3042 = vmatpush1.bf16.msra.mxu0 %v3021
        %3043 = vmatprep.subr.bf16.mxu0 0
        %3044 = vmatpush1.bf16.msra.mxu0 %v3022
        %3045 = vmatprep.subr.bf16.mxu0 0
        %3046 = vmatpush1.bf16.msra.mxu0 %v3023
        %3047 = vmatprep.subr.bf16.mxu0 0
        %3048 = vmatpush1.bf16.msra.mxu0 %v3024
        %3049 = vmatprep.subr.bf16.mxu0 0
        %3050 = vmatpush1.bf16.msra.mxu0 0
        %3051 = vmatprep.subr.bf16.mxu0 0
        %3052 = vmatpush1.bf16.msra.mxu0 0
        %3053 = vmatprep.subr.bf16.mxu0 0
        %3054 = vmatpush1.bf16.msra.mxu0 0
        %3055 = vmatprep.subr.bf16.mxu0 0
        %3056 = vmatpush1.bf16.msra.mxu0 0
        %3057 = vmatprep.subr.bf16.mxu0 0
        %3058 = vmatpush1.bf16.msra.mxu0 0
        %3059 = vmatprep.subr.bf16.mxu0 0
        %3060 = vmatpush1.bf16.msra.mxu0 0
        %3061 = vmatprep.subr.bf16.mxu0 0
        %3062 = vmatpush1.bf16.msra.mxu0 0
        %3063 = vmatprep.subr.bf16.mxu0 0
        %3064 = vmatpush1.bf16.msra.mxu0 0
        %3065 = vmatprep.mubr.bf16.mxu0 0
        %3066 = vmatmul.mubr.bf16.gmra.mrb[0].mxu0 %v2955
        %v3067 = vpop.f32.mrb[0].mxu0
        %v3068 = vadd.f32 %v2983, %v3067
        %v3069 = vpop.f32.mrb[0].mxu0
        %v3070 = vpop.f32.mrb[0].mxu0
        %v3071 = vadd.f32 %v2983, %v3070
        %v3072 = vpop.f32.mrb[0].mxu0
        %3073 = vmatprep.mubr.bf16.mxu0 0
        %3074 = vmatmul.mubr.bf16.gmra.mrb[0].mxu0 %v2956
        %v3075 = vpop.f32.mrb[0].mxu0
        %v3076 = vadd.f32 %v2983, %v3075
        %v3077 = vpop.f32.mrb[0].mxu0
        %v3078 = vpop.f32.mrb[0].mxu0
        %v3079 = vadd.f32 %v2983, %v3078
        %v3080 = vpop.f32.mrb[0].mxu0
        %3081 = vmatprep.mubr.bf16.mxu0 0
        %3082 = vmatmul.mubr.bf16.gmra.mrb[0].mxu0 %v2957
        %v3083 = vpop.f32.mrb[0].mxu0
        %v3084 = vadd.f32 %v2983, %v3083
        %v3085 = vpop.f32.mrb[0].mxu0
        %v3086 = vpop.f32.mrb[0].mxu0
        %v3087 = vadd.f32 %v2983, %v3086
        %v3088 = vpop.f32.mrb[0].mxu0
        %3089 = vmatprep.mubr.bf16.mxu0 0
        %3090 = vmatmul.mubr.bf16.gmra.mrb[0].mxu0 %v2958
        %v3091 = vpop.f32.mrb[0].mxu0
        %v3092 = vadd.f32 %v2983, %v3091
        %v3093 = vpop.f32.mrb[0].mxu0
        %v3094 = vpop.f32.mrb[0].mxu0
        %v3095 = vadd.f32 %v2983, %v3094
        %v3096 = vpop.f32.mrb[0].mxu0
        %3097 = vmatprep.mubr.bf16.mxu0 0
        %3098 = vmatmul.mubr.bf16.gmra.mrb[0].mxu0 %v2959
        %v3099 = vpop.f32.mrb[0].mxu0
        %v3100 = vadd.f32 %v2983, %v3099
        %v3101 = vpop.f32.mrb[0].mxu0
        %v3102 = vpop.f32.mrb[0].mxu0
        %v3103 = vadd.f32 %v2983, %v3102
        %v3104 = vpop.f32.mrb[0].mxu0
        %3105 = vmatprep.mubr.bf16.mxu0 0
        %3106 = vmatmul.mubr.bf16.gmra.mrb[0].mxu0 %v2960
        %v3107 = vpop.f32.mrb[0].mxu0
        %v3108 = vadd.f32 %v2983, %v3107
        %v3109 = vpop.f32.mrb[0].mxu0
        %v3110 = vpop.f32.mrb[0].mxu0
        %v3111 = vadd.f32 %v2983, %v3110
        %v3112 = vpop.f32.mrb[0].mxu0
        %3113 = vmatprep.mubr.bf16.mxu0 0
        %3114 = vmatmul.mubr.bf16.gmra.mrb[0].mxu0 %v2961
        %v3115 = vpop.f32.mrb[0].mxu0
        %v3116 = vadd.f32 %v2983, %v3115
        %v3117 = vpop.f32.mrb[0].mxu0
        %v3118 = vpop.f32.mrb[0].mxu0
        %v3119 = vadd.f32 %v2983, %v3118
        %v3120 = vpop.f32.mrb[0].mxu0
        %3121 = vdwg.mxu0
        %v3122 = vld [vmem:[%s348] sm:$0xf]
        %v3123 = vld [vmem:[%s348 + $0x4] sm:$0xf]
        %v3124 = vld [vmem:[%s348 + $0x8] sm:$0xf]
        %v3125 = vld [vmem:[%s348 + $0xc] sm:$0xf]
        %v3126 = vld [vmem:[%s348 + $0x10] sm:$0xf]
        %v3127 = vld [vmem:[%s348 + $0x14] sm:$0xf]
        %v3128 = vld [vmem:[%s348 + $0x18] sm:$0xf]
        %v3129 = vld [vmem:[%s348 + $0x1c] sm:$0xf]
        %v3130 = vld [vmem:[%s348 + $0x20] sm:$0xf]
        %v3131 = vld [vmem:[%s348 + $0x24] sm:$0xf]
        %v3132 = vld [vmem:[%s348 + $0x28] sm:$0xf]
        %v3133 = vld [vmem:[%s348 + $0x2c] sm:$0xf]
        %v3134 = vld [vmem:[%s348 + $0x30] sm:$0xf]
        %v3135 = vld [vmem:[%s348 + $0x34] sm:$0xf]
        %v3136 = vunpack.c.l.bf16 %v3122
        %v3137 = vunpack.c.l.bf16 %v3123
        %v3138 = vunpack.c.l.bf16 %v3124
        %v3139 = vunpack.c.l.bf16 %v3125
        %v3140 = vunpack.c.l.bf16 %v3126
        %v3141 = vunpack.c.l.bf16 %v3127
        %v3142 = vunpack.c.l.bf16 %v3128
        %v3143 = vunpack.c.l.bf16 %v3129
        %v3144 = vunpack.c.l.bf16 %v3130
        %v3145 = vunpack.c.l.bf16 %v3131
        %v3146 = vunpack.c.l.bf16 %v3132
        %v3147 = vunpack.c.l.bf16 %v3133
        %v3148 = vunpack.c.l.bf16 %v3134
        %v3149 = vunpack.c.l.bf16 %v3135
        %v3150 = vadd.f32 %v3068, %v3136
        %v3151 = vadd.f32 %v3071, %v3137
        %v3152 = vadd.f32 %v3076, %v3138
        %v3153 = vadd.f32 %v3079, %v3139
        %v3154 = vadd.f32 %v3084, %v3140
        %v3155 = vadd.f32 %v3087, %v3141
        %v3156 = vadd.f32 %v3092, %v3142
        %v3157 = vadd.f32 %v3095, %v3143
        %v3158 = vadd.f32 %v3100, %v3144
        %v3159 = vadd.f32 %v3103, %v3145
        %v3160 = vadd.f32 %v3108, %v3146
        %v3161 = vadd.f32 %v3111, %v3147
        %v3162 = vadd.f32 %v3116, %v3148
        %v3163 = vadd.f32 %v3119, %v3149
        %v3164 = vmax.f32 %v3150, 0.0
        %v3165 = vmax.f32 %v3151, 0.0
        %v3166 = vmax.f32 %v3152, 0.0
        %v3167 = vmax.f32 %v3153, 0.0
        %v3168 = vmax.f32 %v3154, 0.0
        %v3169 = vmax.f32 %v3155, 0.0
        %v3170 = vmax.f32 %v3156, 0.0
        %v3171 = vmax.f32 %v3157, 0.0
        %v3172 = vmax.f32 %v3158, 0.0
        %v3173 = vmax.f32 %v3159, 0.0
        %v3174 = vmax.f32 %v3160, 0.0
        %v3175 = vmax.f32 %v3161, 0.0
        %v3176 = vmax.f32 %v3162, 0.0
        %v3177 = vmax.f32 %v3163, 0.0
        %3178 = vst [vmem:[%s343] sm:$0xff] %v3164
        %3179 = vst [vmem:[%s343 + $0x8] sm:$0xff] %v3165
        %3180 = vst [vmem:[%s343 + $0x10] sm:$0xff] %v3166
        %3181 = vst [vmem:[%s343 + $0x18] sm:$0xff] %v3167
        %3182 = vst [vmem:[%s343 + $0x20] sm:$0xff] %v3168
        %3183 = vst [vmem:[%s343 + $0x28] sm:$0xff] %v3169
        %3184 = vst [vmem:[%s343 + $0x30] sm:$0xff] %v3170
        %3185 = vst [vmem:[%s343 + $0x38] sm:$0xff] %v3171
        %3186 = vst [vmem:[%s343 + $0x40] sm:$0xff] %v3172
        %3187 = vst [vmem:[%s343 + $0x48] sm:$0xff] %v3173
        %3188 = vst [vmem:[%s343 + $0x50] sm:$0xff] %v3174
        %3189 = vst [vmem:[%s343 + $0x58] sm:$0xff] %v3175
        %3190 = vst [vmem:[%s343 + $0x60] sm:$0xff] %v3176
        %3191 = vst [vmem:[%s343 + $0x68] sm:$0xff] %v3177
        %s3192 = sand.u32 %s205, 1
        %s3193 = scalar_lea.sflag [#allocation5], %s3192
        %s3194 = sand.u32 %s205, 1
        %s3195 = smul.addr %s3194, 112
        %s3196 = scalar_lea.vmem [#allocation9], %s3195
        // Predicated region
        $region65: #{tpu_custom_call.1} parent=51 // pred_check
          %p3197 = pneg %p215
        $region66: #{tpu_custom_call.1} parent=51 // pred_check_branch
          %3199 = sbr.rel (%p3197) target = $region68
        $region67: #{tpu_custom_call.1} parent=51 // pred_region
          %s3200 = smul.u32 14, %s24
          %s3202 = ssub.s32 1792, 1792
          %3203 = vsyncadd %s3193, %s3202
          %s3204 = smul.addr %s3200, 128
          %s3205 = scalar_lea.hbm %s8, %s3204
          %s3206 = sshll.u32 %s3196, 4
          %s3207 = int_to_ptr.vmem [resolvable:$true] %s3206
          %3212 = dma.vmem_to_hbm [thread:$0]  %s3207, 1792, %s3205, %s3193, 128, 128, 8
        $region68: #{tpu_custom_call.1} parent=51 // pred_fallthru
          _
      $region52: #{tpu_custom_call.1} parent=5 // pred_fallthru
        _
      %p3213 = scmp.le.s32.totalorder 2, %s19
      // Predicated region
      $region69: #{tpu_custom_call.1} parent=5 // pred_check
        %p3214 = pneg %p3213
      $region70: #{tpu_custom_call.1} parent=5 // pred_check_branch
        %3216 = sbr.rel (%p3214) target = $region72
      $region71: #{tpu_custom_call.1} parent=5 // pred_region
        %s3217 = ssub.s32 %s19, 2
        // Predicated region
        $region73: #{tpu_custom_call.1} parent=71 // pred_check
          %p3218 = pneg %p221
        $region74: #{tpu_custom_call.1} parent=71 // pred_check_branch
          %3220 = sbr.rel (%p3218) target = $region76
        $region75: #{tpu_custom_call.1} parent=71 // pred_region
          %s3221 = sand.u32 %s206, 1
          %s3222 = scalar_lea.sflag [#allocation5], %s3221
          %s3223 = sand.u32 %s206, 1
          %s3224 = smul.addr %s3223, 112
          %s3225 = scalar_lea.vmem [#allocation9], %s3224
          %3226 = dma.done %s3222, 1792
        $region76: #{tpu_custom_call.1} parent=71 // pred_fallthru
          _
      $region72: #{tpu_custom_call.1} parent=5 // pred_fallthru
        _
    $region6: #{tpu_custom_call.1} parent=1 // loop_footer
      %s23 = sadd.s32 1, %s19
    $region7: #{tpu_custom_call.1} parent=1 // loop_footer_branch
      %18 = sbr.rel target = $region3
    $region8: #{tpu_custom_call.1} parent=1 // loop_exit
      _
    %3227 = vsyncpa [#allocation4], 1
    %s3228 = scalar_lea.sflag [#allocation4], 1
    %3229 = vsyncpa %s3228, 1
    %3230 = vsyncpa [#allocation7], 1
    %3231 = vsyncpa [#allocation5], 1
    %s3232 = scalar_lea.sflag [#allocation5], 1
    %3233 = vsyncpa %s3232, 1

</llo_original>
